<compile_context>
chip_gen: v7x
topology: tpu7x:2x2x1
jax: 0.10.0
libtpu: 0.0.40
codegen_flags: <defaults>
</compile_context>

<pallas_src>
import functools

import jax
import jax.numpy as jnp
from jax.experimental import pallas as pl
from jax.experimental.pallas import tpu as pltpu


def dgc_kernel(inp_ref, st_ref, sup_ref, w_ref, bias_ref, out_ref, *,
               supports_len, max_diffusion_step, node_num, input_dim,
               hidden_dim, batch_tile):
    """One batch tile of DiffusionGraphConv.

    inp_ref  : (Bt*N, Di)  bf16, row = b*N + n
    st_ref   : (Bt*N, Dh)  bf16, row = b*N + n
    sup_ref  : (S, N, N)   bf16 dense diffusion (support) matrices
    w_ref    : (M*F, O)    bf16 reordered weight, row = m*F + f
    bias_ref : (1, O)      f32
    out_ref  : (Bt*N, O)   f32, row = b*N + n
    """
    N = node_num
    Bt = batch_tile
    F = input_dim + hidden_dim
    S = supports_len
    D = max_diffusion_step
    BtF = Bt * F
    dot_dtype = sup_ref.dtype            # MXU operand dtype (bf16)

    # ---- assemble node-major x0 (N, Bt*F), column = b*F + f ------------------
    # Only sublane-aligned row slices + one lane concat; this rides on the DMA
    # already paid for the tile (no wrapper-side HBM transpose of x).
    xin = inp_ref[...].astype(jnp.float32)        # (Bt*N, Di)
    xst = st_ref[...].astype(jnp.float32)         # (Bt*N, Dh)
    pieces = []
    for b in range(Bt):
        pieces.append(xin[b * N:(b + 1) * N, :])
        pieces.append(xst[b * N:(b + 1) * N, :])
    x0 = jnp.concatenate(pieces, axis=1)          # (N, Bt*F) f32

    # ---- diffusion recursion: each step one (N, N) @ (N, Bt*F) MXU matmul ----
    mats = [x0]
    if D > 0:
        if D == 1 and S > 1:
            # D == 1: x0 never updates, so the order-1 terms of all supports
            # share the same RHS and fuse into one (S*N, N) @ (N, Bt*F) matmul
            # (better MXU row occupancy for small N).
            sup_all = sup_ref[...].reshape(S * N, N)
            x1_all = jnp.dot(sup_all, x0.astype(dot_dtype),
                             preferred_element_type=jnp.float32)
            for s in range(S):
                mats.append(x1_all[s * N:(s + 1) * N, :])
        else:
            # NOTE: for D >= 2 the x0/x1 carry deliberately leaks across the
            # supports loop (matches the PyTorch module exactly), so the
            # per-support order-1 steps cannot be fused.
            xk0 = x0
            for s in range(S):
                sup_s = sup_ref[s]                # (N, N) bf16
                x1 = jnp.dot(sup_s, xk0.astype(dot_dtype),
                             preferred_element_type=jnp.float32)
                mats.append(x1)
                for _ in range(2, D + 1):
                    x2 = 2.0 * jnp.dot(sup_s, x1.astype(dot_dtype),
                                       preferred_element_type=jnp.float32) - xk0
                    mats.append(x2)
                    x1, xk0 = x2, x1

    Mtot = len(mats)                              # = S*D + 1

    # ---- fused projection: one relayout + one (Bt*N, M*F)@(M*F, O) matmul ----
    # Relayout uses a lane-aligned concat, two 2-D transposes whose source lane
    # dims are 128-multiples at these sizes, and sublane-aligned row slices.
    X_all = jnp.concatenate(mats, axis=1)         # (N, M*Bt*F), col = m*BtF+b*F+f
    X_allT = jnp.transpose(X_all)                 # (M*Bt*F, N)
    cols = []
    for b in range(Bt):
        zbT = jnp.concatenate(
            [X_allT[m * BtF + b * F: m * BtF + (b + 1) * F, :]
             for m in range(Mtot)], axis=0)       # (M*F, N), row = m*F + f
        cols.append(zbT)
    zT = jnp.concatenate(cols, axis=1)            # (M*F, Bt*N), col = b*N + n
    z = jnp.transpose(zT)                         # (Bt*N, M*F)

    y = jnp.dot(z.astype(dot_dtype), w_ref[...],
                preferred_element_type=jnp.float32)
    y = y + bias_ref[...]                         # (Bt*N, O) f32
    out_ref[...] = y.astype(out_ref.dtype)


def prepare_weight(weight, *, input_size, num_matrices, output_dim,
                   dtype=jnp.bfloat16):
    """One-time reorder of the torch weight (row f*M + m) to (m*F + f) + cast."""
    F, M, O = input_size, num_matrices, output_dim
    assert weight.shape == (F * M, O)
    return (jnp.transpose(weight.reshape(F, M, O), (1, 0, 2))
            .reshape(M * F, O).astype(dtype))


def diffusion_graph_conv(inputs, state, supports, weight_r, bias, *,
                         node_num, max_diffusion_step, output_dim,
                         batch_tile=None,
                         operand_dtype=jnp.bfloat16,
                         vmem_limit_bytes=32 * 1024 * 1024):
    """Pallas implementation of DiffusionGraphConv.forward.

    inputs   : (B, N*input_dim) f32
    state    : (B, N*hid_dim)   f32
    supports : (S, N, N)        dense support matrices
    weight_r : (M*F, O)         weight pre-reordered with prepare_weight()
    bias     : (O,)
    returns  : (B, N*output_dim) f32
    """
    B = inputs.shape[0]
    N = node_num
    Di = inputs.shape[1] // N
    Dh = state.shape[1] // N
    F = Di + Dh
    S = supports.shape[0]
    D = max_diffusion_step
    M = S * D + 1
    O = output_dim
    assert weight_r.shape == (M * F, O)

    # batch_tile is the per-generation lever: v5e/v6e (128 MiB VMEM) want large
    # tiles (raise vmem_limit_bytes accordingly); v7x (64 MiB) wants smaller
    # tiles and B // Bt a multiple of 2 and >= 4 so both TensorCores get >= 2
    # pipelined grid steps.
    Bt = B if batch_tile is None else batch_tile
    assert B % Bt == 0, "batch must be divisible by batch_tile"
    grid = (B // Bt,)

    # Free reshapes only -- no HBM transpose round trips per call.  bf16 casts
    # halve x/supports/weight DMA bytes (supports/weight casts are one-time in
    # a full DCRNN; shown inline here for a self-contained demo).
    x_in = inputs.reshape(B * N, Di).astype(operand_dtype)
    x_st = state.reshape(B * N, Dh).astype(operand_dtype)
    sup = supports.astype(operand_dtype)
    w = weight_r.astype(operand_dtype)
    b2 = bias.reshape(1, O).astype(jnp.float32)

    kernel = functools.partial(
        dgc_kernel,
        supports_len=S, max_diffusion_step=D, node_num=N,
        input_dim=Di, hidden_dim=Dh, batch_tile=Bt)

    flops = int(2 * S * D * N * N * B * F + 2 * B * N * M * F * O)
    bytes_accessed = int(2 * (B * N * F + S * N * N + M * F * O)
                         + 4 * (O + B * N * O))
    cost = pl.CostEstimate(flops=flops, transcendentals=0,
                           bytes_accessed=bytes_accessed)

    def make_call(single_buffer_invariants):
        def inv_spec(block_shape, index_map):
            # Grid-invariant operands: a second pipeline buffer is pure VMEM
            # waste (matters on v7x's 64 MiB).
            if single_buffer_invariants:
                return pl.BlockSpec(block_shape, index_map,
                                    pipeline_mode=pl.Buffered(1))
            return pl.BlockSpec(block_shape, index_map)

        grid_spec = pltpu.PrefetchScalarGridSpec(
            num_scalar_prefetch=0,
            grid=grid,
            in_specs=[
                pl.BlockSpec((Bt * N, Di), lambda t: (t, 0)),   # inputs tile
                pl.BlockSpec((Bt * N, Dh), lambda t: (t, 0)),   # state tile
                inv_spec((S, N, N), lambda t: (0, 0, 0)),       # supports
                inv_spec((M * F, O), lambda t: (0, 0)),         # weight
                inv_spec((1, O), lambda t: (0, 0)),             # bias
            ],
            out_specs=pl.BlockSpec((Bt * N, O), lambda t: (t, 0)),
        )
        return pl.pallas_call(
            kernel,
            out_shape=jax.ShapeDtypeStruct((B * N, O), jnp.float32),
            grid_spec=grid_spec,
            compiler_params=pltpu.CompilerParams(
                dimension_semantics=("parallel",),
                vmem_limit_bytes=vmem_limit_bytes),
            cost_estimate=cost,
        )

    try:
        out2d = make_call(True)(x_in, x_st, sup, w, b2)
    except Exception:
        # Fallback for jax versions without BlockSpec(pipeline_mode=...).
        out2d = make_call(False)(x_in, x_st, sup, w, b2)

    # (B*N, O) row-major -> (B, N*O): free reshape, no HBM transpose.
    return out2d.reshape(B, N * O)


def reference_jax(inputs, state, supports, weight, bias, *,
                  node_num, max_diffusion_step, output_dim):
    """Line-by-line f32 port of the PyTorch forward, for verification."""
    B = inputs.shape[0]
    N = node_num
    xs = jnp.concatenate([inputs.reshape(B, N, -1),
                          state.reshape(B, N, -1)], axis=2)     # (B, N, F)
    F = xs.shape[2]
    x0 = jnp.transpose(xs, (1, 2, 0)).reshape(N, F * B)         # (N, F*B)
    x = x0[None]
    if max_diffusion_step > 0:
        for s in range(supports.shape[0]):
            sup = supports[s]
            x1 = sup @ x0
            x = jnp.concatenate([x, x1[None]], axis=0)
            for _ in range(2, max_diffusion_step + 1):
                x2 = 2.0 * (sup @ x1) - x0
                x = jnp.concatenate([x, x2[None]], axis=0)
                x1, x0 = x2, x1                 # same leaky carry as torch
    M = supports.shape[0] * max_diffusion_step + 1
    x = x.reshape(M, N, F, B)
    x = jnp.transpose(x, (3, 1, 2, 0)).reshape(B * N, F * M)
    out = x @ weight + bias
    return out.reshape(B, N * output_dim)


if __name__ == "__main__":
    # Small deterministic problem.  batch_tile=8 -> grid=(4,): >= 2 pipelined
    # steps per TensorCore on a v7x megacore, Bt*N = 128 rows for the fused
    # projection matmul.
    node_num = 16
    supports_len = 2
    input_dim = 4
    hid_dim = 12
    output_dim = 16
    max_diffusion_step = 2
    batch = 32
    batch_tile = 8

    F = input_dim + hid_dim
    M = supports_len * max_diffusion_step + 1

    key = jax.random.PRNGKey(0)
    k_in, k_st, k_sup, k_w = jax.random.split(key, 4)

    inputs = jax.random.normal(k_in, (batch, node_num * input_dim), jnp.float32)
    state = jax.random.normal(k_st, (batch, node_num * hid_dim), jnp.float32)

    # Dense row-normalized random "support" matrices (stand-ins for the sparse
    # diffusion transition matrices; TPU has no sparse mm).
    sup_raw = jax.random.uniform(k_sup, (supports_len, node_num, node_num),
                                 jnp.float32)
    supports = sup_raw / jnp.sum(sup_raw, axis=-1, keepdims=True)

    # Xavier-normal init (gain = 1.414), bias_start = 0.0 -- deterministic.
    fan_in, fan_out = F * M, output_dim
    std = 1.414 * (2.0 / (fan_in + fan_out)) ** 0.5
    weight = std * jax.random.normal(k_w, (F * M, output_dim), jnp.float32)
    bias = jnp.zeros((output_dim,), jnp.float32)

    # One-time weight reorder + cast (hoisted out of the per-step wrapper).
    weight_r = prepare_weight(weight, input_size=F, num_matrices=M,
                              output_dim=output_dim)

    out = diffusion_graph_conv(inputs, state, supports, weight_r, bias,
                               node_num=node_num,
                               max_diffusion_step=max_diffusion_step,
                               output_dim=output_dim,
                               batch_tile=batch_tile)
    out = jax.block_until_ready(out)

    ref = reference_jax(inputs, state, supports, weight, bias,
                        node_num=node_num,
                        max_diffusion_step=max_diffusion_step,
                        output_dim=output_dim)
    ref = jax.block_until_ready(ref)

    assert out.shape == (batch, node_num * output_dim)
    # bf16 MXU operands (f32 carries/accumulation): tolerance scaled to the
    # output magnitude; the f32-operand path matches the reference to ~1e-5.
    scale = float(jnp.max(jnp.abs(ref)))
    max_err = float(jnp.max(jnp.abs(out - ref)))
    assert max_err <= 3e-2 * max(scale, 1.0), \
        f"max abs err {max_err} (ref scale {scale})"

    print("KERNEL_OK")
</pallas_src>

<mosaic_0001>
module attributes {stable_mosaic.version = 11 : i64} {
  func.func @dgc_kernel(%arg0: i32, %arg1: memref<128x4xbf16, #tpu.memory_space<vmem>>, %arg2: memref<128x12xbf16, #tpu.memory_space<vmem>>, %arg3: memref<2x16x16xbf16, #tpu.memory_space<vmem>>, %arg4: memref<80x16xbf16, #tpu.memory_space<vmem>>, %arg5: memref<1x16xf32, #tpu.memory_space<vmem>>, %arg6: memref<128x16xf32, #tpu.memory_space<vmem>>) attributes {dimension_semantics = [#tpu.dimension_semantics<parallel>], iteration_bounds = array<i64: 4>, scalar_prefetch = 0 : i64, scratch_operands = 0 : i64, tpu.core_type = #tpu.core_type<tc>, window_params = [{transform_indices = @transform_0, window_bounds = array<i64: 128, 4>}, {transform_indices = @transform_1, window_bounds = array<i64: 128, 12>}, {pipeline_mode = #tpu.pipeline_mode<synchronous>, transform_indices = @transform_2, window_bounds = array<i64: 2, 16, 16>}, {pipeline_mode = #tpu.pipeline_mode<synchronous>, transform_indices = @transform_3, window_bounds = array<i64: 80, 16>}, {pipeline_mode = #tpu.pipeline_mode<synchronous>, transform_indices = @transform_4, window_bounds = array<i64: 1, 16>}, {transform_indices = @transform_5, window_bounds = array<i64: 128, 16>}]} {
    %c0 = arith.constant 0 : index
    %c0_0 = arith.constant 0 : index
    %0 = vector.load %arg1[%c0, %c0_0] : memref<128x4xbf16, #tpu.memory_space<vmem>>, vector<128x4xbf16>
    %1 = arith.extf %0 : vector<128x4xbf16> to vector<128x4xf32>
    %c0_1 = arith.constant 0 : index
    %c0_2 = arith.constant 0 : index
    %2 = vector.load %arg2[%c0_1, %c0_2] : memref<128x12xbf16, #tpu.memory_space<vmem>>, vector<128x12xbf16>
    %3 = arith.extf %2 : vector<128x12xbf16> to vector<128x12xf32>
    %4 = vector.extract_strided_slice %1 {offsets = [0, 0], sizes = [16, 4], strides = [1, 1]} : vector<128x4xf32> to vector<16x4xf32>
    %5 = vector.extract_strided_slice %3 {offsets = [0, 0], sizes = [16, 12], strides = [1, 1]} : vector<128x12xf32> to vector<16x12xf32>
    %6 = vector.extract_strided_slice %1 {offsets = [16, 0], sizes = [16, 4], strides = [1, 1]} : vector<128x4xf32> to vector<16x4xf32>
    %7 = vector.extract_strided_slice %3 {offsets = [16, 0], sizes = [16, 12], strides = [1, 1]} : vector<128x12xf32> to vector<16x12xf32>
    %8 = vector.extract_strided_slice %1 {offsets = [32, 0], sizes = [16, 4], strides = [1, 1]} : vector<128x4xf32> to vector<16x4xf32>
    %9 = vector.extract_strided_slice %3 {offsets = [32, 0], sizes = [16, 12], strides = [1, 1]} : vector<128x12xf32> to vector<16x12xf32>
    %10 = vector.extract_strided_slice %1 {offsets = [48, 0], sizes = [16, 4], strides = [1, 1]} : vector<128x4xf32> to vector<16x4xf32>
    %11 = vector.extract_strided_slice %3 {offsets = [48, 0], sizes = [16, 12], strides = [1, 1]} : vector<128x12xf32> to vector<16x12xf32>
    %12 = vector.extract_strided_slice %1 {offsets = [64, 0], sizes = [16, 4], strides = [1, 1]} : vector<128x4xf32> to vector<16x4xf32>
    %13 = vector.extract_strided_slice %3 {offsets = [64, 0], sizes = [16, 12], strides = [1, 1]} : vector<128x12xf32> to vector<16x12xf32>
    %14 = vector.extract_strided_slice %1 {offsets = [80, 0], sizes = [16, 4], strides = [1, 1]} : vector<128x4xf32> to vector<16x4xf32>
    %15 = vector.extract_strided_slice %3 {offsets = [80, 0], sizes = [16, 12], strides = [1, 1]} : vector<128x12xf32> to vector<16x12xf32>
    %16 = vector.extract_strided_slice %1 {offsets = [96, 0], sizes = [16, 4], strides = [1, 1]} : vector<128x4xf32> to vector<16x4xf32>
    %17 = vector.extract_strided_slice %3 {offsets = [96, 0], sizes = [16, 12], strides = [1, 1]} : vector<128x12xf32> to vector<16x12xf32>
    %18 = vector.extract_strided_slice %1 {offsets = [112, 0], sizes = [16, 4], strides = [1, 1]} : vector<128x4xf32> to vector<16x4xf32>
    %19 = vector.extract_strided_slice %3 {offsets = [112, 0], sizes = [16, 12], strides = [1, 1]} : vector<128x12xf32> to vector<16x12xf32>
    %20 = tpu.concatenate %4, %5, %6, %7, %8, %9, %10, %11, %12, %13, %14, %15, %16, %17, %18, %19 in 1 : vector<16x4xf32>, vector<16x12xf32>, vector<16x4xf32>, vector<16x12xf32>, vector<16x4xf32>, vector<16x12xf32>, vector<16x4xf32>, vector<16x12xf32>, vector<16x4xf32>, vector<16x12xf32>, vector<16x4xf32>, vector<16x12xf32>, vector<16x4xf32>, vector<16x12xf32>, vector<16x4xf32>, vector<16x12xf32> -> vector<16x128xf32>
    %c0_3 = arith.constant 0 : index
    %c0_4 = arith.constant 0 : index
    %c0_5 = arith.constant 0 : index
    %21 = vector.load %arg3[%c0_3, %c0_4, %c0_5] : memref<2x16x16xbf16, #tpu.memory_space<vmem>>, vector<1x16x16xbf16>
    %22 = vector.shape_cast %21 : vector<1x16x16xbf16> to vector<16x16xbf16>
    %23 = arith.truncf %20 : vector<16x128xf32> to vector<16x128xbf16>
    %cst = arith.constant dense<0.000000e+00> : vector<16x128xf32>
    %24 = tpu.matmul %22, %23, %cst {dimension_numbers = #tpu.dot_dimension_numbers<[1], [0], [0], [1], [0, 0, 1, 1], [], []>} : vector<16x16xbf16>, vector<16x128xbf16>, vector<16x128xf32> -> vector<16x128xf32>
    %25 = arith.truncf %24 : vector<16x128xf32> to vector<16x128xbf16>
    %cst_6 = arith.constant dense<0.000000e+00> : vector<16x128xf32>
    %26 = tpu.matmul %22, %25, %cst_6 {dimension_numbers = #tpu.dot_dimension_numbers<[1], [0], [0], [1], [0, 0, 1, 1], [], []>} : vector<16x16xbf16>, vector<16x128xbf16>, vector<16x128xf32> -> vector<16x128xf32>
    %cst_7 = arith.constant 2.000000e+00 : f32
    %27 = vector.broadcast %cst_7 : f32 to vector<16x128xf32>
    %28 = arith.mulf %27, %26 : vector<16x128xf32>
    %29 = arith.subf %28, %20 : vector<16x128xf32>
    %c1 = arith.constant 1 : index
    %c0_8 = arith.constant 0 : index
    %c0_9 = arith.constant 0 : index
    %30 = vector.load %arg3[%c1, %c0_8, %c0_9] : memref<2x16x16xbf16, #tpu.memory_space<vmem>>, vector<1x16x16xbf16>
    %31 = vector.shape_cast %30 : vector<1x16x16xbf16> to vector<16x16xbf16>
    %32 = arith.truncf %24 : vector<16x128xf32> to vector<16x128xbf16>
    %cst_10 = arith.constant dense<0.000000e+00> : vector<16x128xf32>
    %33 = tpu.matmul %31, %32, %cst_10 {dimension_numbers = #tpu.dot_dimension_numbers<[1], [0], [0], [1], [0, 0, 1, 1], [], []>} : vector<16x16xbf16>, vector<16x128xbf16>, vector<16x128xf32> -> vector<16x128xf32>
    %34 = arith.truncf %33 : vector<16x128xf32> to vector<16x128xbf16>
    %cst_11 = arith.constant dense<0.000000e+00> : vector<16x128xf32>
    %35 = tpu.matmul %31, %34, %cst_11 {dimension_numbers = #tpu.dot_dimension_numbers<[1], [0], [0], [1], [0, 0, 1, 1], [], []>} : vector<16x16xbf16>, vector<16x128xbf16>, vector<16x128xf32> -> vector<16x128xf32>
    %cst_12 = arith.constant 2.000000e+00 : f32
    %36 = vector.broadcast %cst_12 : f32 to vector<16x128xf32>
    %37 = arith.mulf %36, %35 : vector<16x128xf32>
    %38 = arith.subf %37, %24 : vector<16x128xf32>
    %39 = tpu.concatenate %20, %24, %29, %33, %38 in 1 : vector<16x128xf32>, vector<16x128xf32>, vector<16x128xf32>, vector<16x128xf32>, vector<16x128xf32> -> vector<16x640xf32>
    %40 = tpu.transpose %39, [1, 0] : vector<16x640xf32> -> vector<640x16xf32>
    %41 = vector.extract_strided_slice %40 {offsets = [0, 0], sizes = [16, 16], strides = [1, 1]} : vector<640x16xf32> to vector<16x16xf32>
    %42 = vector.extract_strided_slice %40 {offsets = [128, 0], sizes = [16, 16], strides = [1, 1]} : vector<640x16xf32> to vector<16x16xf32>
    %43 = vector.extract_strided_slice %40 {offsets = [256, 0], sizes = [16, 16], strides = [1, 1]} : vector<640x16xf32> to vector<16x16xf32>
    %44 = vector.extract_strided_slice %40 {offsets = [384, 0], sizes = [16, 16], strides = [1, 1]} : vector<640x16xf32> to vector<16x16xf32>
    %45 = vector.extract_strided_slice %40 {offsets = [512, 0], sizes = [16, 16], strides = [1, 1]} : vector<640x16xf32> to vector<16x16xf32>
    %46 = tpu.concatenate %41, %42, %43, %44, %45 in 0 : vector<16x16xf32>, vector<16x16xf32>, vector<16x16xf32>, vector<16x16xf32>, vector<16x16xf32> -> vector<80x16xf32>
    %47 = vector.extract_strided_slice %40 {offsets = [16, 0], sizes = [16, 16], strides = [1, 1]} : vector<640x16xf32> to vector<16x16xf32>
    %48 = vector.extract_strided_slice %40 {offsets = [144, 0], sizes = [16, 16], strides = [1, 1]} : vector<640x16xf32> to vector<16x16xf32>
    %49 = vector.extract_strided_slice %40 {offsets = [272, 0], sizes = [16, 16], strides = [1, 1]} : vector<640x16xf32> to vector<16x16xf32>
    %50 = vector.extract_strided_slice %40 {offsets = [400, 0], sizes = [16, 16], strides = [1, 1]} : vector<640x16xf32> to vector<16x16xf32>
    %51 = vector.extract_strided_slice %40 {offsets = [528, 0], sizes = [16, 16], strides = [1, 1]} : vector<640x16xf32> to vector<16x16xf32>
    %52 = tpu.concatenate %47, %48, %49, %50, %51 in 0 : vector<16x16xf32>, vector<16x16xf32>, vector<16x16xf32>, vector<16x16xf32>, vector<16x16xf32> -> vector<80x16xf32>
    %53 = vector.extract_strided_slice %40 {offsets = [32, 0], sizes = [16, 16], strides = [1, 1]} : vector<640x16xf32> to vector<16x16xf32>
    %54 = vector.extract_strided_slice %40 {offsets = [160, 0], sizes = [16, 16], strides = [1, 1]} : vector<640x16xf32> to vector<16x16xf32>
    %55 = vector.extract_strided_slice %40 {offsets = [288, 0], sizes = [16, 16], strides = [1, 1]} : vector<640x16xf32> to vector<16x16xf32>
    %56 = vector.extract_strided_slice %40 {offsets = [416, 0], sizes = [16, 16], strides = [1, 1]} : vector<640x16xf32> to vector<16x16xf32>
    %57 = vector.extract_strided_slice %40 {offsets = [544, 0], sizes = [16, 16], strides = [1, 1]} : vector<640x16xf32> to vector<16x16xf32>
    %58 = tpu.concatenate %53, %54, %55, %56, %57 in 0 : vector<16x16xf32>, vector<16x16xf32>, vector<16x16xf32>, vector<16x16xf32>, vector<16x16xf32> -> vector<80x16xf32>
    %59 = vector.extract_strided_slice %40 {offsets = [48, 0], sizes = [16, 16], strides = [1, 1]} : vector<640x16xf32> to vector<16x16xf32>
    %60 = vector.extract_strided_slice %40 {offsets = [176, 0], sizes = [16, 16], strides = [1, 1]} : vector<640x16xf32> to vector<16x16xf32>
    %61 = vector.extract_strided_slice %40 {offsets = [304, 0], sizes = [16, 16], strides = [1, 1]} : vector<640x16xf32> to vector<16x16xf32>
    %62 = vector.extract_strided_slice %40 {offsets = [432, 0], sizes = [16, 16], strides = [1, 1]} : vector<640x16xf32> to vector<16x16xf32>
    %63 = vector.extract_strided_slice %40 {offsets = [560, 0], sizes = [16, 16], strides = [1, 1]} : vector<640x16xf32> to vector<16x16xf32>
    %64 = tpu.concatenate %59, %60, %61, %62, %63 in 0 : vector<16x16xf32>, vector<16x16xf32>, vector<16x16xf32>, vector<16x16xf32>, vector<16x16xf32> -> vector<80x16xf32>
    %65 = vector.extract_strided_slice %40 {offsets = [64, 0], sizes = [16, 16], strides = [1, 1]} : vector<640x16xf32> to vector<16x16xf32>
    %66 = vector.extract_strided_slice %40 {offsets = [192, 0], sizes = [16, 16], strides = [1, 1]} : vector<640x16xf32> to vector<16x16xf32>
    %67 = vector.extract_strided_slice %40 {offsets = [320, 0], sizes = [16, 16], strides = [1, 1]} : vector<640x16xf32> to vector<16x16xf32>
    %68 = vector.extract_strided_slice %40 {offsets = [448, 0], sizes = [16, 16], strides = [1, 1]} : vector<640x16xf32> to vector<16x16xf32>
    %69 = vector.extract_strided_slice %40 {offsets = [576, 0], sizes = [16, 16], strides = [1, 1]} : vector<640x16xf32> to vector<16x16xf32>
    %70 = tpu.concatenate %65, %66, %67, %68, %69 in 0 : vector<16x16xf32>, vector<16x16xf32>, vector<16x16xf32>, vector<16x16xf32>, vector<16x16xf32> -> vector<80x16xf32>
    %71 = vector.extract_strided_slice %40 {offsets = [80, 0], sizes = [16, 16], strides = [1, 1]} : vector<640x16xf32> to vector<16x16xf32>
    %72 = vector.extract_strided_slice %40 {offsets = [208, 0], sizes = [16, 16], strides = [1, 1]} : vector<640x16xf32> to vector<16x16xf32>
    %73 = vector.extract_strided_slice %40 {offsets = [336, 0], sizes = [16, 16], strides = [1, 1]} : vector<640x16xf32> to vector<16x16xf32>
    %74 = vector.extract_strided_slice %40 {offsets = [464, 0], sizes = [16, 16], strides = [1, 1]} : vector<640x16xf32> to vector<16x16xf32>
    %75 = vector.extract_strided_slice %40 {offsets = [592, 0], sizes = [16, 16], strides = [1, 1]} : vector<640x16xf32> to vector<16x16xf32>
    %76 = tpu.concatenate %71, %72, %73, %74, %75 in 0 : vector<16x16xf32>, vector<16x16xf32>, vector<16x16xf32>, vector<16x16xf32>, vector<16x16xf32> -> vector<80x16xf32>
    %77 = vector.extract_strided_slice %40 {offsets = [96, 0], sizes = [16, 16], strides = [1, 1]} : vector<640x16xf32> to vector<16x16xf32>
    %78 = vector.extract_strided_slice %40 {offsets = [224, 0], sizes = [16, 16], strides = [1, 1]} : vector<640x16xf32> to vector<16x16xf32>
    %79 = vector.extract_strided_slice %40 {offsets = [352, 0], sizes = [16, 16], strides = [1, 1]} : vector<640x16xf32> to vector<16x16xf32>
    %80 = vector.extract_strided_slice %40 {offsets = [480, 0], sizes = [16, 16], strides = [1, 1]} : vector<640x16xf32> to vector<16x16xf32>
    %81 = vector.extract_strided_slice %40 {offsets = [608, 0], sizes = [16, 16], strides = [1, 1]} : vector<640x16xf32> to vector<16x16xf32>
    %82 = tpu.concatenate %77, %78, %79, %80, %81 in 0 : vector<16x16xf32>, vector<16x16xf32>, vector<16x16xf32>, vector<16x16xf32>, vector<16x16xf32> -> vector<80x16xf32>
    %83 = vector.extract_strided_slice %40 {offsets = [112, 0], sizes = [16, 16], strides = [1, 1]} : vector<640x16xf32> to vector<16x16xf32>
    %84 = vector.extract_strided_slice %40 {offsets = [240, 0], sizes = [16, 16], strides = [1, 1]} : vector<640x16xf32> to vector<16x16xf32>
    %85 = vector.extract_strided_slice %40 {offsets = [368, 0], sizes = [16, 16], strides = [1, 1]} : vector<640x16xf32> to vector<16x16xf32>
    %86 = vector.extract_strided_slice %40 {offsets = [496, 0], sizes = [16, 16], strides = [1, 1]} : vector<640x16xf32> to vector<16x16xf32>
    %87 = vector.extract_strided_slice %40 {offsets = [624, 0], sizes = [16, 16], strides = [1, 1]} : vector<640x16xf32> to vector<16x16xf32>
    %88 = tpu.concatenate %83, %84, %85, %86, %87 in 0 : vector<16x16xf32>, vector<16x16xf32>, vector<16x16xf32>, vector<16x16xf32>, vector<16x16xf32> -> vector<80x16xf32>
    %89 = tpu.concatenate %46, %52, %58, %64, %70, %76, %82, %88 in 1 : vector<80x16xf32>, vector<80x16xf32>, vector<80x16xf32>, vector<80x16xf32>, vector<80x16xf32>, vector<80x16xf32>, vector<80x16xf32>, vector<80x16xf32> -> vector<80x128xf32>
    %90 = tpu.transpose %89, [1, 0] : vector<80x128xf32> -> vector<128x80xf32>
    %91 = arith.truncf %90 : vector<128x80xf32> to vector<128x80xbf16>
    %c0_13 = arith.constant 0 : index
    %c0_14 = arith.constant 0 : index
    %92 = vector.load %arg4[%c0_13, %c0_14] : memref<80x16xbf16, #tpu.memory_space<vmem>>, vector<80x16xbf16>
    %cst_15 = arith.constant dense<0.000000e+00> : vector<128x16xf32>
    %93 = tpu.matmul %91, %92, %cst_15 {dimension_numbers = #tpu.dot_dimension_numbers<[1], [0], [0], [1], [0, 0, 1, 1], [], []>} : vector<128x80xbf16>, vector<80x16xbf16>, vector<128x16xf32> -> vector<128x16xf32>
    %c0_16 = arith.constant 0 : index
    %c0_17 = arith.constant 0 : index
    %94 = vector.load %arg5[%c0_16, %c0_17] : memref<1x16xf32, #tpu.memory_space<vmem>>, vector<1x16xf32>
    %95 = vector.broadcast %94 : vector<1x16xf32> to vector<128x16xf32>
    %96 = arith.addf %93, %95 : vector<128x16xf32>
    %c0_18 = arith.constant 0 : index
    %c0_19 = arith.constant 0 : index
    %97 = vector.load %arg6[%c0_18, %c0_19] : memref<128x16xf32, #tpu.memory_space<vmem>>, vector<128x16xf32>
    tpu.vector_store %arg6[%c0_18, %c0_19], %96 {strides = array<i32>} : memref<128x16xf32, #tpu.memory_space<vmem>>, vector<128x16xf32>,
    return
  }
  func.func @transform_0(%arg0: i32) -> (i32, i32) {
    %c0_i32 = arith.constant 0 : i32
    %c0_i32_0 = arith.constant 0 : i32
    return %arg0, %c0_i32 : i32, i32
  }
  func.func @transform_1(%arg0: i32) -> (i32, i32) {
    %c0_i32 = arith.constant 0 : i32
    %c0_i32_0 = arith.constant 0 : i32
    return %arg0, %c0_i32 : i32, i32
  }
  func.func @transform_2(%arg0: i32) -> (i32, i32, i32) {
    %c0_i32 = arith.constant 0 : i32
    %c0_i32_0 = arith.constant 0 : i32
    %c0_i32_1 = arith.constant 0 : i32
    %c0_i32_2 = arith.constant 0 : i32
    return %c0_i32, %c0_i32_0, %c0_i32_1 : i32, i32, i32
  }
  func.func @transform_3(%arg0: i32) -> (i32, i32) {
    %c0_i32 = arith.constant 0 : i32
    %c0_i32_0 = arith.constant 0 : i32
    %c0_i32_1 = arith.constant 0 : i32
    return %c0_i32, %c0_i32_0 : i32, i32
  }
  func.func @transform_4(%arg0: i32) -> (i32, i32) {
    %c0_i32 = arith.constant 0 : i32
    %c0_i32_0 = arith.constant 0 : i32
    %c0_i32_1 = arith.constant 0 : i32
    return %c0_i32, %c0_i32_0 : i32, i32
  }
  func.func @transform_5(%arg0: i32) -> (i32, i32) {
    %c0_i32 = arith.constant 0 : i32
    %c0_i32_0 = arith.constant 0 : i32
    return %arg0, %c0_i32 : i32, i32
  }
}

module attributes {stable_mosaic.version = 11 : i64} {
  func.func @dgc_kernel(%arg0: i32, %arg1: memref<128x4xbf16, #tpu.memory_space<vmem>>, %arg2: memref<128x12xbf16, #tpu.memory_space<vmem>>, %arg3: memref<2x16x16xbf16, #tpu.memory_space<vmem>>, %arg4: memref<80x16xbf16, #tpu.memory_space<vmem>>, %arg5: memref<1x16xf32, #tpu.memory_space<vmem>>, %arg6: memref<128x16xf32, #tpu.memory_space<vmem>>) attributes {dimension_semantics = [#tpu.dimension_semantics<parallel>], iteration_bounds = array<i64: 4>, scalar_prefetch = 0 : i64, scratch_operands = 0 : i64, tpu.core_type = #tpu.core_type<tc>, window_params = [{transform_indices = @transform_0, window_bounds = array<i64: 128, 4>}, {transform_indices = @transform_1, window_bounds = array<i64: 128, 12>}, {pipeline_mode = #tpu.pipeline_mode<synchronous>, transform_indices = @transform_2, window_bounds = array<i64: 2, 16, 16>}, {pipeline_mode = #tpu.pipeline_mode<synchronous>, transform_indices = @transform_3, window_bounds = array<i64: 80, 16>}, {pipeline_mode = #tpu.pipeline_mode<synchronous>, transform_indices = @transform_4, window_bounds = array<i64: 1, 16>}, {transform_indices = @transform_5, window_bounds = array<i64: 128, 16>}]} {
    %c0 = arith.constant 0 : index
    %c0_0 = arith.constant 0 : index
    %0 = vector.load %arg1[%c0, %c0_0] : memref<128x4xbf16, #tpu.memory_space<vmem>>, vector<128x4xbf16>
    %1 = arith.extf %0 : vector<128x4xbf16> to vector<128x4xf32>
    %c0_1 = arith.constant 0 : index
    %c0_2 = arith.constant 0 : index
    %2 = vector.load %arg2[%c0_1, %c0_2] : memref<128x12xbf16, #tpu.memory_space<vmem>>, vector<128x12xbf16>
    %3 = arith.extf %2 : vector<128x12xbf16> to vector<128x12xf32>
    %4 = vector.extract_strided_slice %1 {offsets = [0, 0], sizes = [16, 4], strides = [1, 1]} : vector<128x4xf32> to vector<16x4xf32>
    %5 = vector.extract_strided_slice %3 {offsets = [0, 0], sizes = [16, 12], strides = [1, 1]} : vector<128x12xf32> to vector<16x12xf32>
    %6 = vector.extract_strided_slice %1 {offsets = [16, 0], sizes = [16, 4], strides = [1, 1]} : vector<128x4xf32> to vector<16x4xf32>
    %7 = vector.extract_strided_slice %3 {offsets = [16, 0], sizes = [16, 12], strides = [1, 1]} : vector<128x12xf32> to vector<16x12xf32>
    %8 = vector.extract_strided_slice %1 {offsets = [32, 0], sizes = [16, 4], strides = [1, 1]} : vector<128x4xf32> to vector<16x4xf32>
    %9 = vector.extract_strided_slice %3 {offsets = [32, 0], sizes = [16, 12], strides = [1, 1]} : vector<128x12xf32> to vector<16x12xf32>
    %10 = vector.extract_strided_slice %1 {offsets = [48, 0], sizes = [16, 4], strides = [1, 1]} : vector<128x4xf32> to vector<16x4xf32>
    %11 = vector.extract_strided_slice %3 {offsets = [48, 0], sizes = [16, 12], strides = [1, 1]} : vector<128x12xf32> to vector<16x12xf32>
    %12 = vector.extract_strided_slice %1 {offsets = [64, 0], sizes = [16, 4], strides = [1, 1]} : vector<128x4xf32> to vector<16x4xf32>
    %13 = vector.extract_strided_slice %3 {offsets = [64, 0], sizes = [16, 12], strides = [1, 1]} : vector<128x12xf32> to vector<16x12xf32>
    %14 = vector.extract_strided_slice %1 {offsets = [80, 0], sizes = [16, 4], strides = [1, 1]} : vector<128x4xf32> to vector<16x4xf32>
    %15 = vector.extract_strided_slice %3 {offsets = [80, 0], sizes = [16, 12], strides = [1, 1]} : vector<128x12xf32> to vector<16x12xf32>
    %16 = vector.extract_strided_slice %1 {offsets = [96, 0], sizes = [16, 4], strides = [1, 1]} : vector<128x4xf32> to vector<16x4xf32>
    %17 = vector.extract_strided_slice %3 {offsets = [96, 0], sizes = [16, 12], strides = [1, 1]} : vector<128x12xf32> to vector<16x12xf32>
    %18 = vector.extract_strided_slice %1 {offsets = [112, 0], sizes = [16, 4], strides = [1, 1]} : vector<128x4xf32> to vector<16x4xf32>
    %19 = vector.extract_strided_slice %3 {offsets = [112, 0], sizes = [16, 12], strides = [1, 1]} : vector<128x12xf32> to vector<16x12xf32>
    %20 = tpu.concatenate %4, %5, %6, %7, %8, %9, %10, %11, %12, %13, %14, %15, %16, %17, %18, %19 in 1 : vector<16x4xf32>, vector<16x12xf32>, vector<16x4xf32>, vector<16x12xf32>, vector<16x4xf32>, vector<16x12xf32>, vector<16x4xf32>, vector<16x12xf32>, vector<16x4xf32>, vector<16x12xf32>, vector<16x4xf32>, vector<16x12xf32>, vector<16x4xf32>, vector<16x12xf32>, vector<16x4xf32>, vector<16x12xf32> -> vector<16x128xf32>
    %c0_3 = arith.constant 0 : index
    %c0_4 = arith.constant 0 : index
    %c0_5 = arith.constant 0 : index
    %21 = vector.load %arg3[%c0_3, %c0_4, %c0_5] : memref<2x16x16xbf16, #tpu.memory_space<vmem>>, vector<1x16x16xbf16>
    %22 = vector.shape_cast %21 : vector<1x16x16xbf16> to vector<16x16xbf16>
    %23 = arith.truncf %20 : vector<16x128xf32> to vector<16x128xbf16>
    %cst = arith.constant dense<0.000000e+00> : vector<16x128xf32>
    %24 = tpu.matmul %22, %23, %cst {dimension_numbers = #tpu.dot_dimension_numbers<[1], [0], [0], [1], [0, 0, 1, 1], [], []>} : vector<16x16xbf16>, vector<16x128xbf16>, vector<16x128xf32> -> vector<16x128xf32>
    %25 = arith.truncf %24 : vector<16x128xf32> to vector<16x128xbf16>
    %cst_6 = arith.constant dense<0.000000e+00> : vector<16x128xf32>
    %26 = tpu.matmul %22, %25, %cst_6 {dimension_numbers = #tpu.dot_dimension_numbers<[1], [0], [0], [1], [0, 0, 1, 1], [], []>} : vector<16x16xbf16>, vector<16x128xbf16>, vector<16x128xf32> -> vector<16x128xf32>
    %cst_7 = arith.constant 2.000000e+00 : f32
    %27 = vector.broadcast %cst_7 : f32 to vector<16x128xf32>
    %28 = arith.mulf %27, %26 : vector<16x128xf32>
    %29 = arith.subf %28, %20 : vector<16x128xf32>
    %c1 = arith.constant 1 : index
    %c0_8 = arith.constant 0 : index
    %c0_9 = arith.constant 0 : index
    %30 = vector.load %arg3[%c1, %c0_8, %c0_9] : memref<2x16x16xbf16, #tpu.memory_space<vmem>>, vector<1x16x16xbf16>
    %31 = vector.shape_cast %30 : vector<1x16x16xbf16> to vector<16x16xbf16>
    %32 = arith.truncf %24 : vector<16x128xf32> to vector<16x128xbf16>
    %cst_10 = arith.constant dense<0.000000e+00> : vector<16x128xf32>
    %33 = tpu.matmul %31, %32, %cst_10 {dimension_numbers = #tpu.dot_dimension_numbers<[1], [0], [0], [1], [0, 0, 1, 1], [], []>} : vector<16x16xbf16>, vector<16x128xbf16>, vector<16x128xf32> -> vector<16x128xf32>
    %34 = arith.truncf %33 : vector<16x128xf32> to vector<16x128xbf16>
    %cst_11 = arith.constant dense<0.000000e+00> : vector<16x128xf32>
    %35 = tpu.matmul %31, %34, %cst_11 {dimension_numbers = #tpu.dot_dimension_numbers<[1], [0], [0], [1], [0, 0, 1, 1], [], []>} : vector<16x16xbf16>, vector<16x128xbf16>, vector<16x128xf32> -> vector<16x128xf32>
    %cst_12 = arith.constant 2.000000e+00 : f32
    %36 = vector.broadcast %cst_12 : f32 to vector<16x128xf32>
    %37 = arith.mulf %36, %35 : vector<16x128xf32>
    %38 = arith.subf %37, %24 : vector<16x128xf32>
    %39 = tpu.concatenate %20, %24, %29, %33, %38 in 1 : vector<16x128xf32>, vector<16x128xf32>, vector<16x128xf32>, vector<16x128xf32>, vector<16x128xf32> -> vector<16x640xf32>
    %40 = tpu.transpose %39, [1, 0] : vector<16x640xf32> -> vector<640x16xf32>
    %41 = vector.extract_strided_slice %40 {offsets = [0, 0], sizes = [16, 16], strides = [1, 1]} : vector<640x16xf32> to vector<16x16xf32>
    %42 = vector.extract_strided_slice %40 {offsets = [128, 0], sizes = [16, 16], strides = [1, 1]} : vector<640x16xf32> to vector<16x16xf32>
    %43 = vector.extract_strided_slice %40 {offsets = [256, 0], sizes = [16, 16], strides = [1, 1]} : vector<640x16xf32> to vector<16x16xf32>
    %44 = vector.extract_strided_slice %40 {offsets = [384, 0], sizes = [16, 16], strides = [1, 1]} : vector<640x16xf32> to vector<16x16xf32>
    %45 = vector.extract_strided_slice %40 {offsets = [512, 0], sizes = [16, 16], strides = [1, 1]} : vector<640x16xf32> to vector<16x16xf32>
    %46 = tpu.concatenate %41, %42, %43, %44, %45 in 0 : vector<16x16xf32>, vector<16x16xf32>, vector<16x16xf32>, vector<16x16xf32>, vector<16x16xf32> -> vector<80x16xf32>
    %47 = vector.extract_strided_slice %40 {offsets = [16, 0], sizes = [16, 16], strides = [1, 1]} : vector<640x16xf32> to vector<16x16xf32>
    %48 = vector.extract_strided_slice %40 {offsets = [144, 0], sizes = [16, 16], strides = [1, 1]} : vector<640x16xf32> to vector<16x16xf32>
    %49 = vector.extract_strided_slice %40 {offsets = [272, 0], sizes = [16, 16], strides = [1, 1]} : vector<640x16xf32> to vector<16x16xf32>
    %50 = vector.extract_strided_slice %40 {offsets = [400, 0], sizes = [16, 16], strides = [1, 1]} : vector<640x16xf32> to vector<16x16xf32>
    %51 = vector.extract_strided_slice %40 {offsets = [528, 0], sizes = [16, 16], strides = [1, 1]} : vector<640x16xf32> to vector<16x16xf32>
    %52 = tpu.concatenate %47, %48, %49, %50, %51 in 0 : vector<16x16xf32>, vector<16x16xf32>, vector<16x16xf32>, vector<16x16xf32>, vector<16x16xf32> -> vector<80x16xf32>
    %53 = vector.extract_strided_slice %40 {offsets = [32, 0], sizes = [16, 16], strides = [1, 1]} : vector<640x16xf32> to vector<16x16xf32>
    %54 = vector.extract_strided_slice %40 {offsets = [160, 0], sizes = [16, 16], strides = [1, 1]} : vector<640x16xf32> to vector<16x16xf32>
    %55 = vector.extract_strided_slice %40 {offsets = [288, 0], sizes = [16, 16], strides = [1, 1]} : vector<640x16xf32> to vector<16x16xf32>
    %56 = vector.extract_strided_slice %40 {offsets = [416, 0], sizes = [16, 16], strides = [1, 1]} : vector<640x16xf32> to vector<16x16xf32>
    %57 = vector.extract_strided_slice %40 {offsets = [544, 0], sizes = [16, 16], strides = [1, 1]} : vector<640x16xf32> to vector<16x16xf32>
    %58 = tpu.concatenate %53, %54, %55, %56, %57 in 0 : vector<16x16xf32>, vector<16x16xf32>, vector<16x16xf32>, vector<16x16xf32>, vector<16x16xf32> -> vector<80x16xf32>
    %59 = vector.extract_strided_slice %40 {offsets = [48, 0], sizes = [16, 16], strides = [1, 1]} : vector<640x16xf32> to vector<16x16xf32>
    %60 = vector.extract_strided_slice %40 {offsets = [176, 0], sizes = [16, 16], strides = [1, 1]} : vector<640x16xf32> to vector<16x16xf32>
    %61 = vector.extract_strided_slice %40 {offsets = [304, 0], sizes = [16, 16], strides = [1, 1]} : vector<640x16xf32> to vector<16x16xf32>
    %62 = vector.extract_strided_slice %40 {offsets = [432, 0], sizes = [16, 16], strides = [1, 1]} : vector<640x16xf32> to vector<16x16xf32>
    %63 = vector.extract_strided_slice %40 {offsets = [560, 0], sizes = [16, 16], strides = [1, 1]} : vector<640x16xf32> to vector<16x16xf32>
    %64 = tpu.concatenate %59, %60, %61, %62, %63 in 0 : vector<16x16xf32>, vector<16x16xf32>, vector<16x16xf32>, vector<16x16xf32>, vector<16x16xf32> -> vector<80x16xf32>
    %65 = vector.extract_strided_slice %40 {offsets = [64, 0], sizes = [16, 16], strides = [1, 1]} : vector<640x16xf32> to vector<16x16xf32>
    %66 = vector.extract_strided_slice %40 {offsets = [192, 0], sizes = [16, 16], strides = [1, 1]} : vector<640x16xf32> to vector<16x16xf32>
    %67 = vector.extract_strided_slice %40 {offsets = [320, 0], sizes = [16, 16], strides = [1, 1]} : vector<640x16xf32> to vector<16x16xf32>
    %68 = vector.extract_strided_slice %40 {offsets = [448, 0], sizes = [16, 16], strides = [1, 1]} : vector<640x16xf32> to vector<16x16xf32>
    %69 = vector.extract_strided_slice %40 {offsets = [576, 0], sizes = [16, 16], strides = [1, 1]} : vector<640x16xf32> to vector<16x16xf32>
    %70 = tpu.concatenate %65, %66, %67, %68, %69 in 0 : vector<16x16xf32>, vector<16x16xf32>, vector<16x16xf32>, vector<16x16xf32>, vector<16x16xf32> -> vector<80x16xf32>
    %71 = vector.extract_strided_slice %40 {offsets = [80, 0], sizes = [16, 16], strides = [1, 1]} : vector<640x16xf32> to vector<16x16xf32>
    %72 = vector.extract_strided_slice %40 {offsets = [208, 0], sizes = [16, 16], strides = [1, 1]} : vector<640x16xf32> to vector<16x16xf32>
    %73 = vector.extract_strided_slice %40 {offsets = [336, 0], sizes = [16, 16], strides = [1, 1]} : vector<640x16xf32> to vector<16x16xf32>
    %74 = vector.extract_strided_slice %40 {offsets = [464, 0], sizes = [16, 16], strides = [1, 1]} : vector<640x16xf32> to vector<16x16xf32>
    %75 = vector.extract_strided_slice %40 {offsets = [592, 0], sizes = [16, 16], strides = [1, 1]} : vector<640x16xf32> to vector<16x16xf32>
    %76 = tpu.concatenate %71, %72, %73, %74, %75 in 0 : vector<16x16xf32>, vector<16x16xf32>, vector<16x16xf32>, vector<16x16xf32>, vector<16x16xf32> -> vector<80x16xf32>
    %77 = vector.extract_strided_slice %40 {offsets = [96, 0], sizes = [16, 16], strides = [1, 1]} : vector<640x16xf32> to vector<16x16xf32>
    %78 = vector.extract_strided_slice %40 {offsets = [224, 0], sizes = [16, 16], strides = [1, 1]} : vector<640x16xf32> to vector<16x16xf32>
    %79 = vector.extract_strided_slice %40 {offsets = [352, 0], sizes = [16, 16], strides = [1, 1]} : vector<640x16xf32> to vector<16x16xf32>
    %80 = vector.extract_strided_slice %40 {offsets = [480, 0], sizes = [16, 16], strides = [1, 1]} : vector<640x16xf32> to vector<16x16xf32>
    %81 = vector.extract_strided_slice %40 {offsets = [608, 0], sizes = [16, 16], strides = [1, 1]} : vector<640x16xf32> to vector<16x16xf32>
    %82 = tpu.concatenate %77, %78, %79, %80, %81 in 0 : vector<16x16xf32>, vector<16x16xf32>, vector<16x16xf32>, vector<16x16xf32>, vector<16x16xf32> -> vector<80x16xf32>
    %83 = vector.extract_strided_slice %40 {offsets = [112, 0], sizes = [16, 16], strides = [1, 1]} : vector<640x16xf32> to vector<16x16xf32>
    %84 = vector.extract_strided_slice %40 {offsets = [240, 0], sizes = [16, 16], strides = [1, 1]} : vector<640x16xf32> to vector<16x16xf32>
    %85 = vector.extract_strided_slice %40 {offsets = [368, 0], sizes = [16, 16], strides = [1, 1]} : vector<640x16xf32> to vector<16x16xf32>
    %86 = vector.extract_strided_slice %40 {offsets = [496, 0], sizes = [16, 16], strides = [1, 1]} : vector<640x16xf32> to vector<16x16xf32>
    %87 = vector.extract_strided_slice %40 {offsets = [624, 0], sizes = [16, 16], strides = [1, 1]} : vector<640x16xf32> to vector<16x16xf32>
    %88 = tpu.concatenate %83, %84, %85, %86, %87 in 0 : vector<16x16xf32>, vector<16x16xf32>, vector<16x16xf32>, vector<16x16xf32>, vector<16x16xf32> -> vector<80x16xf32>
    %89 = tpu.concatenate %46, %52, %58, %64, %70, %76, %82, %88 in 1 : vector<80x16xf32>, vector<80x16xf32>, vector<80x16xf32>, vector<80x16xf32>, vector<80x16xf32>, vector<80x16xf32>, vector<80x16xf32>, vector<80x16xf32> -> vector<80x128xf32>
    %90 = tpu.transpose %89, [1, 0] : vector<80x128xf32> -> vector<128x80xf32>
    %91 = arith.truncf %90 : vector<128x80xf32> to vector<128x80xbf16>
    %c0_13 = arith.constant 0 : index
    %c0_14 = arith.constant 0 : index
    %92 = vector.load %arg4[%c0_13, %c0_14] : memref<80x16xbf16, #tpu.memory_space<vmem>>, vector<80x16xbf16>
    %cst_15 = arith.constant dense<0.000000e+00> : vector<128x16xf32>
    %93 = tpu.matmul %91, %92, %cst_15 {dimension_numbers = #tpu.dot_dimension_numbers<[1], [0], [0], [1], [0, 0, 1, 1], [], []>} : vector<128x80xbf16>, vector<80x16xbf16>, vector<128x16xf32> -> vector<128x16xf32>
    %c0_16 = arith.constant 0 : index
    %c0_17 = arith.constant 0 : index
    %94 = vector.load %arg5[%c0_16, %c0_17] : memref<1x16xf32, #tpu.memory_space<vmem>>, vector<1x16xf32>
    %95 = vector.broadcast %94 : vector<1x16xf32> to vector<128x16xf32>
    %96 = arith.addf %93, %95 : vector<128x16xf32>
    %c0_18 = arith.constant 0 : index
    %c0_19 = arith.constant 0 : index
    %97 = vector.load %arg6[%c0_18, %c0_19] : memref<128x16xf32, #tpu.memory_space<vmem>>, vector<128x16xf32>
    tpu.vector_store %arg6[%c0_18, %c0_19], %96 {strides = array<i32>} : memref<128x16xf32, #tpu.memory_space<vmem>>, vector<128x16xf32>,
    return
  }
  func.func @transform_0(%arg0: i32) -> (i32, i32) {
    %c0_i32 = arith.constant 0 : i32
    %c0_i32_0 = arith.constant 0 : i32
    return %arg0, %c0_i32 : i32, i32
  }
  func.func @transform_1(%arg0: i32) -> (i32, i32) {
    %c0_i32 = arith.constant 0 : i32
    %c0_i32_0 = arith.constant 0 : i32
    return %arg0, %c0_i32 : i32, i32
  }
  func.func @transform_2(%arg0: i32) -> (i32, i32, i32) {
    %c0_i32 = arith.constant 0 : i32
    %c0_i32_0 = arith.constant 0 : i32
    %c0_i32_1 = arith.constant 0 : i32
    %c0_i32_2 = arith.constant 0 : i32
    return %c0_i32, %c0_i32_0, %c0_i32_1 : i32, i32, i32
  }
  func.func @transform_3(%arg0: i32) -> (i32, i32) {
    %c0_i32 = arith.constant 0 : i32
    %c0_i32_0 = arith.constant 0 : i32
    %c0_i32_1 = arith.constant 0 : i32
    return %c0_i32, %c0_i32_0 : i32, i32
  }
  func.func @transform_4(%arg0: i32) -> (i32, i32) {
    %c0_i32 = arith.constant 0 : i32
    %c0_i32_0 = arith.constant 0 : i32
    %c0_i32_1 = arith.constant 0 : i32
    return %c0_i32, %c0_i32_0 : i32, i32
  }
  func.func @transform_5(%arg0: i32) -> (i32, i32) {
    %c0_i32 = arith.constant 0 : i32
    %c0_i32_0 = arith.constant 0 : i32
    return %arg0, %c0_i32 : i32, i32
  }
}

</mosaic_0001>

<llo_original>
// kernel: tpu_custom_call.1
$region0: #{tpu_custom_call.1}
  #allocation0 [shape = 'u32[]', space=smem, size = 0x4, offset = 0x4, fixed_abs, tag = 'smem constant byte address 0x4 - core index']
  #allocation1 [shape = 'u32[144,128]{1,0:T(1,128)}', space=vmem, size = 0x12000, scoped, tag = 'internal scratch']
  %s0 = inlined_call_operand.vmem [shape: bf16[512,4], index: 0, kind: input, shape index: {}]
  %s1 = inlined_call_operand.vmem [shape: bf16[512,12], index: 1, kind: input, shape index: {}]
  %s2 = inlined_call_operand.vmem [shape: bf16[2,16,16], index: 2, kind: input, shape index: {}]
  %s3 = inlined_call_operand.vmem [shape: bf16[80,16], index: 3, kind: input, shape index: {}]
  %s4 = inlined_call_operand.vmem [shape: f32[1,16], index: 4, kind: input, shape index: {}]
  %s5 = inlined_call_operand.vmem [shape: f32[512,16], index: 5, kind: output, shape index: {}]
  %s6 = sld [smem:[#allocation0]]
  $region53: #{tpu_custom_call.1} parent=0
    _
  %s8 = ssub.s32 1, %s6
  %s9 = scalar_select 0, %s8, %s6
  loop: start=0, step=1, limit=6
  $region2: #{tpu_custom_call.1} parent=0 // loop_pre_header
    _
  $region3: #{tpu_custom_call.1} parent=0 // loop_header
    %s11 = sphi 0, %s15
    %p12 = scmp.ge.s32.totalorder %s11, 6
    %s21 = sphi 0, %s23
    %s24 = sphi 0, %s21
    %s25 = sphi 0, %s24
    %s41 = sphi 0, %s25
    %s47 = sphi 0, %s49
    %s50 = sphi 0, %s47
    %s51 = sphi 0, %s50
    %s67 = sphi 0, %s51
    %s71 = sphi 0, %s71
    %s73 = sphi 0, %s71
    %s74 = sphi 0, %s73
    %s88 = sphi 0, %s74
    %s92 = sphi 0, %s92
    %s94 = sphi 0, %s92
    %s95 = sphi 0, %s94
    %s109 = sphi 0, %s95
    %s113 = sphi 0, %s113
    %s115 = sphi 0, %s113
    %s116 = sphi 0, %s115
    %s130 = sphi 0, %s116
    %s136 = sphi 0, %s138
    %s139 = sphi 0, %s136
    %s140 = sphi 0, %s139
    %s156 = sphi 0, %s140
  $region4: #{tpu_custom_call.1} parent=0 // loop_header_branch
    %14 = sbr.rel (%p12) target = $region8
  $region5: #{tpu_custom_call.1} parent=0 // loop_body
    %s16 = ssub.s32 %s11, 1
    %s17 = ssub.s32 %s11, 2
    %s18 = sadd.s32 %s11, 1
    %s19 = ssub.s32 %s11, %s18
    %p20 = scmp.eq.s32.totalorder %s19, 0
    %s22 = sadd.s32 %s21, 1
    %s23 = scalar_select %p20, %s21, %s22
    %p26 = pneg %p20
    %p27 = scmp.eq.s32.totalorder %s11, 3
    %p28 = por %p26, %p27
    %p29 = scmp.ne.s32.totalorder %s21, %s24
    %p30 = scmp.eq.s32.totalorder %s11, 0
    %p31 = por %p29, %p30
    %p32 = scmp.ne.s32.totalorder %s21, %s24
    %p33 = scmp.eq.s32.totalorder %s16, 3
    %p34 = por %p32, %p33
    %p35 = scmp.ne.s32.totalorder %s24, %s25
    %p36 = scmp.eq.s32.totalorder %s16, 0
    %p37 = por %p35, %p36
    %p38 = scmp.ne.s32.totalorder %s24, %s25
    %p39 = scmp.eq.s32.totalorder %s17, 3
    %p40 = por %p38, %p39
    %p42 = scmp.ne.s32.totalorder %s25, %s41
    %p43 = scmp.eq.s32.totalorder %s17, 0
    %p44 = por %p42, %p43
    %s45 = ssub.s32 %s11, %s18
    %p46 = scmp.eq.s32.totalorder %s45, 0
    %s48 = sadd.s32 %s47, 1
    %s49 = scalar_select %p46, %s47, %s48
    %p52 = pneg %p46
    %p53 = scmp.eq.s32.totalorder %s11, 3
    %p54 = por %p52, %p53
    %p55 = scmp.ne.s32.totalorder %s47, %s50
    %p56 = scmp.eq.s32.totalorder %s11, 0
    %p57 = por %p55, %p56
    %p58 = scmp.ne.s32.totalorder %s47, %s50
    %p59 = scmp.eq.s32.totalorder %s16, 3
    %p60 = por %p58, %p59
    %p61 = scmp.ne.s32.totalorder %s50, %s51
    %p62 = scmp.eq.s32.totalorder %s16, 0
    %p63 = por %p61, %p62
    %p64 = scmp.ne.s32.totalorder %s50, %s51
    %p65 = scmp.eq.s32.totalorder %s17, 3
    %p66 = por %p64, %p65
    %p68 = scmp.ne.s32.totalorder %s51, %s67
    %p69 = scmp.eq.s32.totalorder %s17, 0
    %p70 = por %p68, %p69
    %s72 = sadd.s32 %s71, 1
    %p75 = scmp.eq.s32.totalorder %s11, 3
    %p76 = scmp.ne.s32.totalorder %s71, %s73
    %p77 = scmp.eq.s32.totalorder %s11, 0
    %p78 = por %p76, %p77
    %p79 = scmp.ne.s32.totalorder %s71, %s73
    %p80 = scmp.eq.s32.totalorder %s16, 3
    %p81 = por %p79, %p80
    %p82 = scmp.ne.s32.totalorder %s73, %s74
    %p83 = scmp.eq.s32.totalorder %s16, 0
    %p84 = por %p82, %p83
    %p85 = scmp.ne.s32.totalorder %s73, %s74
    %p86 = scmp.eq.s32.totalorder %s17, 3
    %p87 = por %p85, %p86
    %p89 = scmp.ne.s32.totalorder %s74, %s88
    %p90 = scmp.eq.s32.totalorder %s17, 0
    %p91 = por %p89, %p90
    %s93 = sadd.s32 %s92, 1
    %p96 = scmp.eq.s32.totalorder %s11, 3
    %p97 = scmp.ne.s32.totalorder %s92, %s94
    %p98 = scmp.eq.s32.totalorder %s11, 0
    %p99 = por %p97, %p98
    %p100 = scmp.ne.s32.totalorder %s92, %s94
    %p101 = scmp.eq.s32.totalorder %s16, 3
    %p102 = por %p100, %p101
    %p103 = scmp.ne.s32.totalorder %s94, %s95
    %p104 = scmp.eq.s32.totalorder %s16, 0
    %p105 = por %p103, %p104
    %p106 = scmp.ne.s32.totalorder %s94, %s95
    %p107 = scmp.eq.s32.totalorder %s17, 3
    %p108 = por %p106, %p107
    %p110 = scmp.ne.s32.totalorder %s95, %s109
    %p111 = scmp.eq.s32.totalorder %s17, 0
    %p112 = por %p110, %p111
    %s114 = sadd.s32 %s113, 1
    %p117 = scmp.eq.s32.totalorder %s11, 3
    %p118 = scmp.ne.s32.totalorder %s113, %s115
    %p119 = scmp.eq.s32.totalorder %s11, 0
    %p120 = por %p118, %p119
    %p121 = scmp.ne.s32.totalorder %s113, %s115
    %p122 = scmp.eq.s32.totalorder %s16, 3
    %p123 = por %p121, %p122
    %p124 = scmp.ne.s32.totalorder %s115, %s116
    %p125 = scmp.eq.s32.totalorder %s16, 0
    %p126 = por %p124, %p125
    %p127 = scmp.ne.s32.totalorder %s115, %s116
    %p128 = scmp.eq.s32.totalorder %s17, 3
    %p129 = por %p127, %p128
    %p131 = scmp.ne.s32.totalorder %s116, %s130
    %p132 = scmp.eq.s32.totalorder %s17, 0
    %p133 = por %p131, %p132
    %s134 = ssub.s32 %s11, %s18
    %p135 = scmp.eq.s32.totalorder %s134, 0
    %s137 = sadd.s32 %s136, 1
    %s138 = scalar_select %p135, %s136, %s137
    %p141 = pneg %p135
    %p142 = scmp.eq.s32.totalorder %s11, 3
    %p143 = por %p141, %p142
    %p144 = scmp.ne.s32.totalorder %s136, %s139
    %p145 = scmp.eq.s32.totalorder %s11, 0
    %p146 = por %p144, %p145
    %p147 = scmp.ne.s32.totalorder %s136, %s139
    %p148 = scmp.eq.s32.totalorder %s16, 3
    %p149 = por %p147, %p148
    %p150 = scmp.ne.s32.totalorder %s139, %s140
    %p151 = scmp.eq.s32.totalorder %s16, 0
    %p152 = por %p150, %p151
    %p153 = scmp.ne.s32.totalorder %s139, %s140
    %p154 = scmp.eq.s32.totalorder %s17, 3
    %p155 = por %p153, %p154
    %p157 = scmp.ne.s32.totalorder %s140, %s156
    %p158 = scmp.eq.s32.totalorder %s17, 0
    %p159 = por %p157, %p158
    %p160 = scmp.le.s32.totalorder 1, %s11
    %p161 = scmp.lt.s32.totalorder %s11, 5
    %p162 = pnand %p160, %p161
    %p163 = pneg %p162
    // Predicated region
    $region9: #{tpu_custom_call.1} parent=5 // pred_check
      _
    $region10: #{tpu_custom_call.1} parent=5 // pred_check_branch
      %165 = sbr.rel (%p162) target = $region12
    $region11: #{tpu_custom_call.1} parent=5 // pred_region
      %s166 = ssub.s32 %s11, 1
      // Predicated region
      $region13: #{tpu_custom_call.1} parent=11 // pred_check
        %p167 = pneg %p84
      $region14: #{tpu_custom_call.1} parent=11 // pred_check_branch
        %169 = sbr.rel (%p167) target = $region16
      $region15: #{tpu_custom_call.1} parent=11 // pred_region
        _
      $region16: #{tpu_custom_call.1} parent=11 // pred_fallthru
        _
      // Predicated region
      $region17: #{tpu_custom_call.1} parent=11 // pred_check
        %p170 = pneg %p105
      $region18: #{tpu_custom_call.1} parent=11 // pred_check_branch
        %172 = sbr.rel (%p170) target = $region20
      $region19: #{tpu_custom_call.1} parent=11 // pred_region
        _
      $region20: #{tpu_custom_call.1} parent=11 // pred_fallthru
        _
      // Predicated region
      $region21: #{tpu_custom_call.1} parent=11 // pred_check
        %p173 = pneg %p126
      $region22: #{tpu_custom_call.1} parent=11 // pred_check_branch
        %175 = sbr.rel (%p173) target = $region24
      $region23: #{tpu_custom_call.1} parent=11 // pred_region
        _
      $region24: #{tpu_custom_call.1} parent=11 // pred_fallthru
        _
    $region12: #{tpu_custom_call.1} parent=5 // pred_fallthru
      _
    %p176 = scmp.lt.s32.totalorder %s11, 4
    // Predicated region
    $region25: #{tpu_custom_call.1} parent=5 // pred_check
      %p177 = pneg %p176
    $region26: #{tpu_custom_call.1} parent=5 // pred_check_branch
      %179 = sbr.rel (%p177) target = $region28
    $region27: #{tpu_custom_call.1} parent=5 // pred_region
      // Predicated region
      $region29: #{tpu_custom_call.1} parent=27 // pred_check
        %p180 = pneg %p31
      $region30: #{tpu_custom_call.1} parent=27 // pred_check_branch
        %182 = sbr.rel (%p180) target = $region32
      $region31: #{tpu_custom_call.1} parent=27 // pred_region
        %s183 = smul.u32 16, %s11
        %p184 = scmp.lt.s32.totalorder %s183, 63
        %s185 = scalar_select %p184, %s183, 63
        %s186 = smul.addr %s185, 4
        %s187 = scalar_lea.vmem %s0, %s186
        %s188 = smul.u32 16, %s11
      $region32: #{tpu_custom_call.1} parent=27 // pred_fallthru
        _
      // Predicated region
      $region33: #{tpu_custom_call.1} parent=27 // pred_check
        %p189 = pneg %p57
      $region34: #{tpu_custom_call.1} parent=27 // pred_check_branch
        %191 = sbr.rel (%p189) target = $region36
      $region35: #{tpu_custom_call.1} parent=27 // pred_region
        %s192 = smul.u32 16, %s11
        %p193 = scmp.lt.s32.totalorder %s192, 63
        %s194 = scalar_select %p193, %s192, 63
        %s195 = smul.addr %s194, 4
        %s196 = scalar_lea.vmem %s1, %s195
        %s197 = smul.u32 16, %s11
      $region36: #{tpu_custom_call.1} parent=27 // pred_fallthru
        _
    $region28: #{tpu_custom_call.1} parent=5 // pred_fallthru
      _
    %p198 = scmp.le.s32.totalorder 1, %s11
    %p199 = scmp.lt.s32.totalorder %s11, 5
    %p200 = pnand %p198, %p199
    %p201 = pneg %p200
    // Predicated region
    $region37: #{tpu_custom_call.1} parent=5 // pred_check
      _
    $region38: #{tpu_custom_call.1} parent=5 // pred_check_branch
      %203 = sbr.rel (%p200) target = $region40
    $region39: #{tpu_custom_call.1} parent=5 // pred_region
      %s204 = ssub.s32 %s11, 1
      %s205 = smul.u32 16, %s16
      %p206 = scmp.lt.s32.totalorder %s205, 63
      %s207 = scalar_select %p206, %s205, 63
      %s208 = smul.addr %s207, 4
      %s209 = scalar_lea.vmem %s0, %s208
      %p210 = pneg %p37
      %p211 = pneg %p34
      %s212 = smul.u32 16, %s16
      %p213 = scmp.lt.s32.totalorder %s212, 63
      %s214 = scalar_select %p213, %s212, 63
      %s215 = smul.addr %s214, 4
      %s216 = scalar_lea.vmem %s1, %s215
      %p217 = pneg %p63
      %p218 = pneg %p60
      %p219 = pneg %p84
      %p220 = pneg %p81
      %p221 = pneg %p105
      %p222 = pneg %p102
      %p223 = pneg %p126
      %p224 = pneg %p123
      %p225 = pneg %p152
      %p226 = pneg %p149
      %s227 = smul.u32 16, %s16
      %p228 = scmp.lt.s32.totalorder %s227, 63
      %s229 = scalar_select %p228, %s227, 63
      %s230 = smul.addr %s229, 8
      %s231 = scalar_lea.vmem %s5, %s230
      %s232 = smul.u32 16, %s16
      %p233 = scmp.lt.s32.totalorder %s232, 63
      %s234 = scalar_select %p233, %s232, 63
      %s235 = smul.addr %s234, 4
      %s236 = scalar_lea.vmem %s0, %s235
      %s237 = smul.u32 16, %s16
      %s238 = smul.u32 16, %s16
      %p239 = scmp.lt.s32.totalorder %s238, 63
      %s240 = scalar_select %p239, %s238, 63
      %s241 = smul.addr %s240, 4
      %s242 = scalar_lea.vmem %s1, %s241
      %s243 = smul.u32 16, %s16
      %s244 = smul.u32 16, %s16
      %p245 = scmp.lt.s32.totalorder %s244, 63
      %s246 = scalar_select %p245, %s244, 63
      %s247 = smul.addr %s246, 8
      %s248 = scalar_lea.vmem %s5, %s247
      %s249 = smul.u32 16, %s16
      %v251 = vld [vmem:[%s236] sm:$0xf]
      %v252 = vld [vmem:[%s236 + $0x4] sm:$0xf]
      %v253 = vld [vmem:[%s236 + $0x8] sm:$0xf]
      %v254 = vld [vmem:[%s236 + $0xc] sm:$0xf]
      %v255 = vld [vmem:[%s236 + $0x10] sm:$0xf]
      %v256 = vld [vmem:[%s236 + $0x14] sm:$0xf]
      %v257 = vld [vmem:[%s236 + $0x18] sm:$0xf]
      %v258 = vld [vmem:[%s236 + $0x1c] sm:$0xf]
      %v259 = vld [vmem:[%s236 + $0x20] sm:$0xf]
      %v260 = vld [vmem:[%s236 + $0x24] sm:$0xf]
      %v261 = vld [vmem:[%s236 + $0x28] sm:$0xf]
      %v262 = vld [vmem:[%s236 + $0x2c] sm:$0xf]
      %v263 = vld [vmem:[%s236 + $0x30] sm:$0xf]
      %v264 = vld [vmem:[%s236 + $0x34] sm:$0xf]
      %v265 = vld [vmem:[%s236 + $0x38] sm:$0xf]
      %v266 = vld [vmem:[%s236 + $0x3c] sm:$0xf]
      %v267 = vunpack.c.l.bf16 %v251
      %v268 = vunpack.c.l.bf16 %v252
      %v269 = vunpack.c.l.bf16 %v253
      %v270 = vunpack.c.l.bf16 %v254
      %v271 = vunpack.c.l.bf16 %v255
      %v272 = vunpack.c.l.bf16 %v256
      %v273 = vunpack.c.l.bf16 %v257
      %v274 = vunpack.c.l.bf16 %v258
      %v275 = vunpack.c.l.bf16 %v259
      %v276 = vunpack.c.l.bf16 %v260
      %v277 = vunpack.c.l.bf16 %v261
      %v278 = vunpack.c.l.bf16 %v262
      %v279 = vunpack.c.l.bf16 %v263
      %v280 = vunpack.c.l.bf16 %v264
      %v281 = vunpack.c.l.bf16 %v265
      %v282 = vunpack.c.l.bf16 %v266
      %v283 = vld [vmem:[%s242] sm:$0xf]
      %v284 = vld [vmem:[%s242 + $0x4] sm:$0xf]
      %v285 = vld [vmem:[%s242 + $0x8] sm:$0xf]
      %v286 = vld [vmem:[%s242 + $0xc] sm:$0xf]
      %v287 = vld [vmem:[%s242 + $0x10] sm:$0xf]
      %v288 = vld [vmem:[%s242 + $0x14] sm:$0xf]
      %v289 = vld [vmem:[%s242 + $0x18] sm:$0xf]
      %v290 = vld [vmem:[%s242 + $0x1c] sm:$0xf]
      %v291 = vld [vmem:[%s242 + $0x20] sm:$0xf]
      %v292 = vld [vmem:[%s242 + $0x24] sm:$0xf]
      %v293 = vld [vmem:[%s242 + $0x28] sm:$0xf]
      %v294 = vld [vmem:[%s242 + $0x2c] sm:$0xf]
      %v295 = vld [vmem:[%s242 + $0x30] sm:$0xf]
      %v296 = vld [vmem:[%s242 + $0x34] sm:$0xf]
      %v297 = vld [vmem:[%s242 + $0x38] sm:$0xf]
      %v298 = vld [vmem:[%s242 + $0x3c] sm:$0xf]
      %v299 = vunpack.c.l.bf16 %v283
      %v300 = vunpack.c.l.bf16 %v284
      %v301 = vunpack.c.l.bf16 %v285
      %v302 = vunpack.c.l.bf16 %v286
      %v303 = vunpack.c.l.bf16 %v287
      %v304 = vunpack.c.l.bf16 %v288
      %v305 = vunpack.c.l.bf16 %v289
      %v306 = vunpack.c.l.bf16 %v290
      %v307 = vunpack.c.l.bf16 %v291
      %v308 = vunpack.c.l.bf16 %v292
      %v309 = vunpack.c.l.bf16 %v293
      %v310 = vunpack.c.l.bf16 %v294
      %v311 = vunpack.c.l.bf16 %v295
      %v312 = vunpack.c.l.bf16 %v296
      %v313 = vunpack.c.l.bf16 %v297
      %v314 = vunpack.c.l.bf16 %v298
      %317 = vrot.lane.b32.xlu0 %v299, 4
      %v318 = vpop.permute.xlu0 %317
      %319 = vrot.lane.b32.xlu0 %v300, 4
      %v320 = vpop.permute.xlu0 %319
      %325 = vrot.lane.b32.xlu0 %v269, 16
      %v326 = vpop.permute.xlu0 %325
      %327 = vrot.lane.b32.xlu0 %v270, 16
      %v328 = vpop.permute.xlu0 %327
      %333 = vrot.lane.b32.xlu0 %v301, 20
      %v334 = vpop.permute.xlu0 %333
      %335 = vrot.lane.b32.xlu0 %v302, 20
      %v336 = vpop.permute.xlu0 %335
      %341 = vrot.lane.b32.xlu0 %v271, 32
      %v342 = vpop.permute.xlu0 %341
      %343 = vrot.lane.b32.xlu0 %v272, 32
      %v344 = vpop.permute.xlu0 %343
      %349 = vrot.lane.b32.xlu0 %v303, 36
      %v350 = vpop.permute.xlu0 %349
      %351 = vrot.lane.b32.xlu0 %v304, 36
      %v352 = vpop.permute.xlu0 %351
      %357 = vrot.lane.b32.xlu0 %v273, 48
      %v358 = vpop.permute.xlu0 %357
      %359 = vrot.lane.b32.xlu0 %v274, 48
      %v360 = vpop.permute.xlu0 %359
      %365 = vrot.lane.b32.xlu0 %v305, 52
      %v366 = vpop.permute.xlu0 %365
      %367 = vrot.lane.b32.xlu0 %v306, 52
      %v368 = vpop.permute.xlu0 %367
      %373 = vrot.lane.b32.xlu0 %v275, 64
      %v374 = vpop.permute.xlu0 %373
      %375 = vrot.lane.b32.xlu0 %v276, 64
      %v376 = vpop.permute.xlu0 %375
      %381 = vrot.lane.b32.xlu0 %v307, 68
      %v382 = vpop.permute.xlu0 %381
      %383 = vrot.lane.b32.xlu0 %v308, 68
      %v384 = vpop.permute.xlu0 %383
      %389 = vrot.lane.b32.xlu0 %v277, 80
      %v390 = vpop.permute.xlu0 %389
      %391 = vrot.lane.b32.xlu0 %v278, 80
      %v392 = vpop.permute.xlu0 %391
      %397 = vrot.lane.b32.xlu0 %v309, 84
      %v398 = vpop.permute.xlu0 %397
      %399 = vrot.lane.b32.xlu0 %v310, 84
      %v400 = vpop.permute.xlu0 %399
      %405 = vrot.lane.b32.xlu0 %v279, 96
      %v406 = vpop.permute.xlu0 %405
      %407 = vrot.lane.b32.xlu0 %v280, 96
      %v408 = vpop.permute.xlu0 %407
      %413 = vrot.lane.b32.xlu0 %v311, 100
      %v414 = vpop.permute.xlu0 %413
      %415 = vrot.lane.b32.xlu0 %v312, 100
      %v416 = vpop.permute.xlu0 %415
      %421 = vrot.lane.b32.xlu0 %v281, 112
      %v422 = vpop.permute.xlu0 %421
      %423 = vrot.lane.b32.xlu0 %v282, 112
      %v424 = vpop.permute.xlu0 %423
      %429 = vrot.lane.b32.xlu0 %v313, 116
      %v430 = vpop.permute.xlu0 %429
      %431 = vrot.lane.b32.xlu0 %v314, 116
      %v432 = vpop.permute.xlu0 %431
      %vm435 = vcmask 31744
      %v436 = vsel %vm435, %v267, %v318
      %v437 = vsel %vm435, %v268, %v320
      %vm438 = vcmask 130048
      %v439 = vsel %vm438, %v436, %v326
      %v440 = vsel %vm438, %v437, %v328
      %vm441 = vcmask 162816
      %v442 = vsel %vm441, %v439, %v334
      %v443 = vsel %vm441, %v440, %v336
      %vm444 = vcmask 261120
      %v445 = vsel %vm444, %v442, %v342
      %v446 = vsel %vm444, %v443, %v344
      %vm447 = vcmask 293888
      %v448 = vsel %vm447, %v445, %v350
      %v449 = vsel %vm447, %v446, %v352
      %vm450 = vcmask 392192
      %v451 = vsel %vm450, %v448, %v358
      %v452 = vsel %vm450, %v449, %v360
      %vm453 = vcmask 424960
      %v454 = vsel %vm453, %v451, %v366
      %v455 = vsel %vm453, %v452, %v368
      %vm456 = vcmask 523264
      %v457 = vsel %vm456, %v454, %v374
      %v458 = vsel %vm456, %v455, %v376
      %vm459 = vcmask 556032
      %v460 = vsel %vm459, %v457, %v382
      %v461 = vsel %vm459, %v458, %v384
      %vm462 = vcmask 654336
      %v463 = vsel %vm462, %v460, %v390
      %v464 = vsel %vm462, %v461, %v392
      %vm465 = vcmask 687104
      %v466 = vsel %vm465, %v463, %v398
      %v467 = vsel %vm465, %v464, %v400
      %vm468 = vcmask 785408
      %v469 = vsel %vm468, %v466, %v406
      %v470 = vsel %vm468, %v467, %v408
      %vm471 = vcmask 818176
      %v472 = vsel %vm471, %v469, %v414
      %v473 = vsel %vm471, %v470, %v416
      %vm474 = vcmask 916480
      %v475 = vsel %vm474, %v472, %v422
      %v476 = vsel %vm474, %v473, %v424
      %vm477 = vcmask 949248
      %v478 = vsel %vm477, %v475, %v430
      %v479 = vsel %vm477, %v476, %v432
      %v480 = vld [vmem:[%s2] sm:$0xf]
      %v481 = vld [vmem:[%s2 + $0x4] sm:$0xf]
      %v482 = vpack.c.bf16 %v479, %v478
      %v485 = vunpack.c.l.b16 %v480
      %v486 = vunpack.c.l.b16 %v481
      %v487 = vpack.c.b16 %v486, %v485
      %v489 = vsel %vm438, %v487, 0
      %491 = vmatprep.subr.bf16.mxu0 0
      %492 = vmatpush1.bf16.msra.mxu0 %v482
      %493 = vmatprep.subr.bf16.mxu0 0
      %494 = vmatpush1.bf16.msra.mxu0 0
      %495 = vmatprep.subr.bf16.mxu0 0
      %496 = vmatpush1.bf16.msra.mxu0 0
      %497 = vmatprep.subr.bf16.mxu0 0
      %498 = vmatpush1.bf16.msra.mxu0 0
      %499 = vmatprep.subr.bf16.mxu0 0
      %500 = vmatpush1.bf16.msra.mxu0 0
      %501 = vmatprep.subr.bf16.mxu0 0
      %502 = vmatpush1.bf16.msra.mxu0 0
      %503 = vmatprep.subr.bf16.mxu0 0
      %504 = vmatpush1.bf16.msra.mxu0 0
      %505 = vmatprep.subr.bf16.mxu0 0
      %506 = vmatpush1.bf16.msra.mxu0 0
      %507 = vmatprep.subr.bf16.mxu0 0
      %508 = vmatpush1.bf16.msra.mxu0 0
      %509 = vmatprep.subr.bf16.mxu0 0
      %510 = vmatpush1.bf16.msra.mxu0 0
      %511 = vmatprep.subr.bf16.mxu0 0
      %512 = vmatpush1.bf16.msra.mxu0 0
      %513 = vmatprep.subr.bf16.mxu0 0
      %514 = vmatpush1.bf16.msra.mxu0 0
      %515 = vmatprep.subr.bf16.mxu0 0
      %516 = vmatpush1.bf16.msra.mxu0 0
      %517 = vmatprep.subr.bf16.mxu0 0
      %518 = vmatpush1.bf16.msra.mxu0 0
      %519 = vmatprep.subr.bf16.mxu0 0
      %520 = vmatpush1.bf16.msra.mxu0 0
      %521 = vmatprep.subr.bf16.mxu0 0
      %522 = vmatpush1.bf16.msra.mxu0 0
      %523 = vmatprep.mubr.bf16.mxu0 0
      %524 = vmatmul.mubr.bf16.gmra.mrb[0].mxu0 %v489
      %v525 = vpop.f32.mrb[0].mxu0
      %v526 = vadd.f32 0.0, %v525
      %v527 = vpop.f32.mrb[0].mxu0
      %v528 = vpop.f32.mrb[0].mxu0
      %v529 = vadd.f32 0.0, %v528
      %v530 = vpop.f32.mrb[0].mxu0
      %531 = vdwg.mxu0
      %v532 = vpack.c.bf16 %v529, %v526
      %533 = vmatprep.subr.bf16.mxu0 0
      %534 = vmatpush1.bf16.msra.mxu0 %v532
      %535 = vmatprep.subr.bf16.mxu0 0
      %536 = vmatpush1.bf16.msra.mxu0 0
      %537 = vmatprep.subr.bf16.mxu0 0
      %538 = vmatpush1.bf16.msra.mxu0 0
      %539 = vmatprep.subr.bf16.mxu0 0
      %540 = vmatpush1.bf16.msra.mxu0 0
      %541 = vmatprep.subr.bf16.mxu0 0
      %542 = vmatpush1.bf16.msra.mxu0 0
      %543 = vmatprep.subr.bf16.mxu0 0
      %544 = vmatpush1.bf16.msra.mxu0 0
      %545 = vmatprep.subr.bf16.mxu0 0
      %546 = vmatpush1.bf16.msra.mxu0 0
      %547 = vmatprep.subr.bf16.mxu0 0
      %548 = vmatpush1.bf16.msra.mxu0 0
      %549 = vmatprep.subr.bf16.mxu0 0
      %550 = vmatpush1.bf16.msra.mxu0 0
      %551 = vmatprep.subr.bf16.mxu0 0
      %552 = vmatpush1.bf16.msra.mxu0 0
      %553 = vmatprep.subr.bf16.mxu0 0
      %554 = vmatpush1.bf16.msra.mxu0 0
      %555 = vmatprep.subr.bf16.mxu0 0
      %556 = vmatpush1.bf16.msra.mxu0 0
      %557 = vmatprep.subr.bf16.mxu0 0
      %558 = vmatpush1.bf16.msra.mxu0 0
      %559 = vmatprep.subr.bf16.mxu0 0
      %560 = vmatpush1.bf16.msra.mxu0 0
      %561 = vmatprep.subr.bf16.mxu0 0
      %562 = vmatpush1.bf16.msra.mxu0 0
      %563 = vmatprep.subr.bf16.mxu0 0
      %564 = vmatpush1.bf16.msra.mxu0 0
      %565 = vmatprep.mubr.bf16.mxu0 0
      %566 = vmatmul.mubr.bf16.gmra.mrb[0].mxu0 %v489
      %v567 = vpop.f32.mrb[0].mxu0
      %v568 = vadd.f32 0.0, %v567
      %v569 = vpop.f32.mrb[0].mxu0
      %v570 = vpop.f32.mrb[0].mxu0
      %v571 = vadd.f32 0.0, %v570
      %v572 = vpop.f32.mrb[0].mxu0
      %573 = vdwg.mxu0
      %v574 = vmul.f32 %v568, 2.0
      %v575 = vmul.f32 %v571, 2.0
      %v576 = vsub.f32 %v574, %v478
      %v577 = vsub.f32 %v575, %v479
      %s578 = scalar_lea.vmem %s2, 8
      %v579 = vld [vmem:[%s578] sm:$0xf]
      %v580 = vld [vmem:[%s578 + $0x4] sm:$0xf]
      %v583 = vunpack.c.l.b16 %v579
      %v584 = vunpack.c.l.b16 %v580
      %v585 = vpack.c.b16 %v584, %v583
      %v587 = vsel %vm438, %v585, 0
      %589 = vmatprep.subr.bf16.mxu0 0
      %590 = vmatpush1.bf16.msra.mxu0 %v532
      %591 = vmatprep.subr.bf16.mxu0 0
      %592 = vmatpush1.bf16.msra.mxu0 0
      %593 = vmatprep.subr.bf16.mxu0 0
      %594 = vmatpush1.bf16.msra.mxu0 0
      %595 = vmatprep.subr.bf16.mxu0 0
      %596 = vmatpush1.bf16.msra.mxu0 0
      %597 = vmatprep.subr.bf16.mxu0 0
      %598 = vmatpush1.bf16.msra.mxu0 0
      %599 = vmatprep.subr.bf16.mxu0 0
      %600 = vmatpush1.bf16.msra.mxu0 0
      %601 = vmatprep.subr.bf16.mxu0 0
      %602 = vmatpush1.bf16.msra.mxu0 0
      %603 = vmatprep.subr.bf16.mxu0 0
      %604 = vmatpush1.bf16.msra.mxu0 0
      %605 = vmatprep.subr.bf16.mxu0 0
      %606 = vmatpush1.bf16.msra.mxu0 0
      %607 = vmatprep.subr.bf16.mxu0 0
      %608 = vmatpush1.bf16.msra.mxu0 0
      %609 = vmatprep.subr.bf16.mxu0 0
      %610 = vmatpush1.bf16.msra.mxu0 0
      %611 = vmatprep.subr.bf16.mxu0 0
      %612 = vmatpush1.bf16.msra.mxu0 0
      %613 = vmatprep.subr.bf16.mxu0 0
      %614 = vmatpush1.bf16.msra.mxu0 0
      %615 = vmatprep.subr.bf16.mxu0 0
      %616 = vmatpush1.bf16.msra.mxu0 0
      %617 = vmatprep.subr.bf16.mxu0 0
      %618 = vmatpush1.bf16.msra.mxu0 0
      %619 = vmatprep.subr.bf16.mxu0 0
      %620 = vmatpush1.bf16.msra.mxu0 0
      %621 = vmatprep.mubr.bf16.mxu0 0
      %622 = vmatmul.mubr.bf16.gmra.mrb[0].mxu0 %v587
      %v623 = vpop.f32.mrb[0].mxu0
      %v624 = vadd.f32 0.0, %v623
      %v625 = vpop.f32.mrb[0].mxu0
      %v626 = vpop.f32.mrb[0].mxu0
      %v627 = vadd.f32 0.0, %v626
      %v628 = vpop.f32.mrb[0].mxu0
      %629 = vdwg.mxu0
      %v630 = vpack.c.bf16 %v627, %v624
      %631 = vmatprep.subr.bf16.mxu0 0
      %632 = vmatpush1.bf16.msra.mxu0 %v630
      %633 = vmatprep.subr.bf16.mxu0 0
      %634 = vmatpush1.bf16.msra.mxu0 0
      %635 = vmatprep.subr.bf16.mxu0 0
      %636 = vmatpush1.bf16.msra.mxu0 0
      %637 = vmatprep.subr.bf16.mxu0 0
      %638 = vmatpush1.bf16.msra.mxu0 0
      %639 = vmatprep.subr.bf16.mxu0 0
      %640 = vmatpush1.bf16.msra.mxu0 0
      %641 = vmatprep.subr.bf16.mxu0 0
      %642 = vmatpush1.bf16.msra.mxu0 0
      %643 = vmatprep.subr.bf16.mxu0 0
      %644 = vmatpush1.bf16.msra.mxu0 0
      %645 = vmatprep.subr.bf16.mxu0 0
      %646 = vmatpush1.bf16.msra.mxu0 0
      %647 = vmatprep.subr.bf16.mxu0 0
      %648 = vmatpush1.bf16.msra.mxu0 0
      %649 = vmatprep.subr.bf16.mxu0 0
      %650 = vmatpush1.bf16.msra.mxu0 0
      %651 = vmatprep.subr.bf16.mxu0 0
      %652 = vmatpush1.bf16.msra.mxu0 0
      %653 = vmatprep.subr.bf16.mxu0 0
      %654 = vmatpush1.bf16.msra.mxu0 0
      %655 = vmatprep.subr.bf16.mxu0 0
      %656 = vmatpush1.bf16.msra.mxu0 0
      %657 = vmatprep.subr.bf16.mxu0 0
      %658 = vmatpush1.bf16.msra.mxu0 0
      %659 = vmatprep.subr.bf16.mxu0 0
      %660 = vmatpush1.bf16.msra.mxu0 0
      %661 = vmatprep.subr.bf16.mxu0 0
      %662 = vmatpush1.bf16.msra.mxu0 0
      %663 = vmatprep.mubr.bf16.mxu0 0
      %664 = vmatmul.mubr.bf16.gmra.mrb[0].mxu0 %v587
      %v665 = vpop.f32.mrb[0].mxu0
      %v666 = vadd.f32 0.0, %v665
      %v667 = vpop.f32.mrb[0].mxu0
      %v668 = vpop.f32.mrb[0].mxu0
      %v669 = vadd.f32 0.0, %v668
      %v670 = vpop.f32.mrb[0].mxu0
      %671 = vdwg.mxu0
      %v672 = vmul.f32 %v666, 2.0
      %v673 = vmul.f32 %v669, 2.0
      %v674 = vsub.f32 %v672, %v526
      %v675 = vsub.f32 %v673, %v529
      %676 = vxpose.xlu0.b32.start [1/16] %v478, 128
      %677 = vxpose.xlu0.b32.cont [2/16] %v479, 128
      %678 = vxpose.xlu0.b32.cont [3/16] 0.0, 128
      %679 = vxpose.xlu0.b32.cont [4/16] 0.0, 128
      %680 = vxpose.xlu0.b32.cont [5/16] 0.0, 128
      %681 = vxpose.xlu0.b32.cont [6/16] 0.0, 128
      %682 = vxpose.xlu0.b32.cont [7/16] 0.0, 128
      %683 = vxpose.xlu0.b32.cont [8/16] 0.0, 128
      %684 = vxpose.xlu0.b32.cont [9/16] 0.0, 128
      %685 = vxpose.xlu0.b32.cont [10/16] 0.0, 128
      %686 = vxpose.xlu0.b32.cont [11/16] 0.0, 128
      %687 = vxpose.xlu0.b32.cont [12/16] 0.0, 128
      %688 = vxpose.xlu0.b32.cont [13/16] 0.0, 128
      %689 = vxpose.xlu0.b32.cont [14/16] 0.0, 128
      %690 = vxpose.xlu0.b32.cont [15/16] 0.0, 128
      %691 = vxpose.xlu0.b32.end [16/16] 0.0, 128
      %v692 = vpop.trf.xlu0
      %v693 = vpop.trf.xlu0
      %v694 = vpop.trf.xlu0
      %v695 = vpop.trf.xlu0
      %v696 = vpop.trf.xlu0
      %v697 = vpop.trf.xlu0
      %v698 = vpop.trf.xlu0
      %v699 = vpop.trf.xlu0
      %v700 = vpop.trf.xlu0
      %v701 = vpop.trf.xlu0
      %v702 = vpop.trf.xlu0
      %v703 = vpop.trf.xlu0
      %v704 = vpop.trf.xlu0
      %v705 = vpop.trf.xlu0
      %v706 = vpop.trf.xlu0
      %v707 = vpop.trf.xlu0
      %708 = vxpose.xlu0.b32.start [1/16] %v526, 128
      %709 = vxpose.xlu0.b32.cont [2/16] %v529, 128
      %710 = vxpose.xlu0.b32.cont [3/16] 0.0, 128
      %711 = vxpose.xlu0.b32.cont [4/16] 0.0, 128
      %712 = vxpose.xlu0.b32.cont [5/16] 0.0, 128
      %713 = vxpose.xlu0.b32.cont [6/16] 0.0, 128
      %714 = vxpose.xlu0.b32.cont [7/16] 0.0, 128
      %715 = vxpose.xlu0.b32.cont [8/16] 0.0, 128
      %716 = vxpose.xlu0.b32.cont [9/16] 0.0, 128
      %717 = vxpose.xlu0.b32.cont [10/16] 0.0, 128
      %718 = vxpose.xlu0.b32.cont [11/16] 0.0, 128
      %719 = vxpose.xlu0.b32.cont [12/16] 0.0, 128
      %720 = vxpose.xlu0.b32.cont [13/16] 0.0, 128
      %721 = vxpose.xlu0.b32.cont [14/16] 0.0, 128
      %722 = vxpose.xlu0.b32.cont [15/16] 0.0, 128
      %723 = vxpose.xlu0.b32.end [16/16] 0.0, 128
      %v724 = vpop.trf.xlu0
      %v725 = vpop.trf.xlu0
      %v726 = vpop.trf.xlu0
      %v727 = vpop.trf.xlu0
      %v728 = vpop.trf.xlu0
      %v729 = vpop.trf.xlu0
      %v730 = vpop.trf.xlu0
      %v731 = vpop.trf.xlu0
      %v732 = vpop.trf.xlu0
      %v733 = vpop.trf.xlu0
      %v734 = vpop.trf.xlu0
      %v735 = vpop.trf.xlu0
      %v736 = vpop.trf.xlu0
      %v737 = vpop.trf.xlu0
      %v738 = vpop.trf.xlu0
      %v739 = vpop.trf.xlu0
      %740 = vxpose.xlu0.b32.start [1/16] %v576, 128
      %741 = vxpose.xlu0.b32.cont [2/16] %v577, 128
      %742 = vxpose.xlu0.b32.cont [3/16] 0.0, 128
      %743 = vxpose.xlu0.b32.cont [4/16] 0.0, 128
      %744 = vxpose.xlu0.b32.cont [5/16] 0.0, 128
      %745 = vxpose.xlu0.b32.cont [6/16] 0.0, 128
      %746 = vxpose.xlu0.b32.cont [7/16] 0.0, 128
      %747 = vxpose.xlu0.b32.cont [8/16] 0.0, 128
      %748 = vxpose.xlu0.b32.cont [9/16] 0.0, 128
      %749 = vxpose.xlu0.b32.cont [10/16] 0.0, 128
      %750 = vxpose.xlu0.b32.cont [11/16] 0.0, 128
      %751 = vxpose.xlu0.b32.cont [12/16] 0.0, 128
      %752 = vxpose.xlu0.b32.cont [13/16] 0.0, 128
      %753 = vxpose.xlu0.b32.cont [14/16] 0.0, 128
      %754 = vxpose.xlu0.b32.cont [15/16] 0.0, 128
      %755 = vxpose.xlu0.b32.end [16/16] 0.0, 128
      %v756 = vpop.trf.xlu0
      %v757 = vpop.trf.xlu0
      %v758 = vpop.trf.xlu0
      %v759 = vpop.trf.xlu0
      %v760 = vpop.trf.xlu0
      %v761 = vpop.trf.xlu0
      %v762 = vpop.trf.xlu0
      %v763 = vpop.trf.xlu0
      %v764 = vpop.trf.xlu0
      %v765 = vpop.trf.xlu0
      %v766 = vpop.trf.xlu0
      %v767 = vpop.trf.xlu0
      %v768 = vpop.trf.xlu0
      %v769 = vpop.trf.xlu0
      %v770 = vpop.trf.xlu0
      %v771 = vpop.trf.xlu0
      %772 = vxpose.xlu0.b32.start [1/16] %v624, 128
      %773 = vxpose.xlu0.b32.cont [2/16] %v627, 128
      %774 = vxpose.xlu0.b32.cont [3/16] 0.0, 128
      %775 = vxpose.xlu0.b32.cont [4/16] 0.0, 128
      %776 = vxpose.xlu0.b32.cont [5/16] 0.0, 128
      %777 = vxpose.xlu0.b32.cont [6/16] 0.0, 128
      %778 = vxpose.xlu0.b32.cont [7/16] 0.0, 128
      %779 = vxpose.xlu0.b32.cont [8/16] 0.0, 128
      %780 = vxpose.xlu0.b32.cont [9/16] 0.0, 128
      %781 = vxpose.xlu0.b32.cont [10/16] 0.0, 128
      %782 = vxpose.xlu0.b32.cont [11/16] 0.0, 128
      %783 = vxpose.xlu0.b32.cont [12/16] 0.0, 128
      %784 = vxpose.xlu0.b32.cont [13/16] 0.0, 128
      %785 = vxpose.xlu0.b32.cont [14/16] 0.0, 128
      %786 = vxpose.xlu0.b32.cont [15/16] 0.0, 128
      %787 = vxpose.xlu0.b32.end [16/16] 0.0, 128
      %v788 = vpop.trf.xlu0
      %v789 = vpop.trf.xlu0
      %v790 = vpop.trf.xlu0
      %v791 = vpop.trf.xlu0
      %v792 = vpop.trf.xlu0
      %v793 = vpop.trf.xlu0
      %v794 = vpop.trf.xlu0
      %v795 = vpop.trf.xlu0
      %v796 = vpop.trf.xlu0
      %v797 = vpop.trf.xlu0
      %v798 = vpop.trf.xlu0
      %v799 = vpop.trf.xlu0
      %v800 = vpop.trf.xlu0
      %v801 = vpop.trf.xlu0
      %v802 = vpop.trf.xlu0
      %v803 = vpop.trf.xlu0
      %804 = vxpose.xlu0.b32.start [1/16] %v674, 128
      %805 = vxpose.xlu0.b32.cont [2/16] %v675, 128
      %806 = vxpose.xlu0.b32.cont [3/16] 0.0, 128
      %807 = vxpose.xlu0.b32.cont [4/16] 0.0, 128
      %808 = vxpose.xlu0.b32.cont [5/16] 0.0, 128
      %809 = vxpose.xlu0.b32.cont [6/16] 0.0, 128
      %810 = vxpose.xlu0.b32.cont [7/16] 0.0, 128
      %811 = vxpose.xlu0.b32.cont [8/16] 0.0, 128
      %812 = vxpose.xlu0.b32.cont [9/16] 0.0, 128
      %813 = vxpose.xlu0.b32.cont [10/16] 0.0, 128
      %814 = vxpose.xlu0.b32.cont [11/16] 0.0, 128
      %815 = vxpose.xlu0.b32.cont [12/16] 0.0, 128
      %816 = vxpose.xlu0.b32.cont [13/16] 0.0, 128
      %817 = vxpose.xlu0.b32.cont [14/16] 0.0, 128
      %818 = vxpose.xlu0.b32.cont [15/16] 0.0, 128
      %819 = vxpose.xlu0.b32.end [16/16] 0.0, 128
      %v820 = vpop.trf.xlu0
      %v821 = vpop.trf.xlu0
      %v822 = vpop.trf.xlu0
      %v823 = vpop.trf.xlu0
      %v824 = vpop.trf.xlu0
      %v825 = vpop.trf.xlu0
      %v826 = vpop.trf.xlu0
      %v827 = vpop.trf.xlu0
      %v828 = vpop.trf.xlu0
      %v829 = vpop.trf.xlu0
      %v830 = vpop.trf.xlu0
      %v831 = vpop.trf.xlu0
      %v832 = vpop.trf.xlu0
      %v833 = vpop.trf.xlu0
      %v834 = vpop.trf.xlu0
      %v835 = vpop.trf.xlu0
      %846 = vrot.lane.b32.xlu0 %v694, 16
      %v847 = vpop.permute.xlu0 %846
      %848 = vrot.lane.b32.xlu0 %v695, 16
      %v849 = vpop.permute.xlu0 %848
      %850 = vrot.lane.b32.xlu0 %v726, 16
      %v851 = vpop.permute.xlu0 %850
      %852 = vrot.lane.b32.xlu0 %v727, 16
      %v853 = vpop.permute.xlu0 %852
      %854 = vrot.lane.b32.xlu0 %v758, 16
      %v855 = vpop.permute.xlu0 %854
      %856 = vrot.lane.b32.xlu0 %v759, 16
      %v857 = vpop.permute.xlu0 %856
      %858 = vrot.lane.b32.xlu0 %v790, 16
      %v859 = vpop.permute.xlu0 %858
      %860 = vrot.lane.b32.xlu0 %v791, 16
      %v861 = vpop.permute.xlu0 %860
      %862 = vrot.lane.b32.xlu0 %v822, 16
      %v863 = vpop.permute.xlu0 %862
      %864 = vrot.lane.b32.xlu0 %v823, 16
      %v865 = vpop.permute.xlu0 %864
      %886 = vrot.lane.b32.xlu0 %v696, 32
      %v887 = vpop.permute.xlu0 %886
      %888 = vrot.lane.b32.xlu0 %v697, 32
      %v889 = vpop.permute.xlu0 %888
      %890 = vrot.lane.b32.xlu0 %v728, 32
      %v891 = vpop.permute.xlu0 %890
      %892 = vrot.lane.b32.xlu0 %v729, 32
      %v893 = vpop.permute.xlu0 %892
      %894 = vrot.lane.b32.xlu0 %v760, 32
      %v895 = vpop.permute.xlu0 %894
      %896 = vrot.lane.b32.xlu0 %v761, 32
      %v897 = vpop.permute.xlu0 %896
      %898 = vrot.lane.b32.xlu0 %v792, 32
      %v899 = vpop.permute.xlu0 %898
      %900 = vrot.lane.b32.xlu0 %v793, 32
      %v901 = vpop.permute.xlu0 %900
      %902 = vrot.lane.b32.xlu0 %v824, 32
      %v903 = vpop.permute.xlu0 %902
      %904 = vrot.lane.b32.xlu0 %v825, 32
      %v905 = vpop.permute.xlu0 %904
      %926 = vrot.lane.b32.xlu0 %v698, 48
      %v927 = vpop.permute.xlu0 %926
      %928 = vrot.lane.b32.xlu0 %v699, 48
      %v929 = vpop.permute.xlu0 %928
      %930 = vrot.lane.b32.xlu0 %v730, 48
      %v931 = vpop.permute.xlu0 %930
      %932 = vrot.lane.b32.xlu0 %v731, 48
      %v933 = vpop.permute.xlu0 %932
      %934 = vrot.lane.b32.xlu0 %v762, 48
      %v935 = vpop.permute.xlu0 %934
      %936 = vrot.lane.b32.xlu0 %v763, 48
      %v937 = vpop.permute.xlu0 %936
      %938 = vrot.lane.b32.xlu0 %v794, 48
      %v939 = vpop.permute.xlu0 %938
      %940 = vrot.lane.b32.xlu0 %v795, 48
      %v941 = vpop.permute.xlu0 %940
      %942 = vrot.lane.b32.xlu0 %v826, 48
      %v943 = vpop.permute.xlu0 %942
      %944 = vrot.lane.b32.xlu0 %v827, 48
      %v945 = vpop.permute.xlu0 %944
      %966 = vrot.lane.b32.xlu0 %v700, 64
      %v967 = vpop.permute.xlu0 %966
      %968 = vrot.lane.b32.xlu0 %v701, 64
      %v969 = vpop.permute.xlu0 %968
      %970 = vrot.lane.b32.xlu0 %v732, 64
      %v971 = vpop.permute.xlu0 %970
      %972 = vrot.lane.b32.xlu0 %v733, 64
      %v973 = vpop.permute.xlu0 %972
      %974 = vrot.lane.b32.xlu0 %v764, 64
      %v975 = vpop.permute.xlu0 %974
      %976 = vrot.lane.b32.xlu0 %v765, 64
      %v977 = vpop.permute.xlu0 %976
      %978 = vrot.lane.b32.xlu0 %v796, 64
      %v979 = vpop.permute.xlu0 %978
      %980 = vrot.lane.b32.xlu0 %v797, 64
      %v981 = vpop.permute.xlu0 %980
      %982 = vrot.lane.b32.xlu0 %v828, 64
      %v983 = vpop.permute.xlu0 %982
      %984 = vrot.lane.b32.xlu0 %v829, 64
      %v985 = vpop.permute.xlu0 %984
      %1006 = vrot.lane.b32.xlu0 %v702, 80
      %v1007 = vpop.permute.xlu0 %1006
      %1008 = vrot.lane.b32.xlu0 %v703, 80
      %v1009 = vpop.permute.xlu0 %1008
      %1010 = vrot.lane.b32.xlu0 %v734, 80
      %v1011 = vpop.permute.xlu0 %1010
      %1012 = vrot.lane.b32.xlu0 %v735, 80
      %v1013 = vpop.permute.xlu0 %1012
      %1014 = vrot.lane.b32.xlu0 %v766, 80
      %v1015 = vpop.permute.xlu0 %1014
      %1016 = vrot.lane.b32.xlu0 %v767, 80
      %v1017 = vpop.permute.xlu0 %1016
      %1018 = vrot.lane.b32.xlu0 %v798, 80
      %v1019 = vpop.permute.xlu0 %1018
      %1020 = vrot.lane.b32.xlu0 %v799, 80
      %v1021 = vpop.permute.xlu0 %1020
      %1022 = vrot.lane.b32.xlu0 %v830, 80
      %v1023 = vpop.permute.xlu0 %1022
      %1024 = vrot.lane.b32.xlu0 %v831, 80
      %v1025 = vpop.permute.xlu0 %1024
      %1046 = vrot.lane.b32.xlu0 %v704, 96
      %v1047 = vpop.permute.xlu0 %1046
      %1048 = vrot.lane.b32.xlu0 %v705, 96
      %v1049 = vpop.permute.xlu0 %1048
      %1050 = vrot.lane.b32.xlu0 %v736, 96
      %v1051 = vpop.permute.xlu0 %1050
      %1052 = vrot.lane.b32.xlu0 %v737, 96
      %v1053 = vpop.permute.xlu0 %1052
      %1054 = vrot.lane.b32.xlu0 %v768, 96
      %v1055 = vpop.permute.xlu0 %1054
      %1056 = vrot.lane.b32.xlu0 %v769, 96
      %v1057 = vpop.permute.xlu0 %1056
      %1058 = vrot.lane.b32.xlu0 %v800, 96
      %v1059 = vpop.permute.xlu0 %1058
      %1060 = vrot.lane.b32.xlu0 %v801, 96
      %v1061 = vpop.permute.xlu0 %1060
      %1062 = vrot.lane.b32.xlu0 %v832, 96
      %v1063 = vpop.permute.xlu0 %1062
      %1064 = vrot.lane.b32.xlu0 %v833, 96
      %v1065 = vpop.permute.xlu0 %1064
      %1086 = vrot.lane.b32.xlu0 %v706, 112
      %v1087 = vpop.permute.xlu0 %1086
      %1088 = vrot.lane.b32.xlu0 %v707, 112
      %v1089 = vpop.permute.xlu0 %1088
      %1090 = vrot.lane.b32.xlu0 %v738, 112
      %v1091 = vpop.permute.xlu0 %1090
      %1092 = vrot.lane.b32.xlu0 %v739, 112
      %v1093 = vpop.permute.xlu0 %1092
      %1094 = vrot.lane.b32.xlu0 %v770, 112
      %v1095 = vpop.permute.xlu0 %1094
      %1096 = vrot.lane.b32.xlu0 %v771, 112
      %v1097 = vpop.permute.xlu0 %1096
      %1098 = vrot.lane.b32.xlu0 %v802, 112
      %v1099 = vpop.permute.xlu0 %1098
      %1100 = vrot.lane.b32.xlu0 %v803, 112
      %v1101 = vpop.permute.xlu0 %1100
      %1102 = vrot.lane.b32.xlu0 %v834, 112
      %v1103 = vpop.permute.xlu0 %1102
      %1104 = vrot.lane.b32.xlu0 %v835, 112
      %v1105 = vpop.permute.xlu0 %1104
      %v1116 = vsel %vm438, %v692, %v847
      %v1117 = vsel %vm438, %v693, %v849
      %v1118 = vsel %vm438, %v724, %v851
      %v1119 = vsel %vm438, %v725, %v853
      %v1120 = vsel %vm438, %v756, %v855
      %v1121 = vsel %vm438, %v757, %v857
      %v1122 = vsel %vm438, %v788, %v859
      %v1123 = vsel %vm438, %v789, %v861
      %v1124 = vsel %vm438, %v820, %v863
      %v1125 = vsel %vm438, %v821, %v865
      %v1126 = vsel %vm444, %v1116, %v887
      %v1127 = vsel %vm444, %v1117, %v889
      %v1128 = vsel %vm444, %v1118, %v891
      %v1129 = vsel %vm444, %v1119, %v893
      %v1130 = vsel %vm444, %v1120, %v895
      %v1131 = vsel %vm444, %v1121, %v897
      %v1132 = vsel %vm444, %v1122, %v899
      %v1133 = vsel %vm444, %v1123, %v901
      %v1134 = vsel %vm444, %v1124, %v903
      %v1135 = vsel %vm444, %v1125, %v905
      %v1136 = vsel %vm450, %v1126, %v927
      %v1137 = vsel %vm450, %v1127, %v929
      %v1138 = vsel %vm450, %v1128, %v931
      %v1139 = vsel %vm450, %v1129, %v933
      %v1140 = vsel %vm450, %v1130, %v935
      %v1141 = vsel %vm450, %v1131, %v937
      %v1142 = vsel %vm450, %v1132, %v939
      %v1143 = vsel %vm450, %v1133, %v941
      %v1144 = vsel %vm450, %v1134, %v943
      %v1145 = vsel %vm450, %v1135, %v945
      %v1146 = vsel %vm456, %v1136, %v967
      %v1147 = vsel %vm456, %v1137, %v969
      %v1148 = vsel %vm456, %v1138, %v971
      %v1149 = vsel %vm456, %v1139, %v973
      %v1150 = vsel %vm456, %v1140, %v975
      %v1151 = vsel %vm456, %v1141, %v977
      %v1152 = vsel %vm456, %v1142, %v979
      %v1153 = vsel %vm456, %v1143, %v981
      %v1154 = vsel %vm456, %v1144, %v983
      %v1155 = vsel %vm456, %v1145, %v985
      %v1156 = vsel %vm462, %v1146, %v1007
      %v1157 = vsel %vm462, %v1147, %v1009
      %v1158 = vsel %vm462, %v1148, %v1011
      %v1159 = vsel %vm462, %v1149, %v1013
      %v1160 = vsel %vm462, %v1150, %v1015
      %v1161 = vsel %vm462, %v1151, %v1017
      %v1162 = vsel %vm462, %v1152, %v1019
      %v1163 = vsel %vm462, %v1153, %v1021
      %v1164 = vsel %vm462, %v1154, %v1023
      %v1165 = vsel %vm462, %v1155, %v1025
      %v1166 = vsel %vm468, %v1156, %v1047
      %v1167 = vsel %vm468, %v1157, %v1049
      %v1168 = vsel %vm468, %v1158, %v1051
      %v1169 = vsel %vm468, %v1159, %v1053
      %v1170 = vsel %vm468, %v1160, %v1055
      %v1171 = vsel %vm468, %v1161, %v1057
      %v1172 = vsel %vm468, %v1162, %v1059
      %v1173 = vsel %vm468, %v1163, %v1061
      %v1174 = vsel %vm468, %v1164, %v1063
      %v1175 = vsel %vm468, %v1165, %v1065
      %v1176 = vsel %vm474, %v1166, %v1087
      %v1177 = vsel %vm474, %v1167, %v1089
      %v1178 = vsel %vm474, %v1168, %v1091
      %v1179 = vsel %vm474, %v1169, %v1093
      %v1180 = vsel %vm474, %v1170, %v1095
      %v1181 = vsel %vm474, %v1171, %v1097
      %v1182 = vsel %vm474, %v1172, %v1099
      %v1183 = vsel %vm474, %v1173, %v1101
      %v1184 = vsel %vm474, %v1174, %v1103
      %v1185 = vsel %vm474, %v1175, %v1105
      %1186 = vxpose.xlu0.b32.start [1/16] %v1176, 128
      %1187 = vxpose.xlu0.b32.cont [2/16] %v1177, 128
      %1188 = vxpose.xlu0.b32.cont [3/16] %v1178, 128
      %1189 = vxpose.xlu0.b32.cont [4/16] %v1179, 128
      %1190 = vxpose.xlu0.b32.cont [5/16] %v1180, 128
      %1191 = vxpose.xlu0.b32.cont [6/16] %v1181, 128
      %1192 = vxpose.xlu0.b32.cont [7/16] %v1182, 128
      %1193 = vxpose.xlu0.b32.cont [8/16] %v1183, 128
      %1194 = vxpose.xlu0.b32.cont [9/16] %v1184, 128
      %1195 = vxpose.xlu0.b32.cont [10/16] %v1185, 128
      %1196 = vxpose.xlu0.b32.cont [11/16] 0.0, 128
      %1197 = vxpose.xlu0.b32.cont [12/16] 0.0, 128
      %1198 = vxpose.xlu0.b32.cont [13/16] 0.0, 128
      %1199 = vxpose.xlu0.b32.cont [14/16] 0.0, 128
      %1200 = vxpose.xlu0.b32.cont [15/16] 0.0, 128
      %1201 = vxpose.xlu0.b32.end [16/16] 0.0, 128
      %v1202 = vpop.trf.xlu0
      %v1203 = vpop.trf.xlu0
      %v1204 = vpop.trf.xlu0
      %v1205 = vpop.trf.xlu0
      %v1206 = vpop.trf.xlu0
      %v1207 = vpop.trf.xlu0
      %v1208 = vpop.trf.xlu0
      %v1209 = vpop.trf.xlu0
      %v1210 = vpop.trf.xlu0
      %v1211 = vpop.trf.xlu0
      %v1212 = vpop.trf.xlu0
      %v1213 = vpop.trf.xlu0
      %v1214 = vpop.trf.xlu0
      %v1215 = vpop.trf.xlu0
      %v1216 = vpop.trf.xlu0
      %v1217 = vpop.trf.xlu0
      %v1218 = vpack.c.bf16 %v1203, %v1202
      %v1219 = vpack.c.bf16 %v1205, %v1204
      %v1220 = vpack.c.bf16 %v1207, %v1206
      %v1221 = vpack.c.bf16 %v1209, %v1208
      %v1222 = vpack.c.bf16 %v1211, %v1210
      %v1223 = vpack.c.bf16 %v1213, %v1212
      %v1224 = vpack.c.bf16 %v1215, %v1214
      %v1225 = vpack.c.bf16 %v1217, %v1216
      %v1226 = vld [vmem:[%s3] sm:$0xf]
      %v1227 = vld [vmem:[%s3 + $0x4] sm:$0xf]
      %v1228 = vld [vmem:[%s3 + $0x8] sm:$0xf]
      %v1229 = vld [vmem:[%s3 + $0xc] sm:$0xf]
      %v1230 = vld [vmem:[%s3 + $0x10] sm:$0xf]
      %v1231 = vld [vmem:[%s3 + $0x14] sm:$0xf]
      %v1232 = vld [vmem:[%s3 + $0x18] sm:$0xf]
      %v1233 = vld [vmem:[%s3 + $0x1c] sm:$0xf]
      %v1234 = vld [vmem:[%s3 + $0x20] sm:$0xf]
      %v1235 = vld [vmem:[%s3 + $0x24] sm:$0xf]
      %v1236 = vld [vmem:[%s4] sm:$0x1]
      %v1238 = vlaneseq
      %v1239 = vshrl.u32 %v1238, 7
      %v1240 = vsub.s32 0, %v1239
      %v1241 = vrot.slane %v1236, %v1240
      %v1253 = vunpack.c.l.b16 %v1226
      %v1254 = vunpack.c.l.b16 %v1227
      %v1255 = vunpack.c.l.b16 %v1228
      %v1256 = vunpack.c.l.b16 %v1229
      %v1257 = vunpack.c.l.b16 %v1230
      %v1258 = vunpack.c.l.b16 %v1231
      %v1259 = vunpack.c.l.b16 %v1232
      %v1260 = vunpack.c.l.b16 %v1233
      %v1261 = vunpack.c.l.b16 %v1234
      %v1262 = vunpack.c.l.b16 %v1235
      %v1263 = vpack.c.b16 %v1254, %v1253
      %v1264 = vpack.c.b16 %v1256, %v1255
      %v1265 = vpack.c.b16 %v1258, %v1257
      %v1266 = vpack.c.b16 %v1260, %v1259
      %v1267 = vpack.c.b16 %v1262, %v1261
      %v1274 = vsel %vm462, %v1218, 0
      %v1277 = vsel %vm462, %v1219, 0
      %v1280 = vsel %vm462, %v1220, 0
      %v1283 = vsel %vm462, %v1221, 0
      %v1286 = vsel %vm462, %v1222, 0
      %v1289 = vsel %vm462, %v1223, 0
      %v1292 = vsel %vm462, %v1224, 0
      %v1295 = vsel %vm462, %v1225, 0
      %1297 = vmatprep.subr.bf16.mxu0 0
      %1298 = vmatpush1.bf16.msra.mxu0 %v1263
      %1299 = vmatprep.subr.bf16.mxu0 0
      %1300 = vmatpush1.bf16.msra.mxu0 %v1264
      %1301 = vmatprep.subr.bf16.mxu0 0
      %1302 = vmatpush1.bf16.msra.mxu0 %v1265
      %1303 = vmatprep.subr.bf16.mxu0 0
      %1304 = vmatpush1.bf16.msra.mxu0 %v1266
      %1305 = vmatprep.subr.bf16.mxu0 0
      %1306 = vmatpush1.bf16.msra.mxu0 %v1267
      %1307 = vmatprep.subr.bf16.mxu0 0
      %1308 = vmatpush1.bf16.msra.mxu0 0
      %1309 = vmatprep.subr.bf16.mxu0 0
      %1310 = vmatpush1.bf16.msra.mxu0 0
      %1311 = vmatprep.subr.bf16.mxu0 0
      %1312 = vmatpush1.bf16.msra.mxu0 0
      %1313 = vmatprep.subr.bf16.mxu0 0
      %1314 = vmatpush1.bf16.msra.mxu0 0
      %1315 = vmatprep.subr.bf16.mxu0 0
      %1316 = vmatpush1.bf16.msra.mxu0 0
      %1317 = vmatprep.subr.bf16.mxu0 0
      %1318 = vmatpush1.bf16.msra.mxu0 0
      %1319 = vmatprep.subr.bf16.mxu0 0
      %1320 = vmatpush1.bf16.msra.mxu0 0
      %1321 = vmatprep.subr.bf16.mxu0 0
      %1322 = vmatpush1.bf16.msra.mxu0 0
      %1323 = vmatprep.subr.bf16.mxu0 0
      %1324 = vmatpush1.bf16.msra.mxu0 0
      %1325 = vmatprep.subr.bf16.mxu0 0
      %1326 = vmatpush1.bf16.msra.mxu0 0
      %1327 = vmatprep.subr.bf16.mxu0 0
      %1328 = vmatpush1.bf16.msra.mxu0 0
      %1329 = vmatprep.mubr.bf16.mxu0 0
      %1330 = vmatmul.mubr.bf16.gmra.mrb[0].mxu0 %v1274
      %v1331 = vpop.f32.mrb[0].mxu0
      %v1332 = vadd.f32 %v1241, %v1331
      %v1333 = vpop.f32.mrb[0].mxu0
      %v1334 = vpop.f32.mrb[0].mxu0
      %v1335 = vadd.f32 %v1241, %v1334
      %v1336 = vpop.f32.mrb[0].mxu0
      %1337 = vmatprep.mubr.bf16.mxu0 0
      %1338 = vmatmul.mubr.bf16.gmra.mrb[0].mxu0 %v1277
      %v1339 = vpop.f32.mrb[0].mxu0
      %v1340 = vadd.f32 %v1241, %v1339
      %v1341 = vpop.f32.mrb[0].mxu0
      %v1342 = vpop.f32.mrb[0].mxu0
      %v1343 = vadd.f32 %v1241, %v1342
      %v1344 = vpop.f32.mrb[0].mxu0
      %1345 = vmatprep.mubr.bf16.mxu0 0
      %1346 = vmatmul.mubr.bf16.gmra.mrb[0].mxu0 %v1280
      %v1347 = vpop.f32.mrb[0].mxu0
      %v1348 = vadd.f32 %v1241, %v1347
      %v1349 = vpop.f32.mrb[0].mxu0
      %v1350 = vpop.f32.mrb[0].mxu0
      %v1351 = vadd.f32 %v1241, %v1350
      %v1352 = vpop.f32.mrb[0].mxu0
      %1353 = vmatprep.mubr.bf16.mxu0 0
      %1354 = vmatmul.mubr.bf16.gmra.mrb[0].mxu0 %v1283
      %v1355 = vpop.f32.mrb[0].mxu0
      %v1356 = vadd.f32 %v1241, %v1355
      %v1357 = vpop.f32.mrb[0].mxu0
      %v1358 = vpop.f32.mrb[0].mxu0
      %v1359 = vadd.f32 %v1241, %v1358
      %v1360 = vpop.f32.mrb[0].mxu0
      %1361 = vmatprep.mubr.bf16.mxu0 0
      %1362 = vmatmul.mubr.bf16.gmra.mrb[0].mxu0 %v1286
      %v1363 = vpop.f32.mrb[0].mxu0
      %v1364 = vadd.f32 %v1241, %v1363
      %v1365 = vpop.f32.mrb[0].mxu0
      %v1366 = vpop.f32.mrb[0].mxu0
      %v1367 = vadd.f32 %v1241, %v1366
      %v1368 = vpop.f32.mrb[0].mxu0
      %1369 = vmatprep.mubr.bf16.mxu0 0
      %1370 = vmatmul.mubr.bf16.gmra.mrb[0].mxu0 %v1289
      %v1371 = vpop.f32.mrb[0].mxu0
      %v1372 = vadd.f32 %v1241, %v1371
      %v1373 = vpop.f32.mrb[0].mxu0
      %v1374 = vpop.f32.mrb[0].mxu0
      %v1375 = vadd.f32 %v1241, %v1374
      %v1376 = vpop.f32.mrb[0].mxu0
      %1377 = vmatprep.mubr.bf16.mxu0 0
      %1378 = vmatmul.mubr.bf16.gmra.mrb[0].mxu0 %v1292
      %v1379 = vpop.f32.mrb[0].mxu0
      %v1380 = vadd.f32 %v1241, %v1379
      %v1381 = vpop.f32.mrb[0].mxu0
      %v1382 = vpop.f32.mrb[0].mxu0
      %v1383 = vadd.f32 %v1241, %v1382
      %v1384 = vpop.f32.mrb[0].mxu0
      %1385 = vmatprep.mubr.bf16.mxu0 0
      %1386 = vmatmul.mubr.bf16.gmra.mrb[0].mxu0 %v1295
      %v1387 = vpop.f32.mrb[0].mxu0
      %v1388 = vadd.f32 %v1241, %v1387
      %v1389 = vpop.f32.mrb[0].mxu0
      %v1390 = vpop.f32.mrb[0].mxu0
      %v1391 = vadd.f32 %v1241, %v1390
      %v1392 = vpop.f32.mrb[0].mxu0
      %1393 = vdwg.mxu0
      %1394 = vst.msk [vmem:[%s248] sm:$0xff] %vm438, %v1332
      %1395 = vst.msk [vmem:[%s248 + $0x8] sm:$0xff] %vm438, %v1335
      %1396 = vst.msk [vmem:[%s248 + $0x10] sm:$0xff] %vm438, %v1340
      %1397 = vst.msk [vmem:[%s248 + $0x18] sm:$0xff] %vm438, %v1343
      %1398 = vst.msk [vmem:[%s248 + $0x20] sm:$0xff] %vm438, %v1348
      %1399 = vst.msk [vmem:[%s248 + $0x28] sm:$0xff] %vm438, %v1351
      %1400 = vst.msk [vmem:[%s248 + $0x30] sm:$0xff] %vm438, %v1356
      %1401 = vst.msk [vmem:[%s248 + $0x38] sm:$0xff] %vm438, %v1359
      %1402 = vst.msk [vmem:[%s248 + $0x40] sm:$0xff] %vm438, %v1364
      %1403 = vst.msk [vmem:[%s248 + $0x48] sm:$0xff] %vm438, %v1367
      %1404 = vst.msk [vmem:[%s248 + $0x50] sm:$0xff] %vm438, %v1372
      %1405 = vst.msk [vmem:[%s248 + $0x58] sm:$0xff] %vm438, %v1375
      %1406 = vst.msk [vmem:[%s248 + $0x60] sm:$0xff] %vm438, %v1380
      %1407 = vst.msk [vmem:[%s248 + $0x68] sm:$0xff] %vm438, %v1383
      %1408 = vst.msk [vmem:[%s248 + $0x70] sm:$0xff] %vm438, %v1388
      %1409 = vst.msk [vmem:[%s248 + $0x78] sm:$0xff] %vm438, %v1391
      %s1410 = smul.u32 16, %s16
      %p1411 = scmp.lt.s32.totalorder %s1410, 63
      %s1412 = scalar_select %p1411, %s1410, 63
      %s1413 = smul.addr %s1412, 8
      %s1414 = scalar_lea.vmem %s5, %s1413
      // Predicated region
      $region41: #{tpu_custom_call.1} parent=39 // pred_check
        %p1415 = pneg %p149
      $region42: #{tpu_custom_call.1} parent=39 // pred_check_branch
        %1417 = sbr.rel (%p1415) target = $region44
      $region43: #{tpu_custom_call.1} parent=39 // pred_region
        %s1418 = smul.u32 16, %s16
      $region44: #{tpu_custom_call.1} parent=39 // pred_fallthru
        _
    $region40: #{tpu_custom_call.1} parent=5 // pred_fallthru
      _
    %p1419 = scmp.le.s32.totalorder 2, %s11
    // Predicated region
    $region45: #{tpu_custom_call.1} parent=5 // pred_check
      %p1420 = pneg %p1419
    $region46: #{tpu_custom_call.1} parent=5 // pred_check_branch
      %1422 = sbr.rel (%p1420) target = $region48
    $region47: #{tpu_custom_call.1} parent=5 // pred_region
      %s1423 = ssub.s32 %s11, 2
      // Predicated region
      $region49: #{tpu_custom_call.1} parent=47 // pred_check
        %p1424 = pneg %p155
      $region50: #{tpu_custom_call.1} parent=47 // pred_check_branch
        %1426 = sbr.rel (%p1424) target = $region52
      $region51: #{tpu_custom_call.1} parent=47 // pred_region
        %s1427 = smul.u32 16, %s17
        %p1428 = scmp.lt.s32.totalorder %s1427, 63
        %s1429 = scalar_select %p1428, %s1427, 63
        %s1430 = smul.addr %s1429, 8
        %s1431 = scalar_lea.vmem %s5, %s1430
      $region52: #{tpu_custom_call.1} parent=47 // pred_fallthru
        _
    $region48: #{tpu_custom_call.1} parent=5 // pred_fallthru
      _
  $region6: #{tpu_custom_call.1} parent=0 // loop_footer
    %s15 = sadd.s32 1, %s11
  $region7: #{tpu_custom_call.1} parent=0 // loop_footer_branch
    %10 = sbr.rel target = $region3
  $region8: #{tpu_custom_call.1} parent=0 // loop_exit
    _

// kernel: tpu_custom_call.1
$region0: #{tpu_custom_call.1}
  #allocation0 [shape = 'u32[]', space=smem, size = 0x4, offset = 0x4, fixed_abs, tag = 'smem constant byte address 0x4 - core index']
  #allocation1 [shape = 'u32[144,128]{1,0:T(1,128)}', space=vmem, size = 0x12000, scoped, tag = 'internal scratch']
  %s0 = inlined_call_operand.vmem [shape: bf16[512,4], index: 0, kind: input, shape index: {}]
  %s1 = inlined_call_operand.vmem [shape: bf16[512,12], index: 1, kind: input, shape index: {}]
  %s2 = inlined_call_operand.vmem [shape: bf16[2,16,16], index: 2, kind: input, shape index: {}]
  %s3 = inlined_call_operand.vmem [shape: bf16[80,16], index: 3, kind: input, shape index: {}]
  %s4 = inlined_call_operand.vmem [shape: f32[1,16], index: 4, kind: input, shape index: {}]
  %s5 = inlined_call_operand.vmem [shape: f32[512,16], index: 5, kind: output, shape index: {}]
  %s6 = sld [smem:[#allocation0]]
  $region53: #{tpu_custom_call.1} parent=0
    _
  %s8 = ssub.s32 1, %s6
  %s9 = scalar_select 0, %s8, %s6
  loop: start=0, step=1, limit=6
  $region2: #{tpu_custom_call.1} parent=0 // loop_pre_header
    _
  $region3: #{tpu_custom_call.1} parent=0 // loop_header
    %s11 = sphi 0, %s15
    %p12 = scmp.ge.s32.totalorder %s11, 6
    %s21 = sphi 0, %s23
    %s24 = sphi 0, %s21
    %s25 = sphi 0, %s24
    %s41 = sphi 0, %s25
    %s47 = sphi 0, %s49
    %s50 = sphi 0, %s47
    %s51 = sphi 0, %s50
    %s67 = sphi 0, %s51
    %s71 = sphi 0, %s71
    %s73 = sphi 0, %s71
    %s74 = sphi 0, %s73
    %s88 = sphi 0, %s74
    %s92 = sphi 0, %s92
    %s94 = sphi 0, %s92
    %s95 = sphi 0, %s94
    %s109 = sphi 0, %s95
    %s113 = sphi 0, %s113
    %s115 = sphi 0, %s113
    %s116 = sphi 0, %s115
    %s130 = sphi 0, %s116
    %s136 = sphi 0, %s138
    %s139 = sphi 0, %s136
    %s140 = sphi 0, %s139
    %s156 = sphi 0, %s140
  $region4: #{tpu_custom_call.1} parent=0 // loop_header_branch
    %14 = sbr.rel (%p12) target = $region8
  $region5: #{tpu_custom_call.1} parent=0 // loop_body
    %s16 = ssub.s32 %s11, 1
    %s17 = ssub.s32 %s11, 2
    %s18 = sadd.s32 %s11, 1
    %s19 = ssub.s32 %s11, %s18
    %p20 = scmp.eq.s32.totalorder %s19, 0
    %s22 = sadd.s32 %s21, 1
    %s23 = scalar_select %p20, %s21, %s22
    %p26 = pneg %p20
    %p27 = scmp.eq.s32.totalorder %s11, 3
    %p28 = por %p26, %p27
    %p29 = scmp.ne.s32.totalorder %s21, %s24
    %p30 = scmp.eq.s32.totalorder %s11, 0
    %p31 = por %p29, %p30
    %p32 = scmp.ne.s32.totalorder %s21, %s24
    %p33 = scmp.eq.s32.totalorder %s16, 3
    %p34 = por %p32, %p33
    %p35 = scmp.ne.s32.totalorder %s24, %s25
    %p36 = scmp.eq.s32.totalorder %s16, 0
    %p37 = por %p35, %p36
    %p38 = scmp.ne.s32.totalorder %s24, %s25
    %p39 = scmp.eq.s32.totalorder %s17, 3
    %p40 = por %p38, %p39
    %p42 = scmp.ne.s32.totalorder %s25, %s41
    %p43 = scmp.eq.s32.totalorder %s17, 0
    %p44 = por %p42, %p43
    %s45 = ssub.s32 %s11, %s18
    %p46 = scmp.eq.s32.totalorder %s45, 0
    %s48 = sadd.s32 %s47, 1
    %s49 = scalar_select %p46, %s47, %s48
    %p52 = pneg %p46
    %p53 = scmp.eq.s32.totalorder %s11, 3
    %p54 = por %p52, %p53
    %p55 = scmp.ne.s32.totalorder %s47, %s50
    %p56 = scmp.eq.s32.totalorder %s11, 0
    %p57 = por %p55, %p56
    %p58 = scmp.ne.s32.totalorder %s47, %s50
    %p59 = scmp.eq.s32.totalorder %s16, 3
    %p60 = por %p58, %p59
    %p61 = scmp.ne.s32.totalorder %s50, %s51
    %p62 = scmp.eq.s32.totalorder %s16, 0
    %p63 = por %p61, %p62
    %p64 = scmp.ne.s32.totalorder %s50, %s51
    %p65 = scmp.eq.s32.totalorder %s17, 3
    %p66 = por %p64, %p65
    %p68 = scmp.ne.s32.totalorder %s51, %s67
    %p69 = scmp.eq.s32.totalorder %s17, 0
    %p70 = por %p68, %p69
    %s72 = sadd.s32 %s71, 1
    %p75 = scmp.eq.s32.totalorder %s11, 3
    %p76 = scmp.ne.s32.totalorder %s71, %s73
    %p77 = scmp.eq.s32.totalorder %s11, 0
    %p78 = por %p76, %p77
    %p79 = scmp.ne.s32.totalorder %s71, %s73
    %p80 = scmp.eq.s32.totalorder %s16, 3
    %p81 = por %p79, %p80
    %p82 = scmp.ne.s32.totalorder %s73, %s74
    %p83 = scmp.eq.s32.totalorder %s16, 0
    %p84 = por %p82, %p83
    %p85 = scmp.ne.s32.totalorder %s73, %s74
    %p86 = scmp.eq.s32.totalorder %s17, 3
    %p87 = por %p85, %p86
    %p89 = scmp.ne.s32.totalorder %s74, %s88
    %p90 = scmp.eq.s32.totalorder %s17, 0
    %p91 = por %p89, %p90
    %s93 = sadd.s32 %s92, 1
    %p96 = scmp.eq.s32.totalorder %s11, 3
    %p97 = scmp.ne.s32.totalorder %s92, %s94
    %p98 = scmp.eq.s32.totalorder %s11, 0
    %p99 = por %p97, %p98
    %p100 = scmp.ne.s32.totalorder %s92, %s94
    %p101 = scmp.eq.s32.totalorder %s16, 3
    %p102 = por %p100, %p101
    %p103 = scmp.ne.s32.totalorder %s94, %s95
    %p104 = scmp.eq.s32.totalorder %s16, 0
    %p105 = por %p103, %p104
    %p106 = scmp.ne.s32.totalorder %s94, %s95
    %p107 = scmp.eq.s32.totalorder %s17, 3
    %p108 = por %p106, %p107
    %p110 = scmp.ne.s32.totalorder %s95, %s109
    %p111 = scmp.eq.s32.totalorder %s17, 0
    %p112 = por %p110, %p111
    %s114 = sadd.s32 %s113, 1
    %p117 = scmp.eq.s32.totalorder %s11, 3
    %p118 = scmp.ne.s32.totalorder %s113, %s115
    %p119 = scmp.eq.s32.totalorder %s11, 0
    %p120 = por %p118, %p119
    %p121 = scmp.ne.s32.totalorder %s113, %s115
    %p122 = scmp.eq.s32.totalorder %s16, 3
    %p123 = por %p121, %p122
    %p124 = scmp.ne.s32.totalorder %s115, %s116
    %p125 = scmp.eq.s32.totalorder %s16, 0
    %p126 = por %p124, %p125
    %p127 = scmp.ne.s32.totalorder %s115, %s116
    %p128 = scmp.eq.s32.totalorder %s17, 3
    %p129 = por %p127, %p128
    %p131 = scmp.ne.s32.totalorder %s116, %s130
    %p132 = scmp.eq.s32.totalorder %s17, 0
    %p133 = por %p131, %p132
    %s134 = ssub.s32 %s11, %s18
    %p135 = scmp.eq.s32.totalorder %s134, 0
    %s137 = sadd.s32 %s136, 1
    %s138 = scalar_select %p135, %s136, %s137
    %p141 = pneg %p135
    %p142 = scmp.eq.s32.totalorder %s11, 3
    %p143 = por %p141, %p142
    %p144 = scmp.ne.s32.totalorder %s136, %s139
    %p145 = scmp.eq.s32.totalorder %s11, 0
    %p146 = por %p144, %p145
    %p147 = scmp.ne.s32.totalorder %s136, %s139
    %p148 = scmp.eq.s32.totalorder %s16, 3
    %p149 = por %p147, %p148
    %p150 = scmp.ne.s32.totalorder %s139, %s140
    %p151 = scmp.eq.s32.totalorder %s16, 0
    %p152 = por %p150, %p151
    %p153 = scmp.ne.s32.totalorder %s139, %s140
    %p154 = scmp.eq.s32.totalorder %s17, 3
    %p155 = por %p153, %p154
    %p157 = scmp.ne.s32.totalorder %s140, %s156
    %p158 = scmp.eq.s32.totalorder %s17, 0
    %p159 = por %p157, %p158
    %p160 = scmp.le.s32.totalorder 1, %s11
    %p161 = scmp.lt.s32.totalorder %s11, 5
    %p162 = pnand %p160, %p161
    %p163 = pneg %p162
    // Predicated region
    $region9: #{tpu_custom_call.1} parent=5 // pred_check
      _
    $region10: #{tpu_custom_call.1} parent=5 // pred_check_branch
      %165 = sbr.rel (%p162) target = $region12
    $region11: #{tpu_custom_call.1} parent=5 // pred_region
      %s166 = ssub.s32 %s11, 1
      // Predicated region
      $region13: #{tpu_custom_call.1} parent=11 // pred_check
        %p167 = pneg %p84
      $region14: #{tpu_custom_call.1} parent=11 // pred_check_branch
        %169 = sbr.rel (%p167) target = $region16
      $region15: #{tpu_custom_call.1} parent=11 // pred_region
        _
      $region16: #{tpu_custom_call.1} parent=11 // pred_fallthru
        _
      // Predicated region
      $region17: #{tpu_custom_call.1} parent=11 // pred_check
        %p170 = pneg %p105
      $region18: #{tpu_custom_call.1} parent=11 // pred_check_branch
        %172 = sbr.rel (%p170) target = $region20
      $region19: #{tpu_custom_call.1} parent=11 // pred_region
        _
      $region20: #{tpu_custom_call.1} parent=11 // pred_fallthru
        _
      // Predicated region
      $region21: #{tpu_custom_call.1} parent=11 // pred_check
        %p173 = pneg %p126
      $region22: #{tpu_custom_call.1} parent=11 // pred_check_branch
        %175 = sbr.rel (%p173) target = $region24
      $region23: #{tpu_custom_call.1} parent=11 // pred_region
        _
      $region24: #{tpu_custom_call.1} parent=11 // pred_fallthru
        _
    $region12: #{tpu_custom_call.1} parent=5 // pred_fallthru
      _
    %p176 = scmp.lt.s32.totalorder %s11, 4
    // Predicated region
    $region25: #{tpu_custom_call.1} parent=5 // pred_check
      %p177 = pneg %p176
    $region26: #{tpu_custom_call.1} parent=5 // pred_check_branch
      %179 = sbr.rel (%p177) target = $region28
    $region27: #{tpu_custom_call.1} parent=5 // pred_region
      // Predicated region
      $region29: #{tpu_custom_call.1} parent=27 // pred_check
        %p180 = pneg %p31
      $region30: #{tpu_custom_call.1} parent=27 // pred_check_branch
        %182 = sbr.rel (%p180) target = $region32
      $region31: #{tpu_custom_call.1} parent=27 // pred_region
        %s183 = smul.u32 16, %s11
        %p184 = scmp.lt.s32.totalorder %s183, 63
        %s185 = scalar_select %p184, %s183, 63
        %s186 = smul.addr %s185, 4
        %s187 = scalar_lea.vmem %s0, %s186
        %s188 = smul.u32 16, %s11
      $region32: #{tpu_custom_call.1} parent=27 // pred_fallthru
        _
      // Predicated region
      $region33: #{tpu_custom_call.1} parent=27 // pred_check
        %p189 = pneg %p57
      $region34: #{tpu_custom_call.1} parent=27 // pred_check_branch
        %191 = sbr.rel (%p189) target = $region36
      $region35: #{tpu_custom_call.1} parent=27 // pred_region
        %s192 = smul.u32 16, %s11
        %p193 = scmp.lt.s32.totalorder %s192, 63
        %s194 = scalar_select %p193, %s192, 63
        %s195 = smul.addr %s194, 4
        %s196 = scalar_lea.vmem %s1, %s195
        %s197 = smul.u32 16, %s11
      $region36: #{tpu_custom_call.1} parent=27 // pred_fallthru
        _
    $region28: #{tpu_custom_call.1} parent=5 // pred_fallthru
      _
    %p198 = scmp.le.s32.totalorder 1, %s11
    %p199 = scmp.lt.s32.totalorder %s11, 5
    %p200 = pnand %p198, %p199
    %p201 = pneg %p200
    // Predicated region
    $region37: #{tpu_custom_call.1} parent=5 // pred_check
      _
    $region38: #{tpu_custom_call.1} parent=5 // pred_check_branch
      %203 = sbr.rel (%p200) target = $region40
    $region39: #{tpu_custom_call.1} parent=5 // pred_region
      %s204 = ssub.s32 %s11, 1
      %s205 = smul.u32 16, %s16
      %p206 = scmp.lt.s32.totalorder %s205, 63
      %s207 = scalar_select %p206, %s205, 63
      %s208 = smul.addr %s207, 4
      %s209 = scalar_lea.vmem %s0, %s208
      %p210 = pneg %p37
      %p211 = pneg %p34
      %s212 = smul.u32 16, %s16
      %p213 = scmp.lt.s32.totalorder %s212, 63
      %s214 = scalar_select %p213, %s212, 63
      %s215 = smul.addr %s214, 4
      %s216 = scalar_lea.vmem %s1, %s215
      %p217 = pneg %p63
      %p218 = pneg %p60
      %p219 = pneg %p84
      %p220 = pneg %p81
      %p221 = pneg %p105
      %p222 = pneg %p102
      %p223 = pneg %p126
      %p224 = pneg %p123
      %p225 = pneg %p152
      %p226 = pneg %p149
      %s227 = smul.u32 16, %s16
      %p228 = scmp.lt.s32.totalorder %s227, 63
      %s229 = scalar_select %p228, %s227, 63
      %s230 = smul.addr %s229, 8
      %s231 = scalar_lea.vmem %s5, %s230
      %s232 = smul.u32 16, %s16
      %p233 = scmp.lt.s32.totalorder %s232, 63
      %s234 = scalar_select %p233, %s232, 63
      %s235 = smul.addr %s234, 4
      %s236 = scalar_lea.vmem %s0, %s235
      %s237 = smul.u32 16, %s16
      %s238 = smul.u32 16, %s16
      %p239 = scmp.lt.s32.totalorder %s238, 63
      %s240 = scalar_select %p239, %s238, 63
      %s241 = smul.addr %s240, 4
      %s242 = scalar_lea.vmem %s1, %s241
      %s243 = smul.u32 16, %s16
      %s244 = smul.u32 16, %s16
      %p245 = scmp.lt.s32.totalorder %s244, 63
      %s246 = scalar_select %p245, %s244, 63
      %s247 = smul.addr %s246, 8
      %s248 = scalar_lea.vmem %s5, %s247
      %s249 = smul.u32 16, %s16
      %v251 = vld [vmem:[%s236] sm:$0xf]
      %v252 = vld [vmem:[%s236 + $0x4] sm:$0xf]
      %v253 = vld [vmem:[%s236 + $0x8] sm:$0xf]
      %v254 = vld [vmem:[%s236 + $0xc] sm:$0xf]
      %v255 = vld [vmem:[%s236 + $0x10] sm:$0xf]
      %v256 = vld [vmem:[%s236 + $0x14] sm:$0xf]
      %v257 = vld [vmem:[%s236 + $0x18] sm:$0xf]
      %v258 = vld [vmem:[%s236 + $0x1c] sm:$0xf]
      %v259 = vld [vmem:[%s236 + $0x20] sm:$0xf]
      %v260 = vld [vmem:[%s236 + $0x24] sm:$0xf]
      %v261 = vld [vmem:[%s236 + $0x28] sm:$0xf]
      %v262 = vld [vmem:[%s236 + $0x2c] sm:$0xf]
      %v263 = vld [vmem:[%s236 + $0x30] sm:$0xf]
      %v264 = vld [vmem:[%s236 + $0x34] sm:$0xf]
      %v265 = vld [vmem:[%s236 + $0x38] sm:$0xf]
      %v266 = vld [vmem:[%s236 + $0x3c] sm:$0xf]
      %v267 = vunpack.c.l.bf16 %v251
      %v268 = vunpack.c.l.bf16 %v252
      %v269 = vunpack.c.l.bf16 %v253
      %v270 = vunpack.c.l.bf16 %v254
      %v271 = vunpack.c.l.bf16 %v255
      %v272 = vunpack.c.l.bf16 %v256
      %v273 = vunpack.c.l.bf16 %v257
      %v274 = vunpack.c.l.bf16 %v258
      %v275 = vunpack.c.l.bf16 %v259
      %v276 = vunpack.c.l.bf16 %v260
      %v277 = vunpack.c.l.bf16 %v261
      %v278 = vunpack.c.l.bf16 %v262
      %v279 = vunpack.c.l.bf16 %v263
      %v280 = vunpack.c.l.bf16 %v264
      %v281 = vunpack.c.l.bf16 %v265
      %v282 = vunpack.c.l.bf16 %v266
      %v283 = vld [vmem:[%s242] sm:$0xf]
      %v284 = vld [vmem:[%s242 + $0x4] sm:$0xf]
      %v285 = vld [vmem:[%s242 + $0x8] sm:$0xf]
      %v286 = vld [vmem:[%s242 + $0xc] sm:$0xf]
      %v287 = vld [vmem:[%s242 + $0x10] sm:$0xf]
      %v288 = vld [vmem:[%s242 + $0x14] sm:$0xf]
      %v289 = vld [vmem:[%s242 + $0x18] sm:$0xf]
      %v290 = vld [vmem:[%s242 + $0x1c] sm:$0xf]
      %v291 = vld [vmem:[%s242 + $0x20] sm:$0xf]
      %v292 = vld [vmem:[%s242 + $0x24] sm:$0xf]
      %v293 = vld [vmem:[%s242 + $0x28] sm:$0xf]
      %v294 = vld [vmem:[%s242 + $0x2c] sm:$0xf]
      %v295 = vld [vmem:[%s242 + $0x30] sm:$0xf]
      %v296 = vld [vmem:[%s242 + $0x34] sm:$0xf]
      %v297 = vld [vmem:[%s242 + $0x38] sm:$0xf]
      %v298 = vld [vmem:[%s242 + $0x3c] sm:$0xf]
      %v299 = vunpack.c.l.bf16 %v283
      %v300 = vunpack.c.l.bf16 %v284
      %v301 = vunpack.c.l.bf16 %v285
      %v302 = vunpack.c.l.bf16 %v286
      %v303 = vunpack.c.l.bf16 %v287
      %v304 = vunpack.c.l.bf16 %v288
      %v305 = vunpack.c.l.bf16 %v289
      %v306 = vunpack.c.l.bf16 %v290
      %v307 = vunpack.c.l.bf16 %v291
      %v308 = vunpack.c.l.bf16 %v292
      %v309 = vunpack.c.l.bf16 %v293
      %v310 = vunpack.c.l.bf16 %v294
      %v311 = vunpack.c.l.bf16 %v295
      %v312 = vunpack.c.l.bf16 %v296
      %v313 = vunpack.c.l.bf16 %v297
      %v314 = vunpack.c.l.bf16 %v298
      %317 = vrot.lane.b32.xlu0 %v299, 4
      %v318 = vpop.permute.xlu0 %317
      %319 = vrot.lane.b32.xlu0 %v300, 4
      %v320 = vpop.permute.xlu0 %319
      %325 = vrot.lane.b32.xlu0 %v269, 16
      %v326 = vpop.permute.xlu0 %325
      %327 = vrot.lane.b32.xlu0 %v270, 16
      %v328 = vpop.permute.xlu0 %327
      %333 = vrot.lane.b32.xlu0 %v301, 20
      %v334 = vpop.permute.xlu0 %333
      %335 = vrot.lane.b32.xlu0 %v302, 20
      %v336 = vpop.permute.xlu0 %335
      %341 = vrot.lane.b32.xlu0 %v271, 32
      %v342 = vpop.permute.xlu0 %341
      %343 = vrot.lane.b32.xlu0 %v272, 32
      %v344 = vpop.permute.xlu0 %343
      %349 = vrot.lane.b32.xlu0 %v303, 36
      %v350 = vpop.permute.xlu0 %349
      %351 = vrot.lane.b32.xlu0 %v304, 36
      %v352 = vpop.permute.xlu0 %351
      %357 = vrot.lane.b32.xlu0 %v273, 48
      %v358 = vpop.permute.xlu0 %357
      %359 = vrot.lane.b32.xlu0 %v274, 48
      %v360 = vpop.permute.xlu0 %359
      %365 = vrot.lane.b32.xlu0 %v305, 52
      %v366 = vpop.permute.xlu0 %365
      %367 = vrot.lane.b32.xlu0 %v306, 52
      %v368 = vpop.permute.xlu0 %367
      %373 = vrot.lane.b32.xlu0 %v275, 64
      %v374 = vpop.permute.xlu0 %373
      %375 = vrot.lane.b32.xlu0 %v276, 64
      %v376 = vpop.permute.xlu0 %375
      %381 = vrot.lane.b32.xlu0 %v307, 68
      %v382 = vpop.permute.xlu0 %381
      %383 = vrot.lane.b32.xlu0 %v308, 68
      %v384 = vpop.permute.xlu0 %383
      %389 = vrot.lane.b32.xlu0 %v277, 80
      %v390 = vpop.permute.xlu0 %389
      %391 = vrot.lane.b32.xlu0 %v278, 80
      %v392 = vpop.permute.xlu0 %391
      %397 = vrot.lane.b32.xlu0 %v309, 84
      %v398 = vpop.permute.xlu0 %397
      %399 = vrot.lane.b32.xlu0 %v310, 84
      %v400 = vpop.permute.xlu0 %399
      %405 = vrot.lane.b32.xlu0 %v279, 96
      %v406 = vpop.permute.xlu0 %405
      %407 = vrot.lane.b32.xlu0 %v280, 96
      %v408 = vpop.permute.xlu0 %407
      %413 = vrot.lane.b32.xlu0 %v311, 100
      %v414 = vpop.permute.xlu0 %413
      %415 = vrot.lane.b32.xlu0 %v312, 100
      %v416 = vpop.permute.xlu0 %415
      %421 = vrot.lane.b32.xlu0 %v281, 112
      %v422 = vpop.permute.xlu0 %421
      %423 = vrot.lane.b32.xlu0 %v282, 112
      %v424 = vpop.permute.xlu0 %423
      %429 = vrot.lane.b32.xlu0 %v313, 116
      %v430 = vpop.permute.xlu0 %429
      %431 = vrot.lane.b32.xlu0 %v314, 116
      %v432 = vpop.permute.xlu0 %431
      %vm435 = vcmask 31744
      %v436 = vsel %vm435, %v267, %v318
      %v437 = vsel %vm435, %v268, %v320
      %vm438 = vcmask 130048
      %v439 = vsel %vm438, %v436, %v326
      %v440 = vsel %vm438, %v437, %v328
      %vm441 = vcmask 162816
      %v442 = vsel %vm441, %v439, %v334
      %v443 = vsel %vm441, %v440, %v336
      %vm444 = vcmask 261120
      %v445 = vsel %vm444, %v442, %v342
      %v446 = vsel %vm444, %v443, %v344
      %vm447 = vcmask 293888
      %v448 = vsel %vm447, %v445, %v350
      %v449 = vsel %vm447, %v446, %v352
      %vm450 = vcmask 392192
      %v451 = vsel %vm450, %v448, %v358
      %v452 = vsel %vm450, %v449, %v360
      %vm453 = vcmask 424960
      %v454 = vsel %vm453, %v451, %v366
      %v455 = vsel %vm453, %v452, %v368
      %vm456 = vcmask 523264
      %v457 = vsel %vm456, %v454, %v374
      %v458 = vsel %vm456, %v455, %v376
      %vm459 = vcmask 556032
      %v460 = vsel %vm459, %v457, %v382
      %v461 = vsel %vm459, %v458, %v384
      %vm462 = vcmask 654336
      %v463 = vsel %vm462, %v460, %v390
      %v464 = vsel %vm462, %v461, %v392
      %vm465 = vcmask 687104
      %v466 = vsel %vm465, %v463, %v398
      %v467 = vsel %vm465, %v464, %v400
      %vm468 = vcmask 785408
      %v469 = vsel %vm468, %v466, %v406
      %v470 = vsel %vm468, %v467, %v408
      %vm471 = vcmask 818176
      %v472 = vsel %vm471, %v469, %v414
      %v473 = vsel %vm471, %v470, %v416
      %vm474 = vcmask 916480
      %v475 = vsel %vm474, %v472, %v422
      %v476 = vsel %vm474, %v473, %v424
      %vm477 = vcmask 949248
      %v478 = vsel %vm477, %v475, %v430
      %v479 = vsel %vm477, %v476, %v432
      %v480 = vld [vmem:[%s2] sm:$0xf]
      %v481 = vld [vmem:[%s2 + $0x4] sm:$0xf]
      %v482 = vpack.c.bf16 %v479, %v478
      %v485 = vunpack.c.l.b16 %v480
      %v486 = vunpack.c.l.b16 %v481
      %v487 = vpack.c.b16 %v486, %v485
      %v489 = vsel %vm438, %v487, 0
      %491 = vmatprep.subr.bf16.mxu0 0
      %492 = vmatpush1.bf16.msra.mxu0 %v482
      %493 = vmatprep.subr.bf16.mxu0 0
      %494 = vmatpush1.bf16.msra.mxu0 0
      %495 = vmatprep.subr.bf16.mxu0 0
      %496 = vmatpush1.bf16.msra.mxu0 0
      %497 = vmatprep.subr.bf16.mxu0 0
      %498 = vmatpush1.bf16.msra.mxu0 0
      %499 = vmatprep.subr.bf16.mxu0 0
      %500 = vmatpush1.bf16.msra.mxu0 0
      %501 = vmatprep.subr.bf16.mxu0 0
      %502 = vmatpush1.bf16.msra.mxu0 0
      %503 = vmatprep.subr.bf16.mxu0 0
      %504 = vmatpush1.bf16.msra.mxu0 0
      %505 = vmatprep.subr.bf16.mxu0 0
      %506 = vmatpush1.bf16.msra.mxu0 0
      %507 = vmatprep.subr.bf16.mxu0 0
      %508 = vmatpush1.bf16.msra.mxu0 0
      %509 = vmatprep.subr.bf16.mxu0 0
      %510 = vmatpush1.bf16.msra.mxu0 0
      %511 = vmatprep.subr.bf16.mxu0 0
      %512 = vmatpush1.bf16.msra.mxu0 0
      %513 = vmatprep.subr.bf16.mxu0 0
      %514 = vmatpush1.bf16.msra.mxu0 0
      %515 = vmatprep.subr.bf16.mxu0 0
      %516 = vmatpush1.bf16.msra.mxu0 0
      %517 = vmatprep.subr.bf16.mxu0 0
      %518 = vmatpush1.bf16.msra.mxu0 0
      %519 = vmatprep.subr.bf16.mxu0 0
      %520 = vmatpush1.bf16.msra.mxu0 0
      %521 = vmatprep.subr.bf16.mxu0 0
      %522 = vmatpush1.bf16.msra.mxu0 0
      %523 = vmatprep.mubr.bf16.mxu0 0
      %524 = vmatmul.mubr.bf16.gmra.mrb[0].mxu0 %v489
      %v525 = vpop.f32.mrb[0].mxu0
      %v526 = vadd.f32 0.0, %v525
      %v527 = vpop.f32.mrb[0].mxu0
      %v528 = vpop.f32.mrb[0].mxu0
      %v529 = vadd.f32 0.0, %v528
      %v530 = vpop.f32.mrb[0].mxu0
      %531 = vdwg.mxu0
      %v532 = vpack.c.bf16 %v529, %v526
      %533 = vmatprep.subr.bf16.mxu0 0
      %534 = vmatpush1.bf16.msra.mxu0 %v532
      %535 = vmatprep.subr.bf16.mxu0 0
      %536 = vmatpush1.bf16.msra.mxu0 0
      %537 = vmatprep.subr.bf16.mxu0 0
      %538 = vmatpush1.bf16.msra.mxu0 0
      %539 = vmatprep.subr.bf16.mxu0 0
      %540 = vmatpush1.bf16.msra.mxu0 0
      %541 = vmatprep.subr.bf16.mxu0 0
      %542 = vmatpush1.bf16.msra.mxu0 0
      %543 = vmatprep.subr.bf16.mxu0 0
      %544 = vmatpush1.bf16.msra.mxu0 0
      %545 = vmatprep.subr.bf16.mxu0 0
      %546 = vmatpush1.bf16.msra.mxu0 0
      %547 = vmatprep.subr.bf16.mxu0 0
      %548 = vmatpush1.bf16.msra.mxu0 0
      %549 = vmatprep.subr.bf16.mxu0 0
      %550 = vmatpush1.bf16.msra.mxu0 0
      %551 = vmatprep.subr.bf16.mxu0 0
      %552 = vmatpush1.bf16.msra.mxu0 0
      %553 = vmatprep.subr.bf16.mxu0 0
      %554 = vmatpush1.bf16.msra.mxu0 0
      %555 = vmatprep.subr.bf16.mxu0 0
      %556 = vmatpush1.bf16.msra.mxu0 0
      %557 = vmatprep.subr.bf16.mxu0 0
      %558 = vmatpush1.bf16.msra.mxu0 0
      %559 = vmatprep.subr.bf16.mxu0 0
      %560 = vmatpush1.bf16.msra.mxu0 0
      %561 = vmatprep.subr.bf16.mxu0 0
      %562 = vmatpush1.bf16.msra.mxu0 0
      %563 = vmatprep.subr.bf16.mxu0 0
      %564 = vmatpush1.bf16.msra.mxu0 0
      %565 = vmatprep.mubr.bf16.mxu0 0
      %566 = vmatmul.mubr.bf16.gmra.mrb[0].mxu0 %v489
      %v567 = vpop.f32.mrb[0].mxu0
      %v568 = vadd.f32 0.0, %v567
      %v569 = vpop.f32.mrb[0].mxu0
      %v570 = vpop.f32.mrb[0].mxu0
      %v571 = vadd.f32 0.0, %v570
      %v572 = vpop.f32.mrb[0].mxu0
      %573 = vdwg.mxu0
      %v574 = vmul.f32 %v568, 2.0
      %v575 = vmul.f32 %v571, 2.0
      %v576 = vsub.f32 %v574, %v478
      %v577 = vsub.f32 %v575, %v479
      %s578 = scalar_lea.vmem %s2, 8
      %v579 = vld [vmem:[%s578] sm:$0xf]
      %v580 = vld [vmem:[%s578 + $0x4] sm:$0xf]
      %v583 = vunpack.c.l.b16 %v579
      %v584 = vunpack.c.l.b16 %v580
      %v585 = vpack.c.b16 %v584, %v583
      %v587 = vsel %vm438, %v585, 0
      %589 = vmatprep.subr.bf16.mxu0 0
      %590 = vmatpush1.bf16.msra.mxu0 %v532
      %591 = vmatprep.subr.bf16.mxu0 0
      %592 = vmatpush1.bf16.msra.mxu0 0
      %593 = vmatprep.subr.bf16.mxu0 0
      %594 = vmatpush1.bf16.msra.mxu0 0
      %595 = vmatprep.subr.bf16.mxu0 0
      %596 = vmatpush1.bf16.msra.mxu0 0
      %597 = vmatprep.subr.bf16.mxu0 0
      %598 = vmatpush1.bf16.msra.mxu0 0
      %599 = vmatprep.subr.bf16.mxu0 0
      %600 = vmatpush1.bf16.msra.mxu0 0
      %601 = vmatprep.subr.bf16.mxu0 0
      %602 = vmatpush1.bf16.msra.mxu0 0
      %603 = vmatprep.subr.bf16.mxu0 0
      %604 = vmatpush1.bf16.msra.mxu0 0
      %605 = vmatprep.subr.bf16.mxu0 0
      %606 = vmatpush1.bf16.msra.mxu0 0
      %607 = vmatprep.subr.bf16.mxu0 0
      %608 = vmatpush1.bf16.msra.mxu0 0
      %609 = vmatprep.subr.bf16.mxu0 0
      %610 = vmatpush1.bf16.msra.mxu0 0
      %611 = vmatprep.subr.bf16.mxu0 0
      %612 = vmatpush1.bf16.msra.mxu0 0
      %613 = vmatprep.subr.bf16.mxu0 0
      %614 = vmatpush1.bf16.msra.mxu0 0
      %615 = vmatprep.subr.bf16.mxu0 0
      %616 = vmatpush1.bf16.msra.mxu0 0
      %617 = vmatprep.subr.bf16.mxu0 0
      %618 = vmatpush1.bf16.msra.mxu0 0
      %619 = vmatprep.subr.bf16.mxu0 0
      %620 = vmatpush1.bf16.msra.mxu0 0
      %621 = vmatprep.mubr.bf16.mxu0 0
      %622 = vmatmul.mubr.bf16.gmra.mrb[0].mxu0 %v587
      %v623 = vpop.f32.mrb[0].mxu0
      %v624 = vadd.f32 0.0, %v623
      %v625 = vpop.f32.mrb[0].mxu0
      %v626 = vpop.f32.mrb[0].mxu0
      %v627 = vadd.f32 0.0, %v626
      %v628 = vpop.f32.mrb[0].mxu0
      %629 = vdwg.mxu0
      %v630 = vpack.c.bf16 %v627, %v624
      %631 = vmatprep.subr.bf16.mxu0 0
      %632 = vmatpush1.bf16.msra.mxu0 %v630
      %633 = vmatprep.subr.bf16.mxu0 0
      %634 = vmatpush1.bf16.msra.mxu0 0
      %635 = vmatprep.subr.bf16.mxu0 0
      %636 = vmatpush1.bf16.msra.mxu0 0
      %637 = vmatprep.subr.bf16.mxu0 0
      %638 = vmatpush1.bf16.msra.mxu0 0
      %639 = vmatprep.subr.bf16.mxu0 0
      %640 = vmatpush1.bf16.msra.mxu0 0
      %641 = vmatprep.subr.bf16.mxu0 0
      %642 = vmatpush1.bf16.msra.mxu0 0
      %643 = vmatprep.subr.bf16.mxu0 0
      %644 = vmatpush1.bf16.msra.mxu0 0
      %645 = vmatprep.subr.bf16.mxu0 0
      %646 = vmatpush1.bf16.msra.mxu0 0
      %647 = vmatprep.subr.bf16.mxu0 0
      %648 = vmatpush1.bf16.msra.mxu0 0
      %649 = vmatprep.subr.bf16.mxu0 0
      %650 = vmatpush1.bf16.msra.mxu0 0
      %651 = vmatprep.subr.bf16.mxu0 0
      %652 = vmatpush1.bf16.msra.mxu0 0
      %653 = vmatprep.subr.bf16.mxu0 0
      %654 = vmatpush1.bf16.msra.mxu0 0
      %655 = vmatprep.subr.bf16.mxu0 0
      %656 = vmatpush1.bf16.msra.mxu0 0
      %657 = vmatprep.subr.bf16.mxu0 0
      %658 = vmatpush1.bf16.msra.mxu0 0
      %659 = vmatprep.subr.bf16.mxu0 0
      %660 = vmatpush1.bf16.msra.mxu0 0
      %661 = vmatprep.subr.bf16.mxu0 0
      %662 = vmatpush1.bf16.msra.mxu0 0
      %663 = vmatprep.mubr.bf16.mxu0 0
      %664 = vmatmul.mubr.bf16.gmra.mrb[0].mxu0 %v587
      %v665 = vpop.f32.mrb[0].mxu0
      %v666 = vadd.f32 0.0, %v665
      %v667 = vpop.f32.mrb[0].mxu0
      %v668 = vpop.f32.mrb[0].mxu0
      %v669 = vadd.f32 0.0, %v668
      %v670 = vpop.f32.mrb[0].mxu0
      %671 = vdwg.mxu0
      %v672 = vmul.f32 %v666, 2.0
      %v673 = vmul.f32 %v669, 2.0
      %v674 = vsub.f32 %v672, %v526
      %v675 = vsub.f32 %v673, %v529
      %676 = vxpose.xlu0.b32.start [1/16] %v478, 128
      %677 = vxpose.xlu0.b32.cont [2/16] %v479, 128
      %678 = vxpose.xlu0.b32.cont [3/16] 0.0, 128
      %679 = vxpose.xlu0.b32.cont [4/16] 0.0, 128
      %680 = vxpose.xlu0.b32.cont [5/16] 0.0, 128
      %681 = vxpose.xlu0.b32.cont [6/16] 0.0, 128
      %682 = vxpose.xlu0.b32.cont [7/16] 0.0, 128
      %683 = vxpose.xlu0.b32.cont [8/16] 0.0, 128
      %684 = vxpose.xlu0.b32.cont [9/16] 0.0, 128
      %685 = vxpose.xlu0.b32.cont [10/16] 0.0, 128
      %686 = vxpose.xlu0.b32.cont [11/16] 0.0, 128
      %687 = vxpose.xlu0.b32.cont [12/16] 0.0, 128
      %688 = vxpose.xlu0.b32.cont [13/16] 0.0, 128
      %689 = vxpose.xlu0.b32.cont [14/16] 0.0, 128
      %690 = vxpose.xlu0.b32.cont [15/16] 0.0, 128
      %691 = vxpose.xlu0.b32.end [16/16] 0.0, 128
      %v692 = vpop.trf.xlu0
      %v693 = vpop.trf.xlu0
      %v694 = vpop.trf.xlu0
      %v695 = vpop.trf.xlu0
      %v696 = vpop.trf.xlu0
      %v697 = vpop.trf.xlu0
      %v698 = vpop.trf.xlu0
      %v699 = vpop.trf.xlu0
      %v700 = vpop.trf.xlu0
      %v701 = vpop.trf.xlu0
      %v702 = vpop.trf.xlu0
      %v703 = vpop.trf.xlu0
      %v704 = vpop.trf.xlu0
      %v705 = vpop.trf.xlu0
      %v706 = vpop.trf.xlu0
      %v707 = vpop.trf.xlu0
      %708 = vxpose.xlu0.b32.start [1/16] %v526, 128
      %709 = vxpose.xlu0.b32.cont [2/16] %v529, 128
      %710 = vxpose.xlu0.b32.cont [3/16] 0.0, 128
      %711 = vxpose.xlu0.b32.cont [4/16] 0.0, 128
      %712 = vxpose.xlu0.b32.cont [5/16] 0.0, 128
      %713 = vxpose.xlu0.b32.cont [6/16] 0.0, 128
      %714 = vxpose.xlu0.b32.cont [7/16] 0.0, 128
      %715 = vxpose.xlu0.b32.cont [8/16] 0.0, 128
      %716 = vxpose.xlu0.b32.cont [9/16] 0.0, 128
      %717 = vxpose.xlu0.b32.cont [10/16] 0.0, 128
      %718 = vxpose.xlu0.b32.cont [11/16] 0.0, 128
      %719 = vxpose.xlu0.b32.cont [12/16] 0.0, 128
      %720 = vxpose.xlu0.b32.cont [13/16] 0.0, 128
      %721 = vxpose.xlu0.b32.cont [14/16] 0.0, 128
      %722 = vxpose.xlu0.b32.cont [15/16] 0.0, 128
      %723 = vxpose.xlu0.b32.end [16/16] 0.0, 128
      %v724 = vpop.trf.xlu0
      %v725 = vpop.trf.xlu0
      %v726 = vpop.trf.xlu0
      %v727 = vpop.trf.xlu0
      %v728 = vpop.trf.xlu0
      %v729 = vpop.trf.xlu0
      %v730 = vpop.trf.xlu0
      %v731 = vpop.trf.xlu0
      %v732 = vpop.trf.xlu0
      %v733 = vpop.trf.xlu0
      %v734 = vpop.trf.xlu0
      %v735 = vpop.trf.xlu0
      %v736 = vpop.trf.xlu0
      %v737 = vpop.trf.xlu0
      %v738 = vpop.trf.xlu0
      %v739 = vpop.trf.xlu0
      %740 = vxpose.xlu0.b32.start [1/16] %v576, 128
      %741 = vxpose.xlu0.b32.cont [2/16] %v577, 128
      %742 = vxpose.xlu0.b32.cont [3/16] 0.0, 128
      %743 = vxpose.xlu0.b32.cont [4/16] 0.0, 128
      %744 = vxpose.xlu0.b32.cont [5/16] 0.0, 128
      %745 = vxpose.xlu0.b32.cont [6/16] 0.0, 128
      %746 = vxpose.xlu0.b32.cont [7/16] 0.0, 128
      %747 = vxpose.xlu0.b32.cont [8/16] 0.0, 128
      %748 = vxpose.xlu0.b32.cont [9/16] 0.0, 128
      %749 = vxpose.xlu0.b32.cont [10/16] 0.0, 128
      %750 = vxpose.xlu0.b32.cont [11/16] 0.0, 128
      %751 = vxpose.xlu0.b32.cont [12/16] 0.0, 128
      %752 = vxpose.xlu0.b32.cont [13/16] 0.0, 128
      %753 = vxpose.xlu0.b32.cont [14/16] 0.0, 128
      %754 = vxpose.xlu0.b32.cont [15/16] 0.0, 128
      %755 = vxpose.xlu0.b32.end [16/16] 0.0, 128
      %v756 = vpop.trf.xlu0
      %v757 = vpop.trf.xlu0
      %v758 = vpop.trf.xlu0
      %v759 = vpop.trf.xlu0
      %v760 = vpop.trf.xlu0
      %v761 = vpop.trf.xlu0
      %v762 = vpop.trf.xlu0
      %v763 = vpop.trf.xlu0
      %v764 = vpop.trf.xlu0
      %v765 = vpop.trf.xlu0
      %v766 = vpop.trf.xlu0
      %v767 = vpop.trf.xlu0
      %v768 = vpop.trf.xlu0
      %v769 = vpop.trf.xlu0
      %v770 = vpop.trf.xlu0
      %v771 = vpop.trf.xlu0
      %772 = vxpose.xlu0.b32.start [1/16] %v624, 128
      %773 = vxpose.xlu0.b32.cont [2/16] %v627, 128
      %774 = vxpose.xlu0.b32.cont [3/16] 0.0, 128
      %775 = vxpose.xlu0.b32.cont [4/16] 0.0, 128
      %776 = vxpose.xlu0.b32.cont [5/16] 0.0, 128
      %777 = vxpose.xlu0.b32.cont [6/16] 0.0, 128
      %778 = vxpose.xlu0.b32.cont [7/16] 0.0, 128
      %779 = vxpose.xlu0.b32.cont [8/16] 0.0, 128
      %780 = vxpose.xlu0.b32.cont [9/16] 0.0, 128
      %781 = vxpose.xlu0.b32.cont [10/16] 0.0, 128
      %782 = vxpose.xlu0.b32.cont [11/16] 0.0, 128
      %783 = vxpose.xlu0.b32.cont [12/16] 0.0, 128
      %784 = vxpose.xlu0.b32.cont [13/16] 0.0, 128
      %785 = vxpose.xlu0.b32.cont [14/16] 0.0, 128
      %786 = vxpose.xlu0.b32.cont [15/16] 0.0, 128
      %787 = vxpose.xlu0.b32.end [16/16] 0.0, 128
      %v788 = vpop.trf.xlu0
      %v789 = vpop.trf.xlu0
      %v790 = vpop.trf.xlu0
      %v791 = vpop.trf.xlu0
      %v792 = vpop.trf.xlu0
      %v793 = vpop.trf.xlu0
      %v794 = vpop.trf.xlu0
      %v795 = vpop.trf.xlu0
      %v796 = vpop.trf.xlu0
      %v797 = vpop.trf.xlu0
      %v798 = vpop.trf.xlu0
      %v799 = vpop.trf.xlu0
      %v800 = vpop.trf.xlu0
      %v801 = vpop.trf.xlu0
      %v802 = vpop.trf.xlu0
      %v803 = vpop.trf.xlu0
      %804 = vxpose.xlu0.b32.start [1/16] %v674, 128
      %805 = vxpose.xlu0.b32.cont [2/16] %v675, 128
      %806 = vxpose.xlu0.b32.cont [3/16] 0.0, 128
      %807 = vxpose.xlu0.b32.cont [4/16] 0.0, 128
      %808 = vxpose.xlu0.b32.cont [5/16] 0.0, 128
      %809 = vxpose.xlu0.b32.cont [6/16] 0.0, 128
      %810 = vxpose.xlu0.b32.cont [7/16] 0.0, 128
      %811 = vxpose.xlu0.b32.cont [8/16] 0.0, 128
      %812 = vxpose.xlu0.b32.cont [9/16] 0.0, 128
      %813 = vxpose.xlu0.b32.cont [10/16] 0.0, 128
      %814 = vxpose.xlu0.b32.cont [11/16] 0.0, 128
      %815 = vxpose.xlu0.b32.cont [12/16] 0.0, 128
      %816 = vxpose.xlu0.b32.cont [13/16] 0.0, 128
      %817 = vxpose.xlu0.b32.cont [14/16] 0.0, 128
      %818 = vxpose.xlu0.b32.cont [15/16] 0.0, 128
      %819 = vxpose.xlu0.b32.end [16/16] 0.0, 128
      %v820 = vpop.trf.xlu0
      %v821 = vpop.trf.xlu0
      %v822 = vpop.trf.xlu0
      %v823 = vpop.trf.xlu0
      %v824 = vpop.trf.xlu0
      %v825 = vpop.trf.xlu0
      %v826 = vpop.trf.xlu0
      %v827 = vpop.trf.xlu0
      %v828 = vpop.trf.xlu0
      %v829 = vpop.trf.xlu0
      %v830 = vpop.trf.xlu0
      %v831 = vpop.trf.xlu0
      %v832 = vpop.trf.xlu0
      %v833 = vpop.trf.xlu0
      %v834 = vpop.trf.xlu0
      %v835 = vpop.trf.xlu0
      %846 = vrot.lane.b32.xlu0 %v694, 16
      %v847 = vpop.permute.xlu0 %846
      %848 = vrot.lane.b32.xlu0 %v695, 16
      %v849 = vpop.permute.xlu0 %848
      %850 = vrot.lane.b32.xlu0 %v726, 16
      %v851 = vpop.permute.xlu0 %850
      %852 = vrot.lane.b32.xlu0 %v727, 16
      %v853 = vpop.permute.xlu0 %852
      %854 = vrot.lane.b32.xlu0 %v758, 16
      %v855 = vpop.permute.xlu0 %854
      %856 = vrot.lane.b32.xlu0 %v759, 16
      %v857 = vpop.permute.xlu0 %856
      %858 = vrot.lane.b32.xlu0 %v790, 16
      %v859 = vpop.permute.xlu0 %858
      %860 = vrot.lane.b32.xlu0 %v791, 16
      %v861 = vpop.permute.xlu0 %860
      %862 = vrot.lane.b32.xlu0 %v822, 16
      %v863 = vpop.permute.xlu0 %862
      %864 = vrot.lane.b32.xlu0 %v823, 16
      %v865 = vpop.permute.xlu0 %864
      %886 = vrot.lane.b32.xlu0 %v696, 32
      %v887 = vpop.permute.xlu0 %886
      %888 = vrot.lane.b32.xlu0 %v697, 32
      %v889 = vpop.permute.xlu0 %888
      %890 = vrot.lane.b32.xlu0 %v728, 32
      %v891 = vpop.permute.xlu0 %890
      %892 = vrot.lane.b32.xlu0 %v729, 32
      %v893 = vpop.permute.xlu0 %892
      %894 = vrot.lane.b32.xlu0 %v760, 32
      %v895 = vpop.permute.xlu0 %894
      %896 = vrot.lane.b32.xlu0 %v761, 32
      %v897 = vpop.permute.xlu0 %896
      %898 = vrot.lane.b32.xlu0 %v792, 32
      %v899 = vpop.permute.xlu0 %898
      %900 = vrot.lane.b32.xlu0 %v793, 32
      %v901 = vpop.permute.xlu0 %900
      %902 = vrot.lane.b32.xlu0 %v824, 32
      %v903 = vpop.permute.xlu0 %902
      %904 = vrot.lane.b32.xlu0 %v825, 32
      %v905 = vpop.permute.xlu0 %904
      %926 = vrot.lane.b32.xlu0 %v698, 48
      %v927 = vpop.permute.xlu0 %926
      %928 = vrot.lane.b32.xlu0 %v699, 48
      %v929 = vpop.permute.xlu0 %928
      %930 = vrot.lane.b32.xlu0 %v730, 48
      %v931 = vpop.permute.xlu0 %930
      %932 = vrot.lane.b32.xlu0 %v731, 48
      %v933 = vpop.permute.xlu0 %932
      %934 = vrot.lane.b32.xlu0 %v762, 48
      %v935 = vpop.permute.xlu0 %934
      %936 = vrot.lane.b32.xlu0 %v763, 48
      %v937 = vpop.permute.xlu0 %936
      %938 = vrot.lane.b32.xlu0 %v794, 48
      %v939 = vpop.permute.xlu0 %938
      %940 = vrot.lane.b32.xlu0 %v795, 48
      %v941 = vpop.permute.xlu0 %940
      %942 = vrot.lane.b32.xlu0 %v826, 48
      %v943 = vpop.permute.xlu0 %942
      %944 = vrot.lane.b32.xlu0 %v827, 48
      %v945 = vpop.permute.xlu0 %944
      %966 = vrot.lane.b32.xlu0 %v700, 64
      %v967 = vpop.permute.xlu0 %966
      %968 = vrot.lane.b32.xlu0 %v701, 64
      %v969 = vpop.permute.xlu0 %968
      %970 = vrot.lane.b32.xlu0 %v732, 64
      %v971 = vpop.permute.xlu0 %970
      %972 = vrot.lane.b32.xlu0 %v733, 64
      %v973 = vpop.permute.xlu0 %972
      %974 = vrot.lane.b32.xlu0 %v764, 64
      %v975 = vpop.permute.xlu0 %974
      %976 = vrot.lane.b32.xlu0 %v765, 64
      %v977 = vpop.permute.xlu0 %976
      %978 = vrot.lane.b32.xlu0 %v796, 64
      %v979 = vpop.permute.xlu0 %978
      %980 = vrot.lane.b32.xlu0 %v797, 64
      %v981 = vpop.permute.xlu0 %980
      %982 = vrot.lane.b32.xlu0 %v828, 64
      %v983 = vpop.permute.xlu0 %982
      %984 = vrot.lane.b32.xlu0 %v829, 64
      %v985 = vpop.permute.xlu0 %984
      %1006 = vrot.lane.b32.xlu0 %v702, 80
      %v1007 = vpop.permute.xlu0 %1006
      %1008 = vrot.lane.b32.xlu0 %v703, 80
      %v1009 = vpop.permute.xlu0 %1008
      %1010 = vrot.lane.b32.xlu0 %v734, 80
      %v1011 = vpop.permute.xlu0 %1010
      %1012 = vrot.lane.b32.xlu0 %v735, 80
      %v1013 = vpop.permute.xlu0 %1012
      %1014 = vrot.lane.b32.xlu0 %v766, 80
      %v1015 = vpop.permute.xlu0 %1014
      %1016 = vrot.lane.b32.xlu0 %v767, 80
      %v1017 = vpop.permute.xlu0 %1016
      %1018 = vrot.lane.b32.xlu0 %v798, 80
      %v1019 = vpop.permute.xlu0 %1018
      %1020 = vrot.lane.b32.xlu0 %v799, 80
      %v1021 = vpop.permute.xlu0 %1020
      %1022 = vrot.lane.b32.xlu0 %v830, 80
      %v1023 = vpop.permute.xlu0 %1022
      %1024 = vrot.lane.b32.xlu0 %v831, 80
      %v1025 = vpop.permute.xlu0 %1024
      %1046 = vrot.lane.b32.xlu0 %v704, 96
      %v1047 = vpop.permute.xlu0 %1046
      %1048 = vrot.lane.b32.xlu0 %v705, 96
      %v1049 = vpop.permute.xlu0 %1048
      %1050 = vrot.lane.b32.xlu0 %v736, 96
      %v1051 = vpop.permute.xlu0 %1050
      %1052 = vrot.lane.b32.xlu0 %v737, 96
      %v1053 = vpop.permute.xlu0 %1052
      %1054 = vrot.lane.b32.xlu0 %v768, 96
      %v1055 = vpop.permute.xlu0 %1054
      %1056 = vrot.lane.b32.xlu0 %v769, 96
      %v1057 = vpop.permute.xlu0 %1056
      %1058 = vrot.lane.b32.xlu0 %v800, 96
      %v1059 = vpop.permute.xlu0 %1058
      %1060 = vrot.lane.b32.xlu0 %v801, 96
      %v1061 = vpop.permute.xlu0 %1060
      %1062 = vrot.lane.b32.xlu0 %v832, 96
      %v1063 = vpop.permute.xlu0 %1062
      %1064 = vrot.lane.b32.xlu0 %v833, 96
      %v1065 = vpop.permute.xlu0 %1064
      %1086 = vrot.lane.b32.xlu0 %v706, 112
      %v1087 = vpop.permute.xlu0 %1086
      %1088 = vrot.lane.b32.xlu0 %v707, 112
      %v1089 = vpop.permute.xlu0 %1088
      %1090 = vrot.lane.b32.xlu0 %v738, 112
      %v1091 = vpop.permute.xlu0 %1090
      %1092 = vrot.lane.b32.xlu0 %v739, 112
      %v1093 = vpop.permute.xlu0 %1092
      %1094 = vrot.lane.b32.xlu0 %v770, 112
      %v1095 = vpop.permute.xlu0 %1094
      %1096 = vrot.lane.b32.xlu0 %v771, 112
      %v1097 = vpop.permute.xlu0 %1096
      %1098 = vrot.lane.b32.xlu0 %v802, 112
      %v1099 = vpop.permute.xlu0 %1098
      %1100 = vrot.lane.b32.xlu0 %v803, 112
      %v1101 = vpop.permute.xlu0 %1100
      %1102 = vrot.lane.b32.xlu0 %v834, 112
      %v1103 = vpop.permute.xlu0 %1102
      %1104 = vrot.lane.b32.xlu0 %v835, 112
      %v1105 = vpop.permute.xlu0 %1104
      %v1116 = vsel %vm438, %v692, %v847
      %v1117 = vsel %vm438, %v693, %v849
      %v1118 = vsel %vm438, %v724, %v851
      %v1119 = vsel %vm438, %v725, %v853
      %v1120 = vsel %vm438, %v756, %v855
      %v1121 = vsel %vm438, %v757, %v857
      %v1122 = vsel %vm438, %v788, %v859
      %v1123 = vsel %vm438, %v789, %v861
      %v1124 = vsel %vm438, %v820, %v863
      %v1125 = vsel %vm438, %v821, %v865
      %v1126 = vsel %vm444, %v1116, %v887
      %v1127 = vsel %vm444, %v1117, %v889
      %v1128 = vsel %vm444, %v1118, %v891
      %v1129 = vsel %vm444, %v1119, %v893
      %v1130 = vsel %vm444, %v1120, %v895
      %v1131 = vsel %vm444, %v1121, %v897
      %v1132 = vsel %vm444, %v1122, %v899
      %v1133 = vsel %vm444, %v1123, %v901
      %v1134 = vsel %vm444, %v1124, %v903
      %v1135 = vsel %vm444, %v1125, %v905
      %v1136 = vsel %vm450, %v1126, %v927
      %v1137 = vsel %vm450, %v1127, %v929
      %v1138 = vsel %vm450, %v1128, %v931
      %v1139 = vsel %vm450, %v1129, %v933
      %v1140 = vsel %vm450, %v1130, %v935
      %v1141 = vsel %vm450, %v1131, %v937
      %v1142 = vsel %vm450, %v1132, %v939
      %v1143 = vsel %vm450, %v1133, %v941
      %v1144 = vsel %vm450, %v1134, %v943
      %v1145 = vsel %vm450, %v1135, %v945
      %v1146 = vsel %vm456, %v1136, %v967
      %v1147 = vsel %vm456, %v1137, %v969
      %v1148 = vsel %vm456, %v1138, %v971
      %v1149 = vsel %vm456, %v1139, %v973
      %v1150 = vsel %vm456, %v1140, %v975
      %v1151 = vsel %vm456, %v1141, %v977
      %v1152 = vsel %vm456, %v1142, %v979
      %v1153 = vsel %vm456, %v1143, %v981
      %v1154 = vsel %vm456, %v1144, %v983
      %v1155 = vsel %vm456, %v1145, %v985
      %v1156 = vsel %vm462, %v1146, %v1007
      %v1157 = vsel %vm462, %v1147, %v1009
      %v1158 = vsel %vm462, %v1148, %v1011
      %v1159 = vsel %vm462, %v1149, %v1013
      %v1160 = vsel %vm462, %v1150, %v1015
      %v1161 = vsel %vm462, %v1151, %v1017
      %v1162 = vsel %vm462, %v1152, %v1019
      %v1163 = vsel %vm462, %v1153, %v1021
      %v1164 = vsel %vm462, %v1154, %v1023
      %v1165 = vsel %vm462, %v1155, %v1025
      %v1166 = vsel %vm468, %v1156, %v1047
      %v1167 = vsel %vm468, %v1157, %v1049
      %v1168 = vsel %vm468, %v1158, %v1051
      %v1169 = vsel %vm468, %v1159, %v1053
      %v1170 = vsel %vm468, %v1160, %v1055
      %v1171 = vsel %vm468, %v1161, %v1057
      %v1172 = vsel %vm468, %v1162, %v1059
      %v1173 = vsel %vm468, %v1163, %v1061
      %v1174 = vsel %vm468, %v1164, %v1063
      %v1175 = vsel %vm468, %v1165, %v1065
      %v1176 = vsel %vm474, %v1166, %v1087
      %v1177 = vsel %vm474, %v1167, %v1089
      %v1178 = vsel %vm474, %v1168, %v1091
      %v1179 = vsel %vm474, %v1169, %v1093
      %v1180 = vsel %vm474, %v1170, %v1095
      %v1181 = vsel %vm474, %v1171, %v1097
      %v1182 = vsel %vm474, %v1172, %v1099
      %v1183 = vsel %vm474, %v1173, %v1101
      %v1184 = vsel %vm474, %v1174, %v1103
      %v1185 = vsel %vm474, %v1175, %v1105
      %1186 = vxpose.xlu0.b32.start [1/16] %v1176, 128
      %1187 = vxpose.xlu0.b32.cont [2/16] %v1177, 128
      %1188 = vxpose.xlu0.b32.cont [3/16] %v1178, 128
      %1189 = vxpose.xlu0.b32.cont [4/16] %v1179, 128
      %1190 = vxpose.xlu0.b32.cont [5/16] %v1180, 128
      %1191 = vxpose.xlu0.b32.cont [6/16] %v1181, 128
      %1192 = vxpose.xlu0.b32.cont [7/16] %v1182, 128
      %1193 = vxpose.xlu0.b32.cont [8/16] %v1183, 128
      %1194 = vxpose.xlu0.b32.cont [9/16] %v1184, 128
      %1195 = vxpose.xlu0.b32.cont [10/16] %v1185, 128
      %1196 = vxpose.xlu0.b32.cont [11/16] 0.0, 128
      %1197 = vxpose.xlu0.b32.cont [12/16] 0.0, 128
      %1198 = vxpose.xlu0.b32.cont [13/16] 0.0, 128
      %1199 = vxpose.xlu0.b32.cont [14/16] 0.0, 128
      %1200 = vxpose.xlu0.b32.cont [15/16] 0.0, 128
      %1201 = vxpose.xlu0.b32.end [16/16] 0.0, 128
      %v1202 = vpop.trf.xlu0
      %v1203 = vpop.trf.xlu0
      %v1204 = vpop.trf.xlu0
      %v1205 = vpop.trf.xlu0
      %v1206 = vpop.trf.xlu0
      %v1207 = vpop.trf.xlu0
      %v1208 = vpop.trf.xlu0
      %v1209 = vpop.trf.xlu0
      %v1210 = vpop.trf.xlu0
      %v1211 = vpop.trf.xlu0
      %v1212 = vpop.trf.xlu0
      %v1213 = vpop.trf.xlu0
      %v1214 = vpop.trf.xlu0
      %v1215 = vpop.trf.xlu0
      %v1216 = vpop.trf.xlu0
      %v1217 = vpop.trf.xlu0
      %v1218 = vpack.c.bf16 %v1203, %v1202
      %v1219 = vpack.c.bf16 %v1205, %v1204
      %v1220 = vpack.c.bf16 %v1207, %v1206
      %v1221 = vpack.c.bf16 %v1209, %v1208
      %v1222 = vpack.c.bf16 %v1211, %v1210
      %v1223 = vpack.c.bf16 %v1213, %v1212
      %v1224 = vpack.c.bf16 %v1215, %v1214
      %v1225 = vpack.c.bf16 %v1217, %v1216
      %v1226 = vld [vmem:[%s3] sm:$0xf]
      %v1227 = vld [vmem:[%s3 + $0x4] sm:$0xf]
      %v1228 = vld [vmem:[%s3 + $0x8] sm:$0xf]
      %v1229 = vld [vmem:[%s3 + $0xc] sm:$0xf]
      %v1230 = vld [vmem:[%s3 + $0x10] sm:$0xf]
      %v1231 = vld [vmem:[%s3 + $0x14] sm:$0xf]
      %v1232 = vld [vmem:[%s3 + $0x18] sm:$0xf]
      %v1233 = vld [vmem:[%s3 + $0x1c] sm:$0xf]
      %v1234 = vld [vmem:[%s3 + $0x20] sm:$0xf]
      %v1235 = vld [vmem:[%s3 + $0x24] sm:$0xf]
      %v1236 = vld [vmem:[%s4] sm:$0x1]
      %v1238 = vlaneseq
      %v1239 = vshrl.u32 %v1238, 7
      %v1240 = vsub.s32 0, %v1239
      %v1241 = vrot.slane %v1236, %v1240
      %v1253 = vunpack.c.l.b16 %v1226
      %v1254 = vunpack.c.l.b16 %v1227
      %v1255 = vunpack.c.l.b16 %v1228
      %v1256 = vunpack.c.l.b16 %v1229
      %v1257 = vunpack.c.l.b16 %v1230
      %v1258 = vunpack.c.l.b16 %v1231
      %v1259 = vunpack.c.l.b16 %v1232
      %v1260 = vunpack.c.l.b16 %v1233
      %v1261 = vunpack.c.l.b16 %v1234
      %v1262 = vunpack.c.l.b16 %v1235
      %v1263 = vpack.c.b16 %v1254, %v1253
      %v1264 = vpack.c.b16 %v1256, %v1255
      %v1265 = vpack.c.b16 %v1258, %v1257
      %v1266 = vpack.c.b16 %v1260, %v1259
      %v1267 = vpack.c.b16 %v1262, %v1261
      %v1274 = vsel %vm462, %v1218, 0
      %v1277 = vsel %vm462, %v1219, 0
      %v1280 = vsel %vm462, %v1220, 0
      %v1283 = vsel %vm462, %v1221, 0
      %v1286 = vsel %vm462, %v1222, 0
      %v1289 = vsel %vm462, %v1223, 0
      %v1292 = vsel %vm462, %v1224, 0
      %v1295 = vsel %vm462, %v1225, 0
      %1297 = vmatprep.subr.bf16.mxu0 0
      %1298 = vmatpush1.bf16.msra.mxu0 %v1263
      %1299 = vmatprep.subr.bf16.mxu0 0
      %1300 = vmatpush1.bf16.msra.mxu0 %v1264
      %1301 = vmatprep.subr.bf16.mxu0 0
      %1302 = vmatpush1.bf16.msra.mxu0 %v1265
      %1303 = vmatprep.subr.bf16.mxu0 0
      %1304 = vmatpush1.bf16.msra.mxu0 %v1266
      %1305 = vmatprep.subr.bf16.mxu0 0
      %1306 = vmatpush1.bf16.msra.mxu0 %v1267
      %1307 = vmatprep.subr.bf16.mxu0 0
      %1308 = vmatpush1.bf16.msra.mxu0 0
      %1309 = vmatprep.subr.bf16.mxu0 0
      %1310 = vmatpush1.bf16.msra.mxu0 0
      %1311 = vmatprep.subr.bf16.mxu0 0
      %1312 = vmatpush1.bf16.msra.mxu0 0
      %1313 = vmatprep.subr.bf16.mxu0 0
      %1314 = vmatpush1.bf16.msra.mxu0 0
      %1315 = vmatprep.subr.bf16.mxu0 0
      %1316 = vmatpush1.bf16.msra.mxu0 0
      %1317 = vmatprep.subr.bf16.mxu0 0
      %1318 = vmatpush1.bf16.msra.mxu0 0
      %1319 = vmatprep.subr.bf16.mxu0 0
      %1320 = vmatpush1.bf16.msra.mxu0 0
      %1321 = vmatprep.subr.bf16.mxu0 0
      %1322 = vmatpush1.bf16.msra.mxu0 0
      %1323 = vmatprep.subr.bf16.mxu0 0
      %1324 = vmatpush1.bf16.msra.mxu0 0
      %1325 = vmatprep.subr.bf16.mxu0 0
      %1326 = vmatpush1.bf16.msra.mxu0 0
      %1327 = vmatprep.subr.bf16.mxu0 0
      %1328 = vmatpush1.bf16.msra.mxu0 0
      %1329 = vmatprep.mubr.bf16.mxu0 0
      %1330 = vmatmul.mubr.bf16.gmra.mrb[0].mxu0 %v1274
      %v1331 = vpop.f32.mrb[0].mxu0
      %v1332 = vadd.f32 %v1241, %v1331
      %v1333 = vpop.f32.mrb[0].mxu0
      %v1334 = vpop.f32.mrb[0].mxu0
      %v1335 = vadd.f32 %v1241, %v1334
      %v1336 = vpop.f32.mrb[0].mxu0
      %1337 = vmatprep.mubr.bf16.mxu0 0
      %1338 = vmatmul.mubr.bf16.gmra.mrb[0].mxu0 %v1277
      %v1339 = vpop.f32.mrb[0].mxu0
      %v1340 = vadd.f32 %v1241, %v1339
      %v1341 = vpop.f32.mrb[0].mxu0
      %v1342 = vpop.f32.mrb[0].mxu0
      %v1343 = vadd.f32 %v1241, %v1342
      %v1344 = vpop.f32.mrb[0].mxu0
      %1345 = vmatprep.mubr.bf16.mxu0 0
      %1346 = vmatmul.mubr.bf16.gmra.mrb[0].mxu0 %v1280
      %v1347 = vpop.f32.mrb[0].mxu0
      %v1348 = vadd.f32 %v1241, %v1347
      %v1349 = vpop.f32.mrb[0].mxu0
      %v1350 = vpop.f32.mrb[0].mxu0
      %v1351 = vadd.f32 %v1241, %v1350
      %v1352 = vpop.f32.mrb[0].mxu0
      %1353 = vmatprep.mubr.bf16.mxu0 0
      %1354 = vmatmul.mubr.bf16.gmra.mrb[0].mxu0 %v1283
      %v1355 = vpop.f32.mrb[0].mxu0
      %v1356 = vadd.f32 %v1241, %v1355
      %v1357 = vpop.f32.mrb[0].mxu0
      %v1358 = vpop.f32.mrb[0].mxu0
      %v1359 = vadd.f32 %v1241, %v1358
      %v1360 = vpop.f32.mrb[0].mxu0
      %1361 = vmatprep.mubr.bf16.mxu0 0
      %1362 = vmatmul.mubr.bf16.gmra.mrb[0].mxu0 %v1286
      %v1363 = vpop.f32.mrb[0].mxu0
      %v1364 = vadd.f32 %v1241, %v1363
      %v1365 = vpop.f32.mrb[0].mxu0
      %v1366 = vpop.f32.mrb[0].mxu0
      %v1367 = vadd.f32 %v1241, %v1366
      %v1368 = vpop.f32.mrb[0].mxu0
      %1369 = vmatprep.mubr.bf16.mxu0 0
      %1370 = vmatmul.mubr.bf16.gmra.mrb[0].mxu0 %v1289
      %v1371 = vpop.f32.mrb[0].mxu0
      %v1372 = vadd.f32 %v1241, %v1371
      %v1373 = vpop.f32.mrb[0].mxu0
      %v1374 = vpop.f32.mrb[0].mxu0
      %v1375 = vadd.f32 %v1241, %v1374
      %v1376 = vpop.f32.mrb[0].mxu0
      %1377 = vmatprep.mubr.bf16.mxu0 0
      %1378 = vmatmul.mubr.bf16.gmra.mrb[0].mxu0 %v1292
      %v1379 = vpop.f32.mrb[0].mxu0
      %v1380 = vadd.f32 %v1241, %v1379
      %v1381 = vpop.f32.mrb[0].mxu0
      %v1382 = vpop.f32.mrb[0].mxu0
      %v1383 = vadd.f32 %v1241, %v1382
      %v1384 = vpop.f32.mrb[0].mxu0
      %1385 = vmatprep.mubr.bf16.mxu0 0
      %1386 = vmatmul.mubr.bf16.gmra.mrb[0].mxu0 %v1295
      %v1387 = vpop.f32.mrb[0].mxu0
      %v1388 = vadd.f32 %v1241, %v1387
      %v1389 = vpop.f32.mrb[0].mxu0
      %v1390 = vpop.f32.mrb[0].mxu0
      %v1391 = vadd.f32 %v1241, %v1390
      %v1392 = vpop.f32.mrb[0].mxu0
      %1393 = vdwg.mxu0
      %1394 = vst.msk [vmem:[%s248] sm:$0xff] %vm438, %v1332
      %1395 = vst.msk [vmem:[%s248 + $0x8] sm:$0xff] %vm438, %v1335
      %1396 = vst.msk [vmem:[%s248 + $0x10] sm:$0xff] %vm438, %v1340
      %1397 = vst.msk [vmem:[%s248 + $0x18] sm:$0xff] %vm438, %v1343
      %1398 = vst.msk [vmem:[%s248 + $0x20] sm:$0xff] %vm438, %v1348
      %1399 = vst.msk [vmem:[%s248 + $0x28] sm:$0xff] %vm438, %v1351
      %1400 = vst.msk [vmem:[%s248 + $0x30] sm:$0xff] %vm438, %v1356
      %1401 = vst.msk [vmem:[%s248 + $0x38] sm:$0xff] %vm438, %v1359
      %1402 = vst.msk [vmem:[%s248 + $0x40] sm:$0xff] %vm438, %v1364
      %1403 = vst.msk [vmem:[%s248 + $0x48] sm:$0xff] %vm438, %v1367
      %1404 = vst.msk [vmem:[%s248 + $0x50] sm:$0xff] %vm438, %v1372
      %1405 = vst.msk [vmem:[%s248 + $0x58] sm:$0xff] %vm438, %v1375
      %1406 = vst.msk [vmem:[%s248 + $0x60] sm:$0xff] %vm438, %v1380
      %1407 = vst.msk [vmem:[%s248 + $0x68] sm:$0xff] %vm438, %v1383
      %1408 = vst.msk [vmem:[%s248 + $0x70] sm:$0xff] %vm438, %v1388
      %1409 = vst.msk [vmem:[%s248 + $0x78] sm:$0xff] %vm438, %v1391
      %s1410 = smul.u32 16, %s16
      %p1411 = scmp.lt.s32.totalorder %s1410, 63
      %s1412 = scalar_select %p1411, %s1410, 63
      %s1413 = smul.addr %s1412, 8
      %s1414 = scalar_lea.vmem %s5, %s1413
      // Predicated region
      $region41: #{tpu_custom_call.1} parent=39 // pred_check
        %p1415 = pneg %p149
      $region42: #{tpu_custom_call.1} parent=39 // pred_check_branch
        %1417 = sbr.rel (%p1415) target = $region44
      $region43: #{tpu_custom_call.1} parent=39 // pred_region
        %s1418 = smul.u32 16, %s16
      $region44: #{tpu_custom_call.1} parent=39 // pred_fallthru
        _
    $region40: #{tpu_custom_call.1} parent=5 // pred_fallthru
      _
    %p1419 = scmp.le.s32.totalorder 2, %s11
    // Predicated region
    $region45: #{tpu_custom_call.1} parent=5 // pred_check
      %p1420 = pneg %p1419
    $region46: #{tpu_custom_call.1} parent=5 // pred_check_branch
      %1422 = sbr.rel (%p1420) target = $region48
    $region47: #{tpu_custom_call.1} parent=5 // pred_region
      %s1423 = ssub.s32 %s11, 2
      // Predicated region
      $region49: #{tpu_custom_call.1} parent=47 // pred_check
        %p1424 = pneg %p155
      $region50: #{tpu_custom_call.1} parent=47 // pred_check_branch
        %1426 = sbr.rel (%p1424) target = $region52
      $region51: #{tpu_custom_call.1} parent=47 // pred_region
        %s1427 = smul.u32 16, %s17
        %p1428 = scmp.lt.s32.totalorder %s1427, 63
        %s1429 = scalar_select %p1428, %s1427, 63
        %s1430 = smul.addr %s1429, 8
        %s1431 = scalar_lea.vmem %s5, %s1430
      $region52: #{tpu_custom_call.1} parent=47 // pred_fallthru
        _
    $region48: #{tpu_custom_call.1} parent=5 // pred_fallthru
      _
  $region6: #{tpu_custom_call.1} parent=0 // loop_footer
    %s15 = sadd.s32 1, %s11
  $region7: #{tpu_custom_call.1} parent=0 // loop_footer_branch
    %10 = sbr.rel target = $region3
  $region8: #{tpu_custom_call.1} parent=0 // loop_exit
    _

</llo_original>
